<compile_context>
chip_gen: v5e
topology: v5e:2x2
jax: 0.10.0
libtpu: 0.0.40
codegen_flags: <defaults>
</compile_context>

<pallas_src>
import functools

import jax
import jax.numpy as jnp
import numpy as np
from jax import lax
from jax.experimental import pallas as pl
from jax.experimental.pallas import tpu as pltpu


# ----------------------------- Pallas kernel --------------------------------

def _classifier_kernel(H, W, use_bf16_dw,
                       x_ref, dwb_ref, bia_ref, pwb_ref, wf_ref, bf_ref,
                       o_ref):
    """x_ref block: (C, L) channel-major with L = B_blk*H*W (batch fused along
    the lane axis).  o_ref block: (nc, L) -- lane-dense store."""
    x = x_ref[...]                                 # (C, L) f32
    C, L = x.shape
    HW = H * W

    # Per-image spatial index along the fused lane axis (HW / W are powers of
    # two at these shapes -> bitwise AND) + per-tap boundary masks for the 3x3
    # depthwise conv.  Computed once per grid step (shared by both dsconvs);
    # cross-image roll wraparound always lands on masked positions.
    lane = lax.broadcasted_iota(jnp.int32, (1, L), 1)
    flat = jnp.bitwise_and(lane, HW - 1) if (HW & (HW - 1)) == 0 else lane % HW
    w_idx = jnp.bitwise_and(flat, W - 1) if (W & (W - 1)) == 0 else flat % W

    taps = []                                      # (static lane roll, validity mask)
    for oy in (-1, 0, 1):
        for ox in (-1, 0, 1):
            shift = (-(oy * W + ox)) % L
            conds = []
            if oy == -1:
                conds.append(flat >= W)            # h >= 1
            elif oy == 1:
                conds.append(flat < (H - 1) * W)   # h <= H-2
            if ox == -1:
                conds.append(w_idx >= 1)           # w >= 1
            elif ox == 1:
                conds.append(w_idx < W - 1)        # w <= W-2
            mask = None
            for c in conds:
                mask = c if mask is None else jnp.logical_and(mask, c)
            taps.append((shift, mask))

    dw_dtype = jnp.bfloat16 if use_bf16_dw else jnp.float32

    def dw_conv3x3(y, dw):
        # y: (C, L) f32; dw: (C, 9) f32 per-channel taps (BN scale folded in).
        # Shift-and-mask via XLU lane rolls; rolls/selects optionally run on
        # packed bf16 vregs (v6e/v7x), multiply-accumulate stays f32.
        yd = y.astype(dw_dtype)
        zero = jnp.zeros((), dw_dtype)
        acc = jnp.zeros(y.shape, jnp.float32)
        for k, (shift, mask) in enumerate(taps):
            t = yd if shift == 0 else pltpu.roll(yd, shift, axis=1)
            if mask is not None:
                t = jnp.where(mask, t, zero)
            acc = acc + t.astype(jnp.float32) * dw[:, k:k + 1]
        return acc

    def dsconv(y, dw, b_a, pw_bf16, b_b):
        # depthwise 3x3 (+ folded BN) + ReLU
        y = jnp.maximum(dw_conv3x3(y, dw) + b_a, 0.0)
        # pointwise 1x1 (+ folded BN) + ReLU: (C_out, C_in) @ (C_in, L) on the
        # MXU; weights pre-cast to bf16 on host, f32 accumulation.
        z = jnp.dot(pw_bf16, y.astype(jnp.bfloat16),
                    preferred_element_type=jnp.float32)
        return jnp.maximum(z + b_b, 0.0)

    y = dsconv(x, dwb_ref[0], bia_ref[:, 0:1], pwb_ref[0], bia_ref[:, 1:2])
    y = dsconv(y, dwb_ref[1], bia_ref[:, 2:3], pwb_ref[1], bia_ref[:, 3:4])

    # Dropout(0.1) is identity at inference.
    # TODO(synk): training-mode dropout (stateful PRNG masking) not implemented.
    out = jnp.dot(wf_ref[...], y.astype(jnp.bfloat16),
                  preferred_element_type=jnp.float32) + bf_ref[...]
    o_ref[...] = out                               # (nc, L): lane-dense store


# ------------------------------- wrapper -------------------------------------

@functools.lru_cache(maxsize=None)
def _build_classifier_call(N_pad, C, H, W, nc, n_blocks, use_bf16_dw):
    HW = H * W
    B_blk = N_pad // n_blocks
    L_blk = B_blk * HW
    assert n_blocks == 1 or L_blk % 128 == 0, (
        "fused lane extent per block must be a multiple of 128")

    kernel = functools.partial(_classifier_kernel, H, W, use_bf16_dw)

    flops = N_pad * HW * (36 * C + 4 * C * C + 2 * C * nc)
    bytes_accessed = (4 * N_pad * HW * (C + nc)            # activations in/out
                      + 2 * (2 * C * C + nc * C)           # bf16 weights
                      + 4 * (2 * C * 9 + 4 * C + nc))      # f32 taps / biases

    call = pl.pallas_call(
        kernel,
        out_shape=jax.ShapeDtypeStruct((nc, N_pad * HW), jnp.float32),
        grid_spec=pltpu.PrefetchScalarGridSpec(
            num_scalar_prefetch=0,
            grid=(n_blocks,),
            in_specs=[
                pl.BlockSpec((C, L_blk), lambda n: (0, n)),    # fused activations
                pl.BlockSpec((2, C, 9), lambda n: (0, 0, 0)),  # dw taps (both layers)
                pl.BlockSpec((C, 4), lambda n: (0, 0)),        # folded BN biases
                pl.BlockSpec((2, C, C), lambda n: (0, 0, 0)),  # pw weights (bf16)
                pl.BlockSpec((nc, C), lambda n: (0, 0)),       # final weight (bf16)
                pl.BlockSpec((nc, 1), lambda n: (0, 0)),       # final bias
            ],
            out_specs=pl.BlockSpec((nc, L_blk), lambda n: (0, n)),
        ),
        compiler_params=pltpu.CompilerParams(
            dimension_semantics=("parallel",)),    # block axis across TCs on v7x
        cost_estimate=pl.CostEstimate(flops=int(flops), transcendentals=0,
                                      bytes_accessed=int(bytes_accessed)),
    )
    return jax.jit(call)


def _supports_bf16_vpu():
    """bf16 VPU/XLU path exists on v6e / v7x; keep f32 depthwise on v5e/older."""
    try:
        kind = jax.devices()[0].device_kind.lower()
    except Exception:
        return False
    return any(tag in kind for tag in ("v6", "v7", "7x"))


def classifier_forward(x_nchw, kp, *, n_blocks=None):
    """x_nchw: (N, C, H, W) float32 (PyTorch layout).  kp: prepare_params output.
    Returns (N, num_classes, H, W) float32 (PyTorch NCHW layout)."""
    N, C, H, W = x_nchw.shape
    HW = H * W
    nc = kp["wf"].shape[0]

    # >= 2 grid steps whenever possible so both v7x TensorCores get work; each
    # step processes B_blk images fused along the lane axis.
    if n_blocks is None:
        n_blocks = 2 if N >= 2 else 1
    B_blk = -(-N // n_blocks)                      # ceil
    N_pad = n_blocks * B_blk

    x_cm = x_nchw.reshape(N, C, HW)
    if N_pad != N:
        x_cm = jnp.pad(x_cm, ((0, N_pad - N), (0, 0), (0, 0)))
    # Channel-major with batch concatenated along the lane axis: (C, N_pad*HW).
    x_cm = jnp.transpose(x_cm, (1, 0, 2)).reshape(C, N_pad * HW)

    attempts = (True, False) if _supports_bf16_vpu() else (False,)
    out = None
    for use_bf16_dw in attempts:
        fn = _build_classifier_call(N_pad, C, H, W, nc, n_blocks, use_bf16_dw)
        try:
            out = jax.block_until_ready(
                fn(x_cm, kp["dwb"], kp["bia"], kp["pwb"], kp["wf"], kp["bf"]))
            break
        except Exception:
            if not use_bf16_dw:
                raise                               # f32 path failing is a real error
            out = None                              # bf16 rolls unsupported -> f32 path

    out = out.reshape(nc, N_pad, HW).transpose(1, 0, 2)[:N]
    return out.reshape(N, nc, H, W)


# --------------------------- parameter handling -------------------------------

def _init_bn(key, C):
    k1, k2, k3, k4 = jax.random.split(key, 4)
    return {"gamma": 1.0 + 0.1 * jax.random.normal(k1, (C,), jnp.float32),
            "beta": 0.1 * jax.random.normal(k2, (C,), jnp.float32),
            "mean": 0.1 * jax.random.normal(k3, (C,), jnp.float32),
            "var": jnp.abs(jax.random.normal(k4, (C,), jnp.float32)) + 0.5}


def init_params(key, C, num_classes):
    """Raw parameters mirroring the PyTorch module."""
    ks = jax.random.split(key, 10)
    return {
        "dw1": 0.2 * jax.random.normal(ks[0], (C, 3, 3), jnp.float32),
        "bn1a": _init_bn(ks[1], C),
        "pw1": 0.1 * jax.random.normal(ks[2], (C, C), jnp.float32),   # (C_out, C_in)
        "bn1b": _init_bn(ks[3], C),
        "dw2": 0.2 * jax.random.normal(ks[4], (C, 3, 3), jnp.float32),
        "bn2a": _init_bn(ks[5], C),
        "pw2": 0.1 * jax.random.normal(ks[6], (C, C), jnp.float32),
        "bn2b": _init_bn(ks[7], C),
        "wf": 0.1 * jax.random.normal(ks[8], (num_classes, C), jnp.float32),
        "bf": 0.1 * jax.random.normal(ks[9], (num_classes,), jnp.float32),
    }


def _bn_fold(bn, eps=1e-5):
    scale = bn["gamma"] / jnp.sqrt(bn["var"] + eps)
    return scale, bn["beta"] - bn["mean"] * scale


def prepare_params(p):
    """Fold eval-mode BatchNorms into conv weights/biases (exact algebra), pack
    per-channel params (fewer DMA chains), pre-cast MXU weights to bf16."""
    C = p["pw1"].shape[0]
    nc = p["wf"].shape[0]
    s1a, b1a = _bn_fold(p["bn1a"])
    s1b, b1b = _bn_fold(p["bn1b"])
    s2a, b2a = _bn_fold(p["bn2a"])
    s2b, b2b = _bn_fold(p["bn2b"])
    dw1 = p["dw1"].reshape(C, 9) * s1a[:, None]      # per-channel BN scale folded (f32)
    dw2 = p["dw2"].reshape(C, 9) * s2a[:, None]
    pw1 = p["pw1"] * s1b[:, None]                    # BN scale folded into out rows
    pw2 = p["pw2"] * s2b[:, None]
    return {
        "dwb": jnp.stack([dw1, dw2], axis=0),                        # (2, C, 9) f32
        "bia": jnp.stack([b1a, b1b, b2a, b2b], axis=1),              # (C, 4)    f32
        "pwb": jnp.stack([pw1, pw2], axis=0).astype(jnp.bfloat16),   # (2, C, C) bf16
        "wf": p["wf"].astype(jnp.bfloat16),                          # (nc, C)   bf16
        "bf": p["bf"].reshape(nc, 1),                                # (nc, 1)   f32
    }


# --------------------------- pure-JAX reference -------------------------------

def reference_forward(x_nchw, p, eps=1e-5):
    """NCHW reference mirroring the PyTorch module in eval mode."""
    C = x_nchw.shape[1]

    def bn(y, b):
        scale = b["gamma"] / jnp.sqrt(b["var"] + eps)
        bias = b["beta"] - b["mean"] * scale
        return y * scale[None, :, None, None] + bias[None, :, None, None]

    def dsconv(y, dw, bna, pw, bnb):
        y = lax.conv_general_dilated(
            y, dw.reshape(C, 1, 3, 3), window_strides=(1, 1),
            padding=((1, 1), (1, 1)),
            dimension_numbers=("NCHW", "OIHW", "NCHW"),
            feature_group_count=C)
        y = jnp.maximum(bn(y, bna), 0.0)
        y = jnp.einsum("nchw,oc->nohw", y, pw)
        y = jnp.maximum(bn(y, bnb), 0.0)
        return y

    y = dsconv(x_nchw, p["dw1"], p["bn1a"], p["pw1"], p["bn1b"])
    y = dsconv(y, p["dw2"], p["bn2a"], p["pw2"], p["bn2b"])
    return (jnp.einsum("nchw,oc->nohw", y, p["wf"])
            + p["bf"][None, :, None, None])


# ----------------------------------- main -------------------------------------

if __name__ == "__main__":
    key = jax.random.PRNGKey(0)
    N, C, H, W = 8, 32, 16, 16          # dw_channels = 32; grid=(2,) with 4 images/step
    num_classes = 8

    kx, kparam = jax.random.split(key)
    x_nchw = jax.random.normal(kx, (N, C, H, W), jnp.float32)   # PyTorch layout

    raw_params = init_params(kparam, C, num_classes)
    params = prepare_params(raw_params)

    out = jax.block_until_ready(classifier_forward(x_nchw, params))  # (N, nc, H, W)
    ref = jax.block_until_ready(reference_forward(x_nchw, raw_params))

    # bf16 MXU operands (+ optional bf16 depthwise rolls on v6e/v7x), f32
    # accumulation -> relaxed tolerance vs the pure-f32 reference.
    np.testing.assert_allclose(np.asarray(out), np.asarray(ref),
                               rtol=2.5e-2, atol=2.5e-2)
    print("KERNEL_OK")
</pallas_src>

<mosaic_0001>
module attributes {stable_mosaic.version = 11 : i64} {
  func.func @_classifier_kernel(%arg0: i32, %arg1: memref<32x1024xf32, #tpu.memory_space<vmem>>, %arg2: memref<2x32x9xf32, #tpu.memory_space<vmem>>, %arg3: memref<32x4xf32, #tpu.memory_space<vmem>>, %arg4: memref<2x32x32xbf16, #tpu.memory_space<vmem>>, %arg5: memref<8x32xbf16, #tpu.memory_space<vmem>>, %arg6: memref<8x1xf32, #tpu.memory_space<vmem>>, %arg7: memref<8x1024xf32, #tpu.memory_space<vmem>>) attributes {dimension_semantics = [#tpu.dimension_semantics<parallel>], iteration_bounds = array<i64: 2>, scalar_prefetch = 0 : i64, scratch_operands = 0 : i64, tpu.core_type = #tpu.core_type<tc>, window_params = [{transform_indices = @transform_0, window_bounds = array<i64: 32, 1024>}, {pipeline_mode = #tpu.pipeline_mode<synchronous>, transform_indices = @transform_1, window_bounds = array<i64: 2, 32, 9>}, {pipeline_mode = #tpu.pipeline_mode<synchronous>, transform_indices = @transform_2, window_bounds = array<i64: 32, 4>}, {pipeline_mode = #tpu.pipeline_mode<synchronous>, transform_indices = @transform_3, window_bounds = array<i64: 2, 32, 32>}, {pipeline_mode = #tpu.pipeline_mode<synchronous>, transform_indices = @transform_4, window_bounds = array<i64: 8, 32>}, {pipeline_mode = #tpu.pipeline_mode<synchronous>, transform_indices = @transform_5, window_bounds = array<i64: 8, 1>}, {transform_indices = @transform_6, window_bounds = array<i64: 8, 1024>}]} {
    %c0 = arith.constant 0 : index
    %c0_0 = arith.constant 0 : index
    %0 = vector.load %arg1[%c0, %c0_0] : memref<32x1024xf32, #tpu.memory_space<vmem>>, vector<32x1024xf32>
    %1 = tpu.iota {dimensions = array<i32: 1>} : vector<1x1024xi32>
    %c255_i32 = arith.constant 255 : i32
    %2 = vector.broadcast %c255_i32 : i32 to vector<1x1024xi32>
    %3 = arith.andi %1, %2 : vector<1x1024xi32>
    %c15_i32 = arith.constant 15 : i32
    %4 = vector.broadcast %c15_i32 : i32 to vector<1x1024xi32>
    %5 = arith.andi %3, %4 : vector<1x1024xi32>
    %c16_i32 = arith.constant 16 : i32
    %6 = vector.broadcast %c16_i32 : i32 to vector<1x1024xi32>
    %7 = arith.cmpi sge, %3, %6 : vector<1x1024xi32>
    %c1_i32 = arith.constant 1 : i32
    %8 = vector.broadcast %c1_i32 : i32 to vector<1x1024xi32>
    %9 = arith.cmpi sge, %5, %8 : vector<1x1024xi32>
    %10 = arith.andi %7, %9 : vector<1x1024xi1>
    %c16_i32_1 = arith.constant 16 : i32
    %11 = vector.broadcast %c16_i32_1 : i32 to vector<1x1024xi32>
    %12 = arith.cmpi sge, %3, %11 : vector<1x1024xi32>
    %c16_i32_2 = arith.constant 16 : i32
    %13 = vector.broadcast %c16_i32_2 : i32 to vector<1x1024xi32>
    %14 = arith.cmpi sge, %3, %13 : vector<1x1024xi32>
    %c15_i32_3 = arith.constant 15 : i32
    %15 = vector.broadcast %c15_i32_3 : i32 to vector<1x1024xi32>
    %16 = arith.cmpi slt, %5, %15 : vector<1x1024xi32>
    %17 = arith.andi %14, %16 : vector<1x1024xi1>
    %c1_i32_4 = arith.constant 1 : i32
    %18 = vector.broadcast %c1_i32_4 : i32 to vector<1x1024xi32>
    %19 = arith.cmpi sge, %5, %18 : vector<1x1024xi32>
    %c15_i32_5 = arith.constant 15 : i32
    %20 = vector.broadcast %c15_i32_5 : i32 to vector<1x1024xi32>
    %21 = arith.cmpi slt, %5, %20 : vector<1x1024xi32>
    %c240_i32 = arith.constant 240 : i32
    %22 = vector.broadcast %c240_i32 : i32 to vector<1x1024xi32>
    %23 = arith.cmpi slt, %3, %22 : vector<1x1024xi32>
    %c1_i32_6 = arith.constant 1 : i32
    %24 = vector.broadcast %c1_i32_6 : i32 to vector<1x1024xi32>
    %25 = arith.cmpi sge, %5, %24 : vector<1x1024xi32>
    %26 = arith.andi %23, %25 : vector<1x1024xi1>
    %c240_i32_7 = arith.constant 240 : i32
    %27 = vector.broadcast %c240_i32_7 : i32 to vector<1x1024xi32>
    %28 = arith.cmpi slt, %3, %27 : vector<1x1024xi32>
    %c240_i32_8 = arith.constant 240 : i32
    %29 = vector.broadcast %c240_i32_8 : i32 to vector<1x1024xi32>
    %30 = arith.cmpi slt, %3, %29 : vector<1x1024xi32>
    %c15_i32_9 = arith.constant 15 : i32
    %31 = vector.broadcast %c15_i32_9 : i32 to vector<1x1024xi32>
    %32 = arith.cmpi slt, %5, %31 : vector<1x1024xi32>
    %33 = arith.andi %30, %32 : vector<1x1024xi1>
    %c0_10 = arith.constant 0 : index
    %c0_11 = arith.constant 0 : index
    %c0_12 = arith.constant 0 : index
    %34 = vector.load %arg2[%c0_10, %c0_11, %c0_12] : memref<2x32x9xf32, #tpu.memory_space<vmem>>, vector<1x32x9xf32>
    %35 = vector.shape_cast %34 : vector<1x32x9xf32> to vector<32x9xf32>
    %c0_13 = arith.constant 0 : index
    %c0_14 = arith.constant 0 : index
    %36 = vector.load %arg3[%c0_13, %c0_14] : memref<32x4xf32, #tpu.memory_space<vmem>>, vector<32x1xf32>
    %c0_15 = arith.constant 0 : index
    %c0_16 = arith.constant 0 : index
    %c0_17 = arith.constant 0 : index
    %37 = vector.load %arg4[%c0_15, %c0_16, %c0_17] : memref<2x32x32xbf16, #tpu.memory_space<vmem>>, vector<1x32x32xbf16>
    %38 = vector.shape_cast %37 : vector<1x32x32xbf16> to vector<32x32xbf16>
    %c0_18 = arith.constant 0 : index
    %c1 = arith.constant 1 : index
    %39 = vector.load %arg3[%c0_18, %c1] : memref<32x4xf32, #tpu.memory_space<vmem>>, vector<32x1xf32>
    %cst = arith.constant 0.000000e+00 : f32
    %40 = vector.broadcast %cst : f32 to vector<32x1024xf32>
    %c17_i32 = arith.constant 17 : i32
    %41 = tpu.dynamic_rotate %0 by %c17_i32 dim 1 : vector<32x1024xf32>, i32 -> vector<32x1024xf32>
    %cst_19 = arith.constant 0.000000e+00 : f32
    %42 = vector.shape_cast %10 : vector<1x1024xi1> to vector<1x1024xi1>
    %43 = vector.broadcast %42 : vector<1x1024xi1> to vector<32x1024xi1>
    %44 = vector.broadcast %cst_19 : f32 to vector<32x1024xf32>
    %45 = arith.select %43, %41, %44 : vector<32x1024xi1>, vector<32x1024xf32>
    %46 = vector.extract_strided_slice %35 {offsets = [0, 0], sizes = [32, 1], strides = [1, 1]} : vector<32x9xf32> to vector<32x1xf32>
    %47 = vector.broadcast %46 : vector<32x1xf32> to vector<32x1024xf32>
    %48 = arith.mulf %45, %47 : vector<32x1024xf32>
    %49 = arith.addf %40, %48 : vector<32x1024xf32>
    %c16_i32_20 = arith.constant 16 : i32
    %50 = tpu.dynamic_rotate %0 by %c16_i32_20 dim 1 : vector<32x1024xf32>, i32 -> vector<32x1024xf32>
    %cst_21 = arith.constant 0.000000e+00 : f32
    %51 = vector.shape_cast %12 : vector<1x1024xi1> to vector<1x1024xi1>
    %52 = vector.broadcast %51 : vector<1x1024xi1> to vector<32x1024xi1>
    %53 = vector.broadcast %cst_21 : f32 to vector<32x1024xf32>
    %54 = arith.select %52, %50, %53 : vector<32x1024xi1>, vector<32x1024xf32>
    %55 = vector.extract_strided_slice %35 {offsets = [0, 1], sizes = [32, 1], strides = [1, 1]} : vector<32x9xf32> to vector<32x1xf32>
    %56 = vector.broadcast %55 : vector<32x1xf32> to vector<32x1024xf32>
    %57 = arith.mulf %54, %56 : vector<32x1024xf32>
    %58 = arith.addf %49, %57 : vector<32x1024xf32>
    %c15_i32_22 = arith.constant 15 : i32
    %59 = tpu.dynamic_rotate %0 by %c15_i32_22 dim 1 : vector<32x1024xf32>, i32 -> vector<32x1024xf32>
    %cst_23 = arith.constant 0.000000e+00 : f32
    %60 = vector.shape_cast %17 : vector<1x1024xi1> to vector<1x1024xi1>
    %61 = vector.broadcast %60 : vector<1x1024xi1> to vector<32x1024xi1>
    %62 = vector.broadcast %cst_23 : f32 to vector<32x1024xf32>
    %63 = arith.select %61, %59, %62 : vector<32x1024xi1>, vector<32x1024xf32>
    %64 = vector.extract_strided_slice %35 {offsets = [0, 2], sizes = [32, 1], strides = [1, 1]} : vector<32x9xf32> to vector<32x1xf32>
    %65 = vector.broadcast %64 : vector<32x1xf32> to vector<32x1024xf32>
    %66 = arith.mulf %63, %65 : vector<32x1024xf32>
    %67 = arith.addf %58, %66 : vector<32x1024xf32>
    %c1_i32_24 = arith.constant 1 : i32
    %68 = tpu.dynamic_rotate %0 by %c1_i32_24 dim 1 : vector<32x1024xf32>, i32 -> vector<32x1024xf32>
    %cst_25 = arith.constant 0.000000e+00 : f32
    %69 = vector.shape_cast %19 : vector<1x1024xi1> to vector<1x1024xi1>
    %70 = vector.broadcast %69 : vector<1x1024xi1> to vector<32x1024xi1>
    %71 = vector.broadcast %cst_25 : f32 to vector<32x1024xf32>
    %72 = arith.select %70, %68, %71 : vector<32x1024xi1>, vector<32x1024xf32>
    %73 = vector.extract_strided_slice %35 {offsets = [0, 3], sizes = [32, 1], strides = [1, 1]} : vector<32x9xf32> to vector<32x1xf32>
    %74 = vector.broadcast %73 : vector<32x1xf32> to vector<32x1024xf32>
    %75 = arith.mulf %72, %74 : vector<32x1024xf32>
    %76 = arith.addf %67, %75 : vector<32x1024xf32>
    %77 = vector.extract_strided_slice %35 {offsets = [0, 4], sizes = [32, 1], strides = [1, 1]} : vector<32x9xf32> to vector<32x1xf32>
    %78 = vector.broadcast %77 : vector<32x1xf32> to vector<32x1024xf32>
    %79 = arith.mulf %0, %78 : vector<32x1024xf32>
    %80 = arith.addf %76, %79 : vector<32x1024xf32>
    %c1023_i32 = arith.constant 1023 : i32
    %81 = tpu.dynamic_rotate %0 by %c1023_i32 dim 1 : vector<32x1024xf32>, i32 -> vector<32x1024xf32>
    %cst_26 = arith.constant 0.000000e+00 : f32
    %82 = vector.shape_cast %21 : vector<1x1024xi1> to vector<1x1024xi1>
    %83 = vector.broadcast %82 : vector<1x1024xi1> to vector<32x1024xi1>
    %84 = vector.broadcast %cst_26 : f32 to vector<32x1024xf32>
    %85 = arith.select %83, %81, %84 : vector<32x1024xi1>, vector<32x1024xf32>
    %86 = vector.extract_strided_slice %35 {offsets = [0, 5], sizes = [32, 1], strides = [1, 1]} : vector<32x9xf32> to vector<32x1xf32>
    %87 = vector.broadcast %86 : vector<32x1xf32> to vector<32x1024xf32>
    %88 = arith.mulf %85, %87 : vector<32x1024xf32>
    %89 = arith.addf %80, %88 : vector<32x1024xf32>
    %c1009_i32 = arith.constant 1009 : i32
    %90 = tpu.dynamic_rotate %0 by %c1009_i32 dim 1 : vector<32x1024xf32>, i32 -> vector<32x1024xf32>
    %cst_27 = arith.constant 0.000000e+00 : f32
    %91 = vector.shape_cast %26 : vector<1x1024xi1> to vector<1x1024xi1>
    %92 = vector.broadcast %91 : vector<1x1024xi1> to vector<32x1024xi1>
    %93 = vector.broadcast %cst_27 : f32 to vector<32x1024xf32>
    %94 = arith.select %92, %90, %93 : vector<32x1024xi1>, vector<32x1024xf32>
    %95 = vector.extract_strided_slice %35 {offsets = [0, 6], sizes = [32, 1], strides = [1, 1]} : vector<32x9xf32> to vector<32x1xf32>
    %96 = vector.broadcast %95 : vector<32x1xf32> to vector<32x1024xf32>
    %97 = arith.mulf %94, %96 : vector<32x1024xf32>
    %98 = arith.addf %89, %97 : vector<32x1024xf32>
    %c1008_i32 = arith.constant 1008 : i32
    %99 = tpu.dynamic_rotate %0 by %c1008_i32 dim 1 : vector<32x1024xf32>, i32 -> vector<32x1024xf32>
    %cst_28 = arith.constant 0.000000e+00 : f32
    %100 = vector.shape_cast %28 : vector<1x1024xi1> to vector<1x1024xi1>
    %101 = vector.broadcast %100 : vector<1x1024xi1> to vector<32x1024xi1>
    %102 = vector.broadcast %cst_28 : f32 to vector<32x1024xf32>
    %103 = arith.select %101, %99, %102 : vector<32x1024xi1>, vector<32x1024xf32>
    %104 = vector.extract_strided_slice %35 {offsets = [0, 7], sizes = [32, 1], strides = [1, 1]} : vector<32x9xf32> to vector<32x1xf32>
    %105 = vector.broadcast %104 : vector<32x1xf32> to vector<32x1024xf32>
    %106 = arith.mulf %103, %105 : vector<32x1024xf32>
    %107 = arith.addf %98, %106 : vector<32x1024xf32>
    %c1007_i32 = arith.constant 1007 : i32
    %108 = tpu.dynamic_rotate %0 by %c1007_i32 dim 1 : vector<32x1024xf32>, i32 -> vector<32x1024xf32>
    %cst_29 = arith.constant 0.000000e+00 : f32
    %109 = vector.shape_cast %33 : vector<1x1024xi1> to vector<1x1024xi1>
    %110 = vector.broadcast %109 : vector<1x1024xi1> to vector<32x1024xi1>
    %111 = vector.broadcast %cst_29 : f32 to vector<32x1024xf32>
    %112 = arith.select %110, %108, %111 : vector<32x1024xi1>, vector<32x1024xf32>
    %113 = vector.extract_strided_slice %35 {offsets = [0, 8], sizes = [32, 1], strides = [1, 1]} : vector<32x9xf32> to vector<32x1xf32>
    %114 = vector.broadcast %113 : vector<32x1xf32> to vector<32x1024xf32>
    %115 = arith.mulf %112, %114 : vector<32x1024xf32>
    %116 = arith.addf %107, %115 : vector<32x1024xf32>
    %117 = vector.broadcast %36 : vector<32x1xf32> to vector<32x1024xf32>
    %118 = arith.addf %116, %117 : vector<32x1024xf32>
    %cst_30 = arith.constant 0.000000e+00 : f32
    %119 = vector.broadcast %cst_30 : f32 to vector<32x1024xf32>
    %120 = arith.maximumf %118, %119 : vector<32x1024xf32>
    %121 = arith.truncf %120 : vector<32x1024xf32> to vector<32x1024xbf16>
    %cst_31 = arith.constant dense<0.000000e+00> : vector<32x1024xf32>
    %122 = tpu.matmul %38, %121, %cst_31 {dimension_numbers = #tpu.dot_dimension_numbers<[1], [0], [0], [1], [0, 0, 1, 1], [], []>} : vector<32x32xbf16>, vector<32x1024xbf16>, vector<32x1024xf32> -> vector<32x1024xf32>
    %123 = vector.broadcast %39 : vector<32x1xf32> to vector<32x1024xf32>
    %124 = arith.addf %122, %123 : vector<32x1024xf32>
    %cst_32 = arith.constant 0.000000e+00 : f32
    %125 = vector.broadcast %cst_32 : f32 to vector<32x1024xf32>
    %126 = arith.maximumf %124, %125 : vector<32x1024xf32>
    %c1_33 = arith.constant 1 : index
    %c0_34 = arith.constant 0 : index
    %c0_35 = arith.constant 0 : index
    %127 = vector.load %arg2[%c1_33, %c0_34, %c0_35] : memref<2x32x9xf32, #tpu.memory_space<vmem>>, vector<1x32x9xf32>
    %128 = vector.shape_cast %127 : vector<1x32x9xf32> to vector<32x9xf32>
    %c0_36 = arith.constant 0 : index
    %c2 = arith.constant 2 : index
    %129 = vector.load %arg3[%c0_36, %c2] : memref<32x4xf32, #tpu.memory_space<vmem>>, vector<32x1xf32>
    %c1_37 = arith.constant 1 : index
    %c0_38 = arith.constant 0 : index
    %c0_39 = arith.constant 0 : index
    %130 = vector.load %arg4[%c1_37, %c0_38, %c0_39] : memref<2x32x32xbf16, #tpu.memory_space<vmem>>, vector<1x32x32xbf16>
    %131 = vector.shape_cast %130 : vector<1x32x32xbf16> to vector<32x32xbf16>
    %c0_40 = arith.constant 0 : index
    %c3 = arith.constant 3 : index
    %132 = vector.load %arg3[%c0_40, %c3] : memref<32x4xf32, #tpu.memory_space<vmem>>, vector<32x1xf32>
    %cst_41 = arith.constant 0.000000e+00 : f32
    %133 = vector.broadcast %cst_41 : f32 to vector<32x1024xf32>
    %c17_i32_42 = arith.constant 17 : i32
    %134 = tpu.dynamic_rotate %126 by %c17_i32_42 dim 1 : vector<32x1024xf32>, i32 -> vector<32x1024xf32>
    %cst_43 = arith.constant 0.000000e+00 : f32
    %135 = vector.shape_cast %10 : vector<1x1024xi1> to vector<1x1024xi1>
    %136 = vector.broadcast %135 : vector<1x1024xi1> to vector<32x1024xi1>
    %137 = vector.broadcast %cst_43 : f32 to vector<32x1024xf32>
    %138 = arith.select %136, %134, %137 : vector<32x1024xi1>, vector<32x1024xf32>
    %139 = vector.extract_strided_slice %128 {offsets = [0, 0], sizes = [32, 1], strides = [1, 1]} : vector<32x9xf32> to vector<32x1xf32>
    %140 = vector.broadcast %139 : vector<32x1xf32> to vector<32x1024xf32>
    %141 = arith.mulf %138, %140 : vector<32x1024xf32>
    %142 = arith.addf %133, %141 : vector<32x1024xf32>
    %c16_i32_44 = arith.constant 16 : i32
    %143 = tpu.dynamic_rotate %126 by %c16_i32_44 dim 1 : vector<32x1024xf32>, i32 -> vector<32x1024xf32>
    %cst_45 = arith.constant 0.000000e+00 : f32
    %144 = vector.shape_cast %12 : vector<1x1024xi1> to vector<1x1024xi1>
    %145 = vector.broadcast %144 : vector<1x1024xi1> to vector<32x1024xi1>
    %146 = vector.broadcast %cst_45 : f32 to vector<32x1024xf32>
    %147 = arith.select %145, %143, %146 : vector<32x1024xi1>, vector<32x1024xf32>
    %148 = vector.extract_strided_slice %128 {offsets = [0, 1], sizes = [32, 1], strides = [1, 1]} : vector<32x9xf32> to vector<32x1xf32>
    %149 = vector.broadcast %148 : vector<32x1xf32> to vector<32x1024xf32>
    %150 = arith.mulf %147, %149 : vector<32x1024xf32>
    %151 = arith.addf %142, %150 : vector<32x1024xf32>
    %c15_i32_46 = arith.constant 15 : i32
    %152 = tpu.dynamic_rotate %126 by %c15_i32_46 dim 1 : vector<32x1024xf32>, i32 -> vector<32x1024xf32>
    %cst_47 = arith.constant 0.000000e+00 : f32
    %153 = vector.shape_cast %17 : vector<1x1024xi1> to vector<1x1024xi1>
    %154 = vector.broadcast %153 : vector<1x1024xi1> to vector<32x1024xi1>
    %155 = vector.broadcast %cst_47 : f32 to vector<32x1024xf32>
    %156 = arith.select %154, %152, %155 : vector<32x1024xi1>, vector<32x1024xf32>
    %157 = vector.extract_strided_slice %128 {offsets = [0, 2], sizes = [32, 1], strides = [1, 1]} : vector<32x9xf32> to vector<32x1xf32>
    %158 = vector.broadcast %157 : vector<32x1xf32> to vector<32x1024xf32>
    %159 = arith.mulf %156, %158 : vector<32x1024xf32>
    %160 = arith.addf %151, %159 : vector<32x1024xf32>
    %c1_i32_48 = arith.constant 1 : i32
    %161 = tpu.dynamic_rotate %126 by %c1_i32_48 dim 1 : vector<32x1024xf32>, i32 -> vector<32x1024xf32>
    %cst_49 = arith.constant 0.000000e+00 : f32
    %162 = vector.shape_cast %19 : vector<1x1024xi1> to vector<1x1024xi1>
    %163 = vector.broadcast %162 : vector<1x1024xi1> to vector<32x1024xi1>
    %164 = vector.broadcast %cst_49 : f32 to vector<32x1024xf32>
    %165 = arith.select %163, %161, %164 : vector<32x1024xi1>, vector<32x1024xf32>
    %166 = vector.extract_strided_slice %128 {offsets = [0, 3], sizes = [32, 1], strides = [1, 1]} : vector<32x9xf32> to vector<32x1xf32>
    %167 = vector.broadcast %166 : vector<32x1xf32> to vector<32x1024xf32>
    %168 = arith.mulf %165, %167 : vector<32x1024xf32>
    %169 = arith.addf %160, %168 : vector<32x1024xf32>
    %170 = vector.extract_strided_slice %128 {offsets = [0, 4], sizes = [32, 1], strides = [1, 1]} : vector<32x9xf32> to vector<32x1xf32>
    %171 = vector.broadcast %170 : vector<32x1xf32> to vector<32x1024xf32>
    %172 = arith.mulf %126, %171 : vector<32x1024xf32>
    %173 = arith.addf %169, %172 : vector<32x1024xf32>
    %c1023_i32_50 = arith.constant 1023 : i32
    %174 = tpu.dynamic_rotate %126 by %c1023_i32_50 dim 1 : vector<32x1024xf32>, i32 -> vector<32x1024xf32>
    %cst_51 = arith.constant 0.000000e+00 : f32
    %175 = vector.shape_cast %21 : vector<1x1024xi1> to vector<1x1024xi1>
    %176 = vector.broadcast %175 : vector<1x1024xi1> to vector<32x1024xi1>
    %177 = vector.broadcast %cst_51 : f32 to vector<32x1024xf32>
    %178 = arith.select %176, %174, %177 : vector<32x1024xi1>, vector<32x1024xf32>
    %179 = vector.extract_strided_slice %128 {offsets = [0, 5], sizes = [32, 1], strides = [1, 1]} : vector<32x9xf32> to vector<32x1xf32>
    %180 = vector.broadcast %179 : vector<32x1xf32> to vector<32x1024xf32>
    %181 = arith.mulf %178, %180 : vector<32x1024xf32>
    %182 = arith.addf %173, %181 : vector<32x1024xf32>
    %c1009_i32_52 = arith.constant 1009 : i32
    %183 = tpu.dynamic_rotate %126 by %c1009_i32_52 dim 1 : vector<32x1024xf32>, i32 -> vector<32x1024xf32>
    %cst_53 = arith.constant 0.000000e+00 : f32
    %184 = vector.shape_cast %26 : vector<1x1024xi1> to vector<1x1024xi1>
    %185 = vector.broadcast %184 : vector<1x1024xi1> to vector<32x1024xi1>
    %186 = vector.broadcast %cst_53 : f32 to vector<32x1024xf32>
    %187 = arith.select %185, %183, %186 : vector<32x1024xi1>, vector<32x1024xf32>
    %188 = vector.extract_strided_slice %128 {offsets = [0, 6], sizes = [32, 1], strides = [1, 1]} : vector<32x9xf32> to vector<32x1xf32>
    %189 = vector.broadcast %188 : vector<32x1xf32> to vector<32x1024xf32>
    %190 = arith.mulf %187, %189 : vector<32x1024xf32>
    %191 = arith.addf %182, %190 : vector<32x1024xf32>
    %c1008_i32_54 = arith.constant 1008 : i32
    %192 = tpu.dynamic_rotate %126 by %c1008_i32_54 dim 1 : vector<32x1024xf32>, i32 -> vector<32x1024xf32>
    %cst_55 = arith.constant 0.000000e+00 : f32
    %193 = vector.shape_cast %28 : vector<1x1024xi1> to vector<1x1024xi1>
    %194 = vector.broadcast %193 : vector<1x1024xi1> to vector<32x1024xi1>
    %195 = vector.broadcast %cst_55 : f32 to vector<32x1024xf32>
    %196 = arith.select %194, %192, %195 : vector<32x1024xi1>, vector<32x1024xf32>
    %197 = vector.extract_strided_slice %128 {offsets = [0, 7], sizes = [32, 1], strides = [1, 1]} : vector<32x9xf32> to vector<32x1xf32>
    %198 = vector.broadcast %197 : vector<32x1xf32> to vector<32x1024xf32>
    %199 = arith.mulf %196, %198 : vector<32x1024xf32>
    %200 = arith.addf %191, %199 : vector<32x1024xf32>
    %c1007_i32_56 = arith.constant 1007 : i32
    %201 = tpu.dynamic_rotate %126 by %c1007_i32_56 dim 1 : vector<32x1024xf32>, i32 -> vector<32x1024xf32>
    %cst_57 = arith.constant 0.000000e+00 : f32
    %202 = vector.shape_cast %33 : vector<1x1024xi1> to vector<1x1024xi1>
    %203 = vector.broadcast %202 : vector<1x1024xi1> to vector<32x1024xi1>
    %204 = vector.broadcast %cst_57 : f32 to vector<32x1024xf32>
    %205 = arith.select %203, %201, %204 : vector<32x1024xi1>, vector<32x1024xf32>
    %206 = vector.extract_strided_slice %128 {offsets = [0, 8], sizes = [32, 1], strides = [1, 1]} : vector<32x9xf32> to vector<32x1xf32>
    %207 = vector.broadcast %206 : vector<32x1xf32> to vector<32x1024xf32>
    %208 = arith.mulf %205, %207 : vector<32x1024xf32>
    %209 = arith.addf %200, %208 : vector<32x1024xf32>
    %210 = vector.broadcast %129 : vector<32x1xf32> to vector<32x1024xf32>
    %211 = arith.addf %209, %210 : vector<32x1024xf32>
    %cst_58 = arith.constant 0.000000e+00 : f32
    %212 = vector.broadcast %cst_58 : f32 to vector<32x1024xf32>
    %213 = arith.maximumf %211, %212 : vector<32x1024xf32>
    %214 = arith.truncf %213 : vector<32x1024xf32> to vector<32x1024xbf16>
    %cst_59 = arith.constant dense<0.000000e+00> : vector<32x1024xf32>
    %215 = tpu.matmul %131, %214, %cst_59 {dimension_numbers = #tpu.dot_dimension_numbers<[1], [0], [0], [1], [0, 0, 1, 1], [], []>} : vector<32x32xbf16>, vector<32x1024xbf16>, vector<32x1024xf32> -> vector<32x1024xf32>
    %216 = vector.broadcast %132 : vector<32x1xf32> to vector<32x1024xf32>
    %217 = arith.addf %215, %216 : vector<32x1024xf32>
    %cst_60 = arith.constant 0.000000e+00 : f32
    %218 = vector.broadcast %cst_60 : f32 to vector<32x1024xf32>
    %219 = arith.maximumf %217, %218 : vector<32x1024xf32>
    %c0_61 = arith.constant 0 : index
    %c0_62 = arith.constant 0 : index
    %220 = vector.load %arg5[%c0_61, %c0_62] : memref<8x32xbf16, #tpu.memory_space<vmem>>, vector<8x32xbf16>
    %221 = arith.truncf %219 : vector<32x1024xf32> to vector<32x1024xbf16>
    %cst_63 = arith.constant dense<0.000000e+00> : vector<8x1024xf32>
    %222 = tpu.matmul %220, %221, %cst_63 {dimension_numbers = #tpu.dot_dimension_numbers<[1], [0], [0], [1], [0, 0, 1, 1], [], []>} : vector<8x32xbf16>, vector<32x1024xbf16>, vector<8x1024xf32> -> vector<8x1024xf32>
    %c0_64 = arith.constant 0 : index
    %c0_65 = arith.constant 0 : index
    %223 = vector.load %arg6[%c0_64, %c0_65] : memref<8x1xf32, #tpu.memory_space<vmem>>, vector<8x1xf32>
    %224 = vector.broadcast %223 : vector<8x1xf32> to vector<8x1024xf32>
    %225 = arith.addf %222, %224 : vector<8x1024xf32>
    %c0_66 = arith.constant 0 : index
    %c0_67 = arith.constant 0 : index
    %226 = vector.load %arg7[%c0_66, %c0_67] : memref<8x1024xf32, #tpu.memory_space<vmem>>, vector<8x1024xf32>
    tpu.vector_store %arg7[%c0_66, %c0_67], %225 {strides = array<i32>} : memref<8x1024xf32, #tpu.memory_space<vmem>>, vector<8x1024xf32>,
    return
  }
  func.func @transform_0(%arg0: i32) -> (i32, i32) {
    %c0_i32 = arith.constant 0 : i32
    %c0_i32_0 = arith.constant 0 : i32
    return %c0_i32, %arg0 : i32, i32
  }
  func.func @transform_1(%arg0: i32) -> (i32, i32, i32) {
    %c0_i32 = arith.constant 0 : i32
    %c0_i32_0 = arith.constant 0 : i32
    %c0_i32_1 = arith.constant 0 : i32
    %c0_i32_2 = arith.constant 0 : i32
    return %c0_i32, %c0_i32_0, %c0_i32_1 : i32, i32, i32
  }
  func.func @transform_2(%arg0: i32) -> (i32, i32) {
    %c0_i32 = arith.constant 0 : i32
    %c0_i32_0 = arith.constant 0 : i32
    %c0_i32_1 = arith.constant 0 : i32
    return %c0_i32, %c0_i32_0 : i32, i32
  }
  func.func @transform_3(%arg0: i32) -> (i32, i32, i32) {
    %c0_i32 = arith.constant 0 : i32
    %c0_i32_0 = arith.constant 0 : i32
    %c0_i32_1 = arith.constant 0 : i32
    %c0_i32_2 = arith.constant 0 : i32
    return %c0_i32, %c0_i32_0, %c0_i32_1 : i32, i32, i32
  }
  func.func @transform_4(%arg0: i32) -> (i32, i32) {
    %c0_i32 = arith.constant 0 : i32
    %c0_i32_0 = arith.constant 0 : i32
    %c0_i32_1 = arith.constant 0 : i32
    return %c0_i32, %c0_i32_0 : i32, i32
  }
  func.func @transform_5(%arg0: i32) -> (i32, i32) {
    %c0_i32 = arith.constant 0 : i32
    %c0_i32_0 = arith.constant 0 : i32
    %c0_i32_1 = arith.constant 0 : i32
    return %c0_i32, %c0_i32_0 : i32, i32
  }
  func.func @transform_6(%arg0: i32) -> (i32, i32) {
    %c0_i32 = arith.constant 0 : i32
    %c0_i32_0 = arith.constant 0 : i32
    return %c0_i32, %arg0 : i32, i32
  }
}

</mosaic_0001>

<llo_original>
// kernel: tpu_custom_call.1
$region0: #{tpu_custom_call.1}
  #allocation0 [shape = 'u32[]', space=smem, size = 0x4, offset = 0x4, fixed_abs, tag = 'smem constant byte address 0x4 - core index']
  #allocation1 [shape = 'u32[72,128]{1,0:T(1,128)}', space=vmem, size = 0x9000, scoped, tag = 'internal scratch']
  %s0 = inlined_call_operand.hbm [shape: f32[32,2048], index: 0, kind: input, shape index: {}]
  %s1 = inlined_call_operand.vmem [shape: f32[2,32,9], index: 1, kind: input, shape index: {}]
  %s2 = inlined_call_operand.vmem [shape: f32[32,4], index: 2, kind: input, shape index: {}]
  %s3 = inlined_call_operand.vmem [shape: bf16[2,32,32], index: 3, kind: input, shape index: {}]
  %s4 = inlined_call_operand.vmem [shape: bf16[8,32], index: 4, kind: input, shape index: {}]
  %s5 = inlined_call_operand.vmem [shape: f32[8,1], index: 5, kind: input, shape index: {}]
  %s6 = inlined_call_operand.hbm [shape: f32[8,2048], index: 6, kind: output, shape index: {}]
  %s7 = sld [smem:[#allocation0]]
  $region61: #{tpu_custom_call.1} parent=0
    _
  %s9 = ssub.s32 1, %s7
  %s10 = scalar_select 0, %s9, %s7
  $region1: #{tpu_custom_call.1} parent=0
    #allocation2 [shape = 'u8[262144]{0}', space=vmem, size = 0x40000, scoped, tag = 'input window, operand 0']
    #allocation3 [shape = 's32[2]{0}', space=sflag, size = 0x8, scoped, tag = 'scoped memory for tpu_custom_call.1']
    #allocation4 [shape = 's32[2]{0}', space=sflag, size = 0x8, scoped, tag = 'scoped memory for tpu_custom_call.1']
    #allocation5 [shape = 'u8[65536]{0}', space=vmem, size = 0x10000, scoped, tag = 'output window, operand 0']
    %11 = vsyncpa [#allocation3], 0
    %s12 = scalar_lea.sflag [#allocation3], 1
    %13 = vsyncpa %s12, 0
    %14 = vsyncpa [#allocation4], 0
    %s15 = scalar_lea.sflag [#allocation4], 1
    %16 = vsyncpa %s15, 0
    loop: start=0, step=1, limit=4
    $region2: #{tpu_custom_call.1} parent=1 // loop_pre_header
      _
    $region3: #{tpu_custom_call.1} parent=1 // loop_header
      %s18 = sphi 0, %s22
      %p19 = scmp.ge.s32.totalorder %s18, 4
      %s28 = sphi 0, %s30
      %s31 = sphi 0, %s28
      %s32 = sphi 0, %s31
      %s48 = sphi 0, %s32
      %s52 = sphi 0, %s52
      %s54 = sphi 0, %s52
      %s55 = sphi 0, %s54
      %s69 = sphi 0, %s55
      %s73 = sphi 0, %s73
      %s75 = sphi 0, %s73
      %s76 = sphi 0, %s75
      %s90 = sphi 0, %s76
      %s94 = sphi 0, %s94
      %s96 = sphi 0, %s94
      %s97 = sphi 0, %s96
      %s111 = sphi 0, %s97
      %s115 = sphi 0, %s115
      %s117 = sphi 0, %s115
      %s118 = sphi 0, %s117
      %s132 = sphi 0, %s118
      %s136 = sphi 0, %s136
      %s138 = sphi 0, %s136
      %s139 = sphi 0, %s138
      %s153 = sphi 0, %s139
      %s159 = sphi 0, %s161
      %s162 = sphi 0, %s159
      %s163 = sphi 0, %s162
      %s179 = sphi 0, %s163
    $region4: #{tpu_custom_call.1} parent=1 // loop_header_branch
      %21 = sbr.rel (%p19) target = $region8
    $region5: #{tpu_custom_call.1} parent=1 // loop_body
      %s23 = ssub.s32 %s18, 1
      %s24 = ssub.s32 %s18, 2
      %s25 = sadd.s32 %s18, 1
      %s26 = ssub.s32 %s18, %s25
      %p27 = scmp.eq.s32.totalorder %s26, 0
      %s29 = sadd.s32 %s28, 1
      %s30 = scalar_select %p27, %s28, %s29
      %p33 = pneg %p27
      %p34 = scmp.eq.s32.totalorder %s18, 1
      %p35 = por %p33, %p34
      %p36 = scmp.ne.s32.totalorder %s28, %s31
      %p37 = scmp.eq.s32.totalorder %s18, 0
      %p38 = por %p36, %p37
      %p39 = scmp.ne.s32.totalorder %s28, %s31
      %p40 = scmp.eq.s32.totalorder %s23, 1
      %p41 = por %p39, %p40
      %p42 = scmp.ne.s32.totalorder %s31, %s32
      %p43 = scmp.eq.s32.totalorder %s23, 0
      %p44 = por %p42, %p43
      %p45 = scmp.ne.s32.totalorder %s31, %s32
      %p46 = scmp.eq.s32.totalorder %s24, 1
      %p47 = por %p45, %p46
      %p49 = scmp.ne.s32.totalorder %s32, %s48
      %p50 = scmp.eq.s32.totalorder %s24, 0
      %p51 = por %p49, %p50
      %s53 = sadd.s32 %s52, 1
      %p56 = scmp.eq.s32.totalorder %s18, 1
      %p57 = scmp.ne.s32.totalorder %s52, %s54
      %p58 = scmp.eq.s32.totalorder %s18, 0
      %p59 = por %p57, %p58
      %p60 = scmp.ne.s32.totalorder %s52, %s54
      %p61 = scmp.eq.s32.totalorder %s23, 1
      %p62 = por %p60, %p61
      %p63 = scmp.ne.s32.totalorder %s54, %s55
      %p64 = scmp.eq.s32.totalorder %s23, 0
      %p65 = por %p63, %p64
      %p66 = scmp.ne.s32.totalorder %s54, %s55
      %p67 = scmp.eq.s32.totalorder %s24, 1
      %p68 = por %p66, %p67
      %p70 = scmp.ne.s32.totalorder %s55, %s69
      %p71 = scmp.eq.s32.totalorder %s24, 0
      %p72 = por %p70, %p71
      %s74 = sadd.s32 %s73, 1
      %p77 = scmp.eq.s32.totalorder %s18, 1
      %p78 = scmp.ne.s32.totalorder %s73, %s75
      %p79 = scmp.eq.s32.totalorder %s18, 0
      %p80 = por %p78, %p79
      %p81 = scmp.ne.s32.totalorder %s73, %s75
      %p82 = scmp.eq.s32.totalorder %s23, 1
      %p83 = por %p81, %p82
      %p84 = scmp.ne.s32.totalorder %s75, %s76
      %p85 = scmp.eq.s32.totalorder %s23, 0
      %p86 = por %p84, %p85
      %p87 = scmp.ne.s32.totalorder %s75, %s76
      %p88 = scmp.eq.s32.totalorder %s24, 1
      %p89 = por %p87, %p88
      %p91 = scmp.ne.s32.totalorder %s76, %s90
      %p92 = scmp.eq.s32.totalorder %s24, 0
      %p93 = por %p91, %p92
      %s95 = sadd.s32 %s94, 1
      %p98 = scmp.eq.s32.totalorder %s18, 1
      %p99 = scmp.ne.s32.totalorder %s94, %s96
      %p100 = scmp.eq.s32.totalorder %s18, 0
      %p101 = por %p99, %p100
      %p102 = scmp.ne.s32.totalorder %s94, %s96
      %p103 = scmp.eq.s32.totalorder %s23, 1
      %p104 = por %p102, %p103
      %p105 = scmp.ne.s32.totalorder %s96, %s97
      %p106 = scmp.eq.s32.totalorder %s23, 0
      %p107 = por %p105, %p106
      %p108 = scmp.ne.s32.totalorder %s96, %s97
      %p109 = scmp.eq.s32.totalorder %s24, 1
      %p110 = por %p108, %p109
      %p112 = scmp.ne.s32.totalorder %s97, %s111
      %p113 = scmp.eq.s32.totalorder %s24, 0
      %p114 = por %p112, %p113
      %s116 = sadd.s32 %s115, 1
      %p119 = scmp.eq.s32.totalorder %s18, 1
      %p120 = scmp.ne.s32.totalorder %s115, %s117
      %p121 = scmp.eq.s32.totalorder %s18, 0
      %p122 = por %p120, %p121
      %p123 = scmp.ne.s32.totalorder %s115, %s117
      %p124 = scmp.eq.s32.totalorder %s23, 1
      %p125 = por %p123, %p124
      %p126 = scmp.ne.s32.totalorder %s117, %s118
      %p127 = scmp.eq.s32.totalorder %s23, 0
      %p128 = por %p126, %p127
      %p129 = scmp.ne.s32.totalorder %s117, %s118
      %p130 = scmp.eq.s32.totalorder %s24, 1
      %p131 = por %p129, %p130
      %p133 = scmp.ne.s32.totalorder %s118, %s132
      %p134 = scmp.eq.s32.totalorder %s24, 0
      %p135 = por %p133, %p134
      %s137 = sadd.s32 %s136, 1
      %p140 = scmp.eq.s32.totalorder %s18, 1
      %p141 = scmp.ne.s32.totalorder %s136, %s138
      %p142 = scmp.eq.s32.totalorder %s18, 0
      %p143 = por %p141, %p142
      %p144 = scmp.ne.s32.totalorder %s136, %s138
      %p145 = scmp.eq.s32.totalorder %s23, 1
      %p146 = por %p144, %p145
      %p147 = scmp.ne.s32.totalorder %s138, %s139
      %p148 = scmp.eq.s32.totalorder %s23, 0
      %p149 = por %p147, %p148
      %p150 = scmp.ne.s32.totalorder %s138, %s139
      %p151 = scmp.eq.s32.totalorder %s24, 1
      %p152 = por %p150, %p151
      %p154 = scmp.ne.s32.totalorder %s139, %s153
      %p155 = scmp.eq.s32.totalorder %s24, 0
      %p156 = por %p154, %p155
      %s157 = ssub.s32 %s18, %s25
      %p158 = scmp.eq.s32.totalorder %s157, 0
      %s160 = sadd.s32 %s159, 1
      %s161 = scalar_select %p158, %s159, %s160
      %p164 = pneg %p158
      %p165 = scmp.eq.s32.totalorder %s18, 1
      %p166 = por %p164, %p165
      %p167 = scmp.ne.s32.totalorder %s159, %s162
      %p168 = scmp.eq.s32.totalorder %s18, 0
      %p169 = por %p167, %p168
      %p170 = scmp.ne.s32.totalorder %s159, %s162
      %p171 = scmp.eq.s32.totalorder %s23, 1
      %p172 = por %p170, %p171
      %p173 = scmp.ne.s32.totalorder %s162, %s163
      %p174 = scmp.eq.s32.totalorder %s23, 0
      %p175 = por %p173, %p174
      %p176 = scmp.ne.s32.totalorder %s162, %s163
      %p177 = scmp.eq.s32.totalorder %s24, 1
      %p178 = por %p176, %p177
      %p180 = scmp.ne.s32.totalorder %s163, %s179
      %p181 = scmp.eq.s32.totalorder %s24, 0
      %p182 = por %p180, %p181
      %p183 = scmp.le.s32.totalorder 1, %s18
      %p184 = scmp.lt.s32.totalorder %s18, 3
      %p185 = pnand %p183, %p184
      %p186 = pneg %p185
      // Predicated region
      $region9: #{tpu_custom_call.1} parent=5 // pred_check
        _
      $region10: #{tpu_custom_call.1} parent=5 // pred_check_branch
        %188 = sbr.rel (%p185) target = $region12
      $region11: #{tpu_custom_call.1} parent=5 // pred_region
        %s189 = ssub.s32 %s18, 1
        // Predicated region
        $region13: #{tpu_custom_call.1} parent=11 // pred_check
          %p190 = pneg %p65
        $region14: #{tpu_custom_call.1} parent=11 // pred_check_branch
          %192 = sbr.rel (%p190) target = $region16
        $region15: #{tpu_custom_call.1} parent=11 // pred_region
          _
        $region16: #{tpu_custom_call.1} parent=11 // pred_fallthru
          _
        // Predicated region
        $region17: #{tpu_custom_call.1} parent=11 // pred_check
          %p193 = pneg %p86
        $region18: #{tpu_custom_call.1} parent=11 // pred_check_branch
          %195 = sbr.rel (%p193) target = $region20
        $region19: #{tpu_custom_call.1} parent=11 // pred_region
          _
        $region20: #{tpu_custom_call.1} parent=11 // pred_fallthru
          _
        // Predicated region
        $region21: #{tpu_custom_call.1} parent=11 // pred_check
          %p196 = pneg %p107
        $region22: #{tpu_custom_call.1} parent=11 // pred_check_branch
          %198 = sbr.rel (%p196) target = $region24
        $region23: #{tpu_custom_call.1} parent=11 // pred_region
          _
        $region24: #{tpu_custom_call.1} parent=11 // pred_fallthru
          _
        // Predicated region
        $region25: #{tpu_custom_call.1} parent=11 // pred_check
          %p199 = pneg %p128
        $region26: #{tpu_custom_call.1} parent=11 // pred_check_branch
          %201 = sbr.rel (%p199) target = $region28
        $region27: #{tpu_custom_call.1} parent=11 // pred_region
          _
        $region28: #{tpu_custom_call.1} parent=11 // pred_fallthru
          _
        // Predicated region
        $region29: #{tpu_custom_call.1} parent=11 // pred_check
          %p202 = pneg %p149
        $region30: #{tpu_custom_call.1} parent=11 // pred_check_branch
          %204 = sbr.rel (%p202) target = $region32
        $region31: #{tpu_custom_call.1} parent=11 // pred_region
          _
        $region32: #{tpu_custom_call.1} parent=11 // pred_fallthru
          _
      $region12: #{tpu_custom_call.1} parent=5 // pred_fallthru
        _
      %p205 = scmp.lt.s32.totalorder %s18, 2
      // Predicated region
      $region33: #{tpu_custom_call.1} parent=5 // pred_check
        %p206 = pneg %p205
      $region34: #{tpu_custom_call.1} parent=5 // pred_check_branch
        %208 = sbr.rel (%p206) target = $region36
      $region35: #{tpu_custom_call.1} parent=5 // pred_region
        // Predicated region
        $region37: #{tpu_custom_call.1} parent=35 // pred_check
          %p209 = pneg %p38
        $region38: #{tpu_custom_call.1} parent=35 // pred_check_branch
          %211 = sbr.rel (%p209) target = $region40
        $region39: #{tpu_custom_call.1} parent=35 // pred_region
          %s212 = sand.u32 %s28, 1
          %s213 = scalar_lea.sflag [#allocation3], %s212
          %s214 = sand.u32 %s28, 1
          %s215 = smul.addr %s214, 256
          %s216 = scalar_lea.vmem [#allocation2], %s215
          %s217 = smul.u32 8, %s18
          %219 = vsyncadd %s213, 0
          %s220 = smul.addr %s217, 8
          %s221 = scalar_lea.hbm %s0, %s220
          %s222 = sshll.u32 %s221, 4
          %s223 = int_to_ptr.hbm [resolvable:$true] %s222
          %s224 = sshll.u32 %s216, 4
          %s225 = int_to_ptr.vmem [resolvable:$true] %s224
          %230 = dma.hbm_to_vmem [thread:$0]  %s223, 4096, %s225, %s213, 2048, 1024, 64
        $region40: #{tpu_custom_call.1} parent=35 // pred_fallthru
          _
      $region36: #{tpu_custom_call.1} parent=5 // pred_fallthru
        _
      %p231 = scmp.le.s32.totalorder 1, %s18
      %p232 = scmp.lt.s32.totalorder %s18, 3
      %p233 = pnand %p231, %p232
      %p234 = pneg %p233
      // Predicated region
      $region41: #{tpu_custom_call.1} parent=5 // pred_check
        _
      $region42: #{tpu_custom_call.1} parent=5 // pred_check_branch
        %236 = sbr.rel (%p233) target = $region44
      $region43: #{tpu_custom_call.1} parent=5 // pred_region
        %s237 = ssub.s32 %s18, 1
        %s238 = sand.u32 %s31, 1
        %s239 = scalar_lea.sflag [#allocation3], %s238
        %s240 = sand.u32 %s31, 1
        %s241 = smul.addr %s240, 256
        %s242 = scalar_lea.vmem [#allocation2], %s241
        // Predicated region
        $region45: #{tpu_custom_call.1} parent=43 // pred_check
          %p243 = pneg %p44
        $region46: #{tpu_custom_call.1} parent=43 // pred_check_branch
          %245 = sbr.rel (%p243) target = $region48
        $region47: #{tpu_custom_call.1} parent=43 // pred_region
          %247 = dma.done %s239, 4096
        $region48: #{tpu_custom_call.1} parent=43 // pred_fallthru
          _
        %s248 = sand.u32 %s31, 1
        %s249 = scalar_lea.sflag [#allocation3], %s248
        %s250 = sand.u32 %s31, 1
        %s251 = smul.addr %s250, 256
        %s252 = scalar_lea.vmem [#allocation2], %s251
        %p253 = pneg %p44
        %p254 = pneg %p41
        %p255 = pneg %p65
        %p256 = pneg %p62
        %p257 = pneg %p86
        %p258 = pneg %p83
        %p259 = pneg %p107
        %p260 = pneg %p104
        %p261 = pneg %p128
        %p262 = pneg %p125
        %p263 = pneg %p149
        %p264 = pneg %p146
        %p265 = pneg %p175
        %p266 = pneg %p172
        %s267 = sand.u32 %s162, 1
        %s268 = scalar_lea.sflag [#allocation4], %s267
        %s269 = sand.u32 %s162, 1
        %s270 = smul.addr %s269, 64
        %s271 = scalar_lea.vmem [#allocation5], %s270
        %s272 = smul.u32 8, %s23
        %s273 = smul.u32 8, %s23
        %v275 = vld [vmem:[%s242] sm:$0xff]
        %v276 = vld [vmem:[%s242 + $0x8] sm:$0xff]
        %v277 = vld [vmem:[%s242 + $0x10] sm:$0xff]
        %v278 = vld [vmem:[%s242 + $0x18] sm:$0xff]
        %v279 = vld [vmem:[%s242 + $0x20] sm:$0xff]
        %v280 = vld [vmem:[%s242 + $0x28] sm:$0xff]
        %v281 = vld [vmem:[%s242 + $0x30] sm:$0xff]
        %v282 = vld [vmem:[%s242 + $0x38] sm:$0xff]
        %v283 = vld [vmem:[%s242 + $0x40] sm:$0xff]
        %v284 = vld [vmem:[%s242 + $0x48] sm:$0xff]
        %v285 = vld [vmem:[%s242 + $0x50] sm:$0xff]
        %v286 = vld [vmem:[%s242 + $0x58] sm:$0xff]
        %v287 = vld [vmem:[%s242 + $0x60] sm:$0xff]
        %v288 = vld [vmem:[%s242 + $0x68] sm:$0xff]
        %v289 = vld [vmem:[%s242 + $0x70] sm:$0xff]
        %v290 = vld [vmem:[%s242 + $0x78] sm:$0xff]
        %v291 = vld [vmem:[%s242 + $0x80] sm:$0xff]
        %v292 = vld [vmem:[%s242 + $0x88] sm:$0xff]
        %v293 = vld [vmem:[%s242 + $0x90] sm:$0xff]
        %v294 = vld [vmem:[%s242 + $0x98] sm:$0xff]
        %v295 = vld [vmem:[%s242 + $0xa0] sm:$0xff]
        %v296 = vld [vmem:[%s242 + $0xa8] sm:$0xff]
        %v297 = vld [vmem:[%s242 + $0xb0] sm:$0xff]
        %v298 = vld [vmem:[%s242 + $0xb8] sm:$0xff]
        %v299 = vld [vmem:[%s242 + $0xc0] sm:$0xff]
        %v300 = vld [vmem:[%s242 + $0xc8] sm:$0xff]
        %v301 = vld [vmem:[%s242 + $0xd0] sm:$0xff]
        %v302 = vld [vmem:[%s242 + $0xd8] sm:$0xff]
        %v303 = vld [vmem:[%s242 + $0xe0] sm:$0xff]
        %v304 = vld [vmem:[%s242 + $0xe8] sm:$0xff]
        %v305 = vld [vmem:[%s242 + $0xf0] sm:$0xff]
        %v306 = vld [vmem:[%s242 + $0xf8] sm:$0xff]
        %v307 = vlaneseq
        %v308 = vand.u32 %v307, 127
        %v309 = vadd.s32 %v308, 128
        %v310 = vadd.s32 %v308, 256
        %v311 = vadd.s32 %v308, 384
        %v312 = vadd.s32 %v308, 512
        %v313 = vadd.s32 %v308, 640
        %v314 = vadd.s32 %v308, 768
        %v315 = vadd.s32 %v308, 896
        %v316 = vand.u32 %v308, 255
        %v317 = vand.u32 %v309, 255
        %v318 = vand.u32 %v310, 255
        %v319 = vand.u32 %v311, 255
        %v320 = vand.u32 %v312, 255
        %v321 = vand.u32 %v313, 255
        %v322 = vand.u32 %v314, 255
        %v323 = vand.u32 %v315, 255
        %v324 = vand.u32 %v316, 15
        %v325 = vand.u32 %v317, 15
        %v326 = vand.u32 %v318, 15
        %v327 = vand.u32 %v319, 15
        %v328 = vand.u32 %v320, 15
        %v329 = vand.u32 %v321, 15
        %v330 = vand.u32 %v322, 15
        %v331 = vand.u32 %v323, 15
        %vm332 = vcmp.ge.s32.totalorder %v316, 16
        %vm333 = vcmp.ge.s32.totalorder %v317, 16
        %vm334 = vcmp.ge.s32.totalorder %v318, 16
        %vm335 = vcmp.ge.s32.totalorder %v319, 16
        %vm336 = vcmp.ge.s32.totalorder %v320, 16
        %vm337 = vcmp.ge.s32.totalorder %v321, 16
        %vm338 = vcmp.ge.s32.totalorder %v322, 16
        %vm339 = vcmp.ge.s32.totalorder %v323, 16
        %vm340 = vcmp.ge.s32.totalorder %v324, 1
        %vm341 = vcmp.ge.s32.totalorder %v325, 1
        %vm342 = vcmp.ge.s32.totalorder %v326, 1
        %vm343 = vcmp.ge.s32.totalorder %v327, 1
        %vm344 = vcmp.ge.s32.totalorder %v328, 1
        %vm345 = vcmp.ge.s32.totalorder %v329, 1
        %vm346 = vcmp.ge.s32.totalorder %v330, 1
        %vm347 = vcmp.ge.s32.totalorder %v331, 1
        %vm348 = vmand %vm332, %vm340
        %vm349 = vmand %vm333, %vm341
        %vm350 = vmand %vm334, %vm342
        %vm351 = vmand %vm335, %vm343
        %vm352 = vmand %vm336, %vm344
        %vm353 = vmand %vm337, %vm345
        %vm354 = vmand %vm338, %vm346
        %vm355 = vmand %vm339, %vm347
        %vm356 = vcmp.lt.s32.totalorder %v324, 15
        %vm357 = vcmp.lt.s32.totalorder %v325, 15
        %vm358 = vcmp.lt.s32.totalorder %v326, 15
        %vm359 = vcmp.lt.s32.totalorder %v327, 15
        %vm360 = vcmp.lt.s32.totalorder %v328, 15
        %vm361 = vcmp.lt.s32.totalorder %v329, 15
        %vm362 = vcmp.lt.s32.totalorder %v330, 15
        %vm363 = vcmp.lt.s32.totalorder %v331, 15
        %vm364 = vmand %vm332, %vm356
        %vm365 = vmand %vm333, %vm357
        %vm366 = vmand %vm334, %vm358
        %vm367 = vmand %vm335, %vm359
        %vm368 = vmand %vm336, %vm360
        %vm369 = vmand %vm337, %vm361
        %vm370 = vmand %vm338, %vm362
        %vm371 = vmand %vm339, %vm363
        %vm372 = vcmp.lt.s32.totalorder %v316, 240
        %vm373 = vcmp.lt.s32.totalorder %v317, 240
        %vm374 = vcmp.lt.s32.totalorder %v318, 240
        %vm375 = vcmp.lt.s32.totalorder %v319, 240
        %vm376 = vcmp.lt.s32.totalorder %v320, 240
        %vm377 = vcmp.lt.s32.totalorder %v321, 240
        %vm378 = vcmp.lt.s32.totalorder %v322, 240
        %vm379 = vcmp.lt.s32.totalorder %v323, 240
        %vm380 = vmand %vm372, %vm340
        %vm381 = vmand %vm373, %vm341
        %vm382 = vmand %vm374, %vm342
        %vm383 = vmand %vm375, %vm343
        %vm384 = vmand %vm376, %vm344
        %vm385 = vmand %vm377, %vm345
        %vm386 = vmand %vm378, %vm346
        %vm387 = vmand %vm379, %vm347
        %vm388 = vmand %vm372, %vm356
        %vm389 = vmand %vm373, %vm357
        %vm390 = vmand %vm374, %vm358
        %vm391 = vmand %vm375, %vm359
        %vm392 = vmand %vm376, %vm360
        %vm393 = vmand %vm377, %vm361
        %vm394 = vmand %vm378, %vm362
        %vm395 = vmand %vm379, %vm363
        %v396 = vld [vmem:[%s1] sm:$0xff]
        %v397 = vld [vmem:[%s1 + $0x8] sm:$0xff]
        %v398 = vld [vmem:[%s1 + $0x10] sm:$0xff]
        %v399 = vld [vmem:[%s1 + $0x18] sm:$0xff]
        %v400 = vld [vmem:[%s2] sm:$0xff]
        %v401 = vld [vmem:[%s2 + $0x8] sm:$0xff]
        %v402 = vld [vmem:[%s2 + $0x10] sm:$0xff]
        %v403 = vld [vmem:[%s2 + $0x18] sm:$0xff]
        %v404 = vld [vmem:[%s3] sm:$0xf]
        %v405 = vld [vmem:[%s3 + $0x4] sm:$0xf]
        %v406 = vld [vmem:[%s3 + $0x8] sm:$0xf]
        %v407 = vld [vmem:[%s3 + $0xc] sm:$0xf]
        %408 = vrot.lane.b32.xlu0 %v275, 17
        %v409 = vpop.permute.xlu0 %408
        %410 = vrot.lane.b32.xlu0 %v283, 17
        %v411 = vpop.permute.xlu0 %410
        %412 = vrot.lane.b32.xlu0 %v291, 17
        %v413 = vpop.permute.xlu0 %412
        %414 = vrot.lane.b32.xlu0 %v299, 17
        %v415 = vpop.permute.xlu0 %414
        %416 = vrot.lane.b32.xlu0 %v276, 17
        %v417 = vpop.permute.xlu0 %416
        %418 = vrot.lane.b32.xlu0 %v284, 17
        %v419 = vpop.permute.xlu0 %418
        %420 = vrot.lane.b32.xlu0 %v292, 17
        %v421 = vpop.permute.xlu0 %420
        %422 = vrot.lane.b32.xlu0 %v300, 17
        %v423 = vpop.permute.xlu0 %422
        %424 = vrot.lane.b32.xlu0 %v277, 17
        %v425 = vpop.permute.xlu0 %424
        %426 = vrot.lane.b32.xlu0 %v285, 17
        %v427 = vpop.permute.xlu0 %426
        %428 = vrot.lane.b32.xlu0 %v293, 17
        %v429 = vpop.permute.xlu0 %428
        %430 = vrot.lane.b32.xlu0 %v301, 17
        %v431 = vpop.permute.xlu0 %430
        %432 = vrot.lane.b32.xlu0 %v278, 17
        %v433 = vpop.permute.xlu0 %432
        %434 = vrot.lane.b32.xlu0 %v286, 17
        %v435 = vpop.permute.xlu0 %434
        %436 = vrot.lane.b32.xlu0 %v294, 17
        %v437 = vpop.permute.xlu0 %436
        %438 = vrot.lane.b32.xlu0 %v302, 17
        %v439 = vpop.permute.xlu0 %438
        %440 = vrot.lane.b32.xlu0 %v279, 17
        %v441 = vpop.permute.xlu0 %440
        %442 = vrot.lane.b32.xlu0 %v287, 17
        %v443 = vpop.permute.xlu0 %442
        %444 = vrot.lane.b32.xlu0 %v295, 17
        %v445 = vpop.permute.xlu0 %444
        %446 = vrot.lane.b32.xlu0 %v303, 17
        %v447 = vpop.permute.xlu0 %446
        %448 = vrot.lane.b32.xlu0 %v280, 17
        %v449 = vpop.permute.xlu0 %448
        %450 = vrot.lane.b32.xlu0 %v288, 17
        %v451 = vpop.permute.xlu0 %450
        %452 = vrot.lane.b32.xlu0 %v296, 17
        %v453 = vpop.permute.xlu0 %452
        %454 = vrot.lane.b32.xlu0 %v304, 17
        %v455 = vpop.permute.xlu0 %454
        %456 = vrot.lane.b32.xlu0 %v281, 17
        %v457 = vpop.permute.xlu0 %456
        %458 = vrot.lane.b32.xlu0 %v289, 17
        %v459 = vpop.permute.xlu0 %458
        %460 = vrot.lane.b32.xlu0 %v297, 17
        %v461 = vpop.permute.xlu0 %460
        %462 = vrot.lane.b32.xlu0 %v305, 17
        %v463 = vpop.permute.xlu0 %462
        %464 = vrot.lane.b32.xlu0 %v282, 17
        %v465 = vpop.permute.xlu0 %464
        %466 = vrot.lane.b32.xlu0 %v290, 17
        %v467 = vpop.permute.xlu0 %466
        %468 = vrot.lane.b32.xlu0 %v298, 17
        %v469 = vpop.permute.xlu0 %468
        %470 = vrot.lane.b32.xlu0 %v306, 17
        %v471 = vpop.permute.xlu0 %470
        %vm472 = vcmp.lt.s32.totalorder %v308, 17
        %v473 = vsel %vm472, %v457, %v465
        %v474 = vsel %vm472, %v459, %v467
        %v475 = vsel %vm472, %v461, %v469
        %v476 = vsel %vm472, %v463, %v471
        %v477 = vsel %vm472, %v449, %v457
        %v478 = vsel %vm472, %v451, %v459
        %v479 = vsel %vm472, %v453, %v461
        %v480 = vsel %vm472, %v455, %v463
        %v481 = vsel %vm472, %v441, %v449
        %v482 = vsel %vm472, %v443, %v451
        %v483 = vsel %vm472, %v445, %v453
        %v484 = vsel %vm472, %v447, %v455
        %v485 = vsel %vm472, %v433, %v441
        %v486 = vsel %vm472, %v435, %v443
        %v487 = vsel %vm472, %v437, %v445
        %v488 = vsel %vm472, %v439, %v447
        %v489 = vsel %vm472, %v425, %v433
        %v490 = vsel %vm472, %v427, %v435
        %v491 = vsel %vm472, %v429, %v437
        %v492 = vsel %vm472, %v431, %v439
        %v493 = vsel %vm472, %v417, %v425
        %v494 = vsel %vm472, %v419, %v427
        %v495 = vsel %vm472, %v421, %v429
        %v496 = vsel %vm472, %v423, %v431
        %v497 = vsel %vm472, %v409, %v417
        %v498 = vsel %vm472, %v411, %v419
        %v499 = vsel %vm472, %v413, %v421
        %v500 = vsel %vm472, %v415, %v423
        %v501 = vsel %vm472, %v465, %v409
        %v502 = vsel %vm472, %v467, %v411
        %v503 = vsel %vm472, %v469, %v413
        %v504 = vsel %vm472, %v471, %v415
        %v505 = vsel %vm348, 1, 0
        %v506 = vsel %vm349, 1, 0
        %v507 = vsel %vm350, 1, 0
        %v508 = vsel %vm351, 1, 0
        %v509 = vsel %vm352, 1, 0
        %v510 = vsel %vm353, 1, 0
        %v511 = vsel %vm354, 1, 0
        %v512 = vsel %vm355, 1, 0
        %vm513 = vcmp.eq.s32.totalorder %v505, 1
        %vm514 = vcmp.eq.s32.totalorder %v506, 1
        %vm515 = vcmp.eq.s32.totalorder %v507, 1
        %vm516 = vcmp.eq.s32.totalorder %v508, 1
        %vm517 = vcmp.eq.s32.totalorder %v509, 1
        %vm518 = vcmp.eq.s32.totalorder %v510, 1
        %vm519 = vcmp.eq.s32.totalorder %v511, 1
        %vm520 = vcmp.eq.s32.totalorder %v512, 1
        %v521 = vsel %vm513, %v501, 0.0
        %v522 = vsel %vm514, %v497, 0.0
        %v523 = vsel %vm515, %v493, 0.0
        %v524 = vsel %vm516, %v489, 0.0
        %v525 = vsel %vm517, %v485, 0.0
        %v526 = vsel %vm518, %v481, 0.0
        %v527 = vsel %vm519, %v477, 0.0
        %v528 = vsel %vm520, %v473, 0.0
        %v529 = vsel %vm513, %v502, 0.0
        %v530 = vsel %vm514, %v498, 0.0
        %v531 = vsel %vm515, %v494, 0.0
        %v532 = vsel %vm516, %v490, 0.0
        %v533 = vsel %vm517, %v486, 0.0
        %v534 = vsel %vm518, %v482, 0.0
        %v535 = vsel %vm519, %v478, 0.0
        %v536 = vsel %vm520, %v474, 0.0
        %v537 = vsel %vm513, %v503, 0.0
        %v538 = vsel %vm514, %v499, 0.0
        %v539 = vsel %vm515, %v495, 0.0
        %v540 = vsel %vm516, %v491, 0.0
        %v541 = vsel %vm517, %v487, 0.0
        %v542 = vsel %vm518, %v483, 0.0
        %v543 = vsel %vm519, %v479, 0.0
        %v544 = vsel %vm520, %v475, 0.0
        %v545 = vsel %vm513, %v504, 0.0
        %v546 = vsel %vm514, %v500, 0.0
        %v547 = vsel %vm515, %v496, 0.0
        %v548 = vsel %vm516, %v492, 0.0
        %v549 = vsel %vm517, %v488, 0.0
        %v550 = vsel %vm518, %v484, 0.0
        %v551 = vsel %vm519, %v480, 0.0
        %v552 = vsel %vm520, %v476, 0.0
        %554 = vset.pattern.permute.xlu0 0
        %555 = vperm.xlu0 %554, %v396
        %v556 = vpop.permute.xlu0 %555
        %559 = vset.pattern.permute.xlu0 0
        %560 = vperm.xlu0 %559, %v397
        %v561 = vpop.permute.xlu0 %560
        %564 = vset.pattern.permute.xlu0 0
        %565 = vperm.xlu0 %564, %v398
        %v566 = vpop.permute.xlu0 %565
        %569 = vset.pattern.permute.xlu0 0
        %570 = vperm.xlu0 %569, %v399
        %v571 = vpop.permute.xlu0 %570
        %v573 = vmul.f32 %v521, %v556
        %v574 = vmul.f32 %v522, %v556
        %v575 = vmul.f32 %v523, %v556
        %v576 = vmul.f32 %v524, %v556
        %v577 = vmul.f32 %v525, %v556
        %v578 = vmul.f32 %v526, %v556
        %v579 = vmul.f32 %v527, %v556
        %v580 = vmul.f32 %v528, %v556
        %v581 = vmul.f32 %v529, %v561
        %v582 = vmul.f32 %v530, %v561
        %v583 = vmul.f32 %v531, %v561
        %v584 = vmul.f32 %v532, %v561
        %v585 = vmul.f32 %v533, %v561
        %v586 = vmul.f32 %v534, %v561
        %v587 = vmul.f32 %v535, %v561
        %v588 = vmul.f32 %v536, %v561
        %v589 = vmul.f32 %v537, %v566
        %v590 = vmul.f32 %v538, %v566
        %v591 = vmul.f32 %v539, %v566
        %v592 = vmul.f32 %v540, %v566
        %v593 = vmul.f32 %v541, %v566
        %v594 = vmul.f32 %v542, %v566
        %v595 = vmul.f32 %v543, %v566
        %v596 = vmul.f32 %v544, %v566
        %v597 = vmul.f32 %v545, %v571
        %v598 = vmul.f32 %v546, %v571
        %v599 = vmul.f32 %v547, %v571
        %v600 = vmul.f32 %v548, %v571
        %v601 = vmul.f32 %v549, %v571
        %v602 = vmul.f32 %v550, %v571
        %v603 = vmul.f32 %v551, %v571
        %v604 = vmul.f32 %v552, %v571
        %v605 = vadd.f32 %v573, 0.0
        %v606 = vadd.f32 %v574, 0.0
        %v607 = vadd.f32 %v575, 0.0
        %v608 = vadd.f32 %v576, 0.0
        %v609 = vadd.f32 %v577, 0.0
        %v610 = vadd.f32 %v578, 0.0
        %v611 = vadd.f32 %v579, 0.0
        %v612 = vadd.f32 %v580, 0.0
        %v613 = vadd.f32 %v581, 0.0
        %v614 = vadd.f32 %v582, 0.0
        %v615 = vadd.f32 %v583, 0.0
        %v616 = vadd.f32 %v584, 0.0
        %v617 = vadd.f32 %v585, 0.0
        %v618 = vadd.f32 %v586, 0.0
        %v619 = vadd.f32 %v587, 0.0
        %v620 = vadd.f32 %v588, 0.0
        %v621 = vadd.f32 %v589, 0.0
        %v622 = vadd.f32 %v590, 0.0
        %v623 = vadd.f32 %v591, 0.0
        %v624 = vadd.f32 %v592, 0.0
        %v625 = vadd.f32 %v593, 0.0
        %v626 = vadd.f32 %v594, 0.0
        %v627 = vadd.f32 %v595, 0.0
        %v628 = vadd.f32 %v596, 0.0
        %v629 = vadd.f32 %v597, 0.0
        %v630 = vadd.f32 %v598, 0.0
        %v631 = vadd.f32 %v599, 0.0
        %v632 = vadd.f32 %v600, 0.0
        %v633 = vadd.f32 %v601, 0.0
        %v634 = vadd.f32 %v602, 0.0
        %v635 = vadd.f32 %v603, 0.0
        %v636 = vadd.f32 %v604, 0.0
        %637 = vrot.lane.b32.xlu0 %v275, 16
        %v638 = vpop.permute.xlu0 %637
        %639 = vrot.lane.b32.xlu0 %v283, 16
        %v640 = vpop.permute.xlu0 %639
        %641 = vrot.lane.b32.xlu0 %v291, 16
        %v642 = vpop.permute.xlu0 %641
        %643 = vrot.lane.b32.xlu0 %v299, 16
        %v644 = vpop.permute.xlu0 %643
        %645 = vrot.lane.b32.xlu0 %v276, 16
        %v646 = vpop.permute.xlu0 %645
        %647 = vrot.lane.b32.xlu0 %v284, 16
        %v648 = vpop.permute.xlu0 %647
        %649 = vrot.lane.b32.xlu0 %v292, 16
        %v650 = vpop.permute.xlu0 %649
        %651 = vrot.lane.b32.xlu0 %v300, 16
        %v652 = vpop.permute.xlu0 %651
        %653 = vrot.lane.b32.xlu0 %v277, 16
        %v654 = vpop.permute.xlu0 %653
        %655 = vrot.lane.b32.xlu0 %v285, 16
        %v656 = vpop.permute.xlu0 %655
        %657 = vrot.lane.b32.xlu0 %v293, 16
        %v658 = vpop.permute.xlu0 %657
        %659 = vrot.lane.b32.xlu0 %v301, 16
        %v660 = vpop.permute.xlu0 %659
        %661 = vrot.lane.b32.xlu0 %v278, 16
        %v662 = vpop.permute.xlu0 %661
        %663 = vrot.lane.b32.xlu0 %v286, 16
        %v664 = vpop.permute.xlu0 %663
        %665 = vrot.lane.b32.xlu0 %v294, 16
        %v666 = vpop.permute.xlu0 %665
        %667 = vrot.lane.b32.xlu0 %v302, 16
        %v668 = vpop.permute.xlu0 %667
        %669 = vrot.lane.b32.xlu0 %v279, 16
        %v670 = vpop.permute.xlu0 %669
        %671 = vrot.lane.b32.xlu0 %v287, 16
        %v672 = vpop.permute.xlu0 %671
        %673 = vrot.lane.b32.xlu0 %v295, 16
        %v674 = vpop.permute.xlu0 %673
        %675 = vrot.lane.b32.xlu0 %v303, 16
        %v676 = vpop.permute.xlu0 %675
        %677 = vrot.lane.b32.xlu0 %v280, 16
        %v678 = vpop.permute.xlu0 %677
        %679 = vrot.lane.b32.xlu0 %v288, 16
        %v680 = vpop.permute.xlu0 %679
        %681 = vrot.lane.b32.xlu0 %v296, 16
        %v682 = vpop.permute.xlu0 %681
        %683 = vrot.lane.b32.xlu0 %v304, 16
        %v684 = vpop.permute.xlu0 %683
        %685 = vrot.lane.b32.xlu0 %v281, 16
        %v686 = vpop.permute.xlu0 %685
        %687 = vrot.lane.b32.xlu0 %v289, 16
        %v688 = vpop.permute.xlu0 %687
        %689 = vrot.lane.b32.xlu0 %v297, 16
        %v690 = vpop.permute.xlu0 %689
        %691 = vrot.lane.b32.xlu0 %v305, 16
        %v692 = vpop.permute.xlu0 %691
        %693 = vrot.lane.b32.xlu0 %v282, 16
        %v694 = vpop.permute.xlu0 %693
        %695 = vrot.lane.b32.xlu0 %v290, 16
        %v696 = vpop.permute.xlu0 %695
        %697 = vrot.lane.b32.xlu0 %v298, 16
        %v698 = vpop.permute.xlu0 %697
        %699 = vrot.lane.b32.xlu0 %v306, 16
        %v700 = vpop.permute.xlu0 %699
        %vm701 = vcmp.lt.s32.totalorder %v308, 16
        %v702 = vsel %vm701, %v686, %v694
        %v703 = vsel %vm701, %v688, %v696
        %v704 = vsel %vm701, %v690, %v698
        %v705 = vsel %vm701, %v692, %v700
        %v706 = vsel %vm701, %v678, %v686
        %v707 = vsel %vm701, %v680, %v688
        %v708 = vsel %vm701, %v682, %v690
        %v709 = vsel %vm701, %v684, %v692
        %v710 = vsel %vm701, %v670, %v678
        %v711 = vsel %vm701, %v672, %v680
        %v712 = vsel %vm701, %v674, %v682
        %v713 = vsel %vm701, %v676, %v684
        %v714 = vsel %vm701, %v662, %v670
        %v715 = vsel %vm701, %v664, %v672
        %v716 = vsel %vm701, %v666, %v674
        %v717 = vsel %vm701, %v668, %v676
        %v718 = vsel %vm701, %v654, %v662
        %v719 = vsel %vm701, %v656, %v664
        %v720 = vsel %vm701, %v658, %v666
        %v721 = vsel %vm701, %v660, %v668
        %v722 = vsel %vm701, %v646, %v654
        %v723 = vsel %vm701, %v648, %v656
        %v724 = vsel %vm701, %v650, %v658
        %v725 = vsel %vm701, %v652, %v660
        %v726 = vsel %vm701, %v638, %v646
        %v727 = vsel %vm701, %v640, %v648
        %v728 = vsel %vm701, %v642, %v650
        %v729 = vsel %vm701, %v644, %v652
        %v730 = vsel %vm701, %v694, %v638
        %v731 = vsel %vm701, %v696, %v640
        %v732 = vsel %vm701, %v698, %v642
        %v733 = vsel %vm701, %v700, %v644
        %v734 = vsel %vm332, 1, 0
        %v735 = vsel %vm333, 1, 0
        %v736 = vsel %vm334, 1, 0
        %v737 = vsel %vm335, 1, 0
        %v738 = vsel %vm336, 1, 0
        %v739 = vsel %vm337, 1, 0
        %v740 = vsel %vm338, 1, 0
        %v741 = vsel %vm339, 1, 0
        %vm742 = vcmp.eq.s32.totalorder %v734, 1
        %vm743 = vcmp.eq.s32.totalorder %v735, 1
        %vm744 = vcmp.eq.s32.totalorder %v736, 1
        %vm745 = vcmp.eq.s32.totalorder %v737, 1
        %vm746 = vcmp.eq.s32.totalorder %v738, 1
        %vm747 = vcmp.eq.s32.totalorder %v739, 1
        %vm748 = vcmp.eq.s32.totalorder %v740, 1
        %vm749 = vcmp.eq.s32.totalorder %v741, 1
        %v750 = vsel %vm742, %v730, 0.0
        %v751 = vsel %vm743, %v726, 0.0
        %v752 = vsel %vm744, %v722, 0.0
        %v753 = vsel %vm745, %v718, 0.0
        %v754 = vsel %vm746, %v714, 0.0
        %v755 = vsel %vm747, %v710, 0.0
        %v756 = vsel %vm748, %v706, 0.0
        %v757 = vsel %vm749, %v702, 0.0
        %v758 = vsel %vm742, %v731, 0.0
        %v759 = vsel %vm743, %v727, 0.0
        %v760 = vsel %vm744, %v723, 0.0
        %v761 = vsel %vm745, %v719, 0.0
        %v762 = vsel %vm746, %v715, 0.0
        %v763 = vsel %vm747, %v711, 0.0
        %v764 = vsel %vm748, %v707, 0.0
        %v765 = vsel %vm749, %v703, 0.0
        %v766 = vsel %vm742, %v732, 0.0
        %v767 = vsel %vm743, %v728, 0.0
        %v768 = vsel %vm744, %v724, 0.0
        %v769 = vsel %vm745, %v720, 0.0
        %v770 = vsel %vm746, %v716, 0.0
        %v771 = vsel %vm747, %v712, 0.0
        %v772 = vsel %vm748, %v708, 0.0
        %v773 = vsel %vm749, %v704, 0.0
        %v774 = vsel %vm742, %v733, 0.0
        %v775 = vsel %vm743, %v729, 0.0
        %v776 = vsel %vm744, %v725, 0.0
        %v777 = vsel %vm745, %v721, 0.0
        %v778 = vsel %vm746, %v717, 0.0
        %v779 = vsel %vm747, %v713, 0.0
        %v780 = vsel %vm748, %v709, 0.0
        %v781 = vsel %vm749, %v705, 0.0
        %782 = vset.pattern.permute.xlu0 1
        %783 = vperm.xlu0 %782, %v396
        %v784 = vpop.permute.xlu0 %783
        %786 = vset.pattern.permute.xlu0 1
        %787 = vperm.xlu0 %786, %v397
        %v788 = vpop.permute.xlu0 %787
        %790 = vset.pattern.permute.xlu0 1
        %791 = vperm.xlu0 %790, %v398
        %v792 = vpop.permute.xlu0 %791
        %794 = vset.pattern.permute.xlu0 1
        %795 = vperm.xlu0 %794, %v399
        %v796 = vpop.permute.xlu0 %795
        %v798 = vmul.f32 %v750, %v784
        %v799 = vmul.f32 %v751, %v784
        %v800 = vmul.f32 %v752, %v784
        %v801 = vmul.f32 %v753, %v784
        %v802 = vmul.f32 %v754, %v784
        %v803 = vmul.f32 %v755, %v784
        %v804 = vmul.f32 %v756, %v784
        %v805 = vmul.f32 %v757, %v784
        %v806 = vmul.f32 %v758, %v788
        %v807 = vmul.f32 %v759, %v788
        %v808 = vmul.f32 %v760, %v788
        %v809 = vmul.f32 %v761, %v788
        %v810 = vmul.f32 %v762, %v788
        %v811 = vmul.f32 %v763, %v788
        %v812 = vmul.f32 %v764, %v788
        %v813 = vmul.f32 %v765, %v788
        %v814 = vmul.f32 %v766, %v792
        %v815 = vmul.f32 %v767, %v792
        %v816 = vmul.f32 %v768, %v792
        %v817 = vmul.f32 %v769, %v792
        %v818 = vmul.f32 %v770, %v792
        %v819 = vmul.f32 %v771, %v792
        %v820 = vmul.f32 %v772, %v792
        %v821 = vmul.f32 %v773, %v792
        %v822 = vmul.f32 %v774, %v796
        %v823 = vmul.f32 %v775, %v796
        %v824 = vmul.f32 %v776, %v796
        %v825 = vmul.f32 %v777, %v796
        %v826 = vmul.f32 %v778, %v796
        %v827 = vmul.f32 %v779, %v796
        %v828 = vmul.f32 %v780, %v796
        %v829 = vmul.f32 %v781, %v796
        %v830 = vadd.f32 %v605, %v798
        %v831 = vadd.f32 %v606, %v799
        %v832 = vadd.f32 %v607, %v800
        %v833 = vadd.f32 %v608, %v801
        %v834 = vadd.f32 %v609, %v802
        %v835 = vadd.f32 %v610, %v803
        %v836 = vadd.f32 %v611, %v804
        %v837 = vadd.f32 %v612, %v805
        %v838 = vadd.f32 %v613, %v806
        %v839 = vadd.f32 %v614, %v807
        %v840 = vadd.f32 %v615, %v808
        %v841 = vadd.f32 %v616, %v809
        %v842 = vadd.f32 %v617, %v810
        %v843 = vadd.f32 %v618, %v811
        %v844 = vadd.f32 %v619, %v812
        %v845 = vadd.f32 %v620, %v813
        %v846 = vadd.f32 %v621, %v814
        %v847 = vadd.f32 %v622, %v815
        %v848 = vadd.f32 %v623, %v816
        %v849 = vadd.f32 %v624, %v817
        %v850 = vadd.f32 %v625, %v818
        %v851 = vadd.f32 %v626, %v819
        %v852 = vadd.f32 %v627, %v820
        %v853 = vadd.f32 %v628, %v821
        %v854 = vadd.f32 %v629, %v822
        %v855 = vadd.f32 %v630, %v823
        %v856 = vadd.f32 %v631, %v824
        %v857 = vadd.f32 %v632, %v825
        %v858 = vadd.f32 %v633, %v826
        %v859 = vadd.f32 %v634, %v827
        %v860 = vadd.f32 %v635, %v828
        %v861 = vadd.f32 %v636, %v829
        %862 = vrot.lane.b32.xlu0 %v275, 15
        %v863 = vpop.permute.xlu0 %862
        %864 = vrot.lane.b32.xlu0 %v283, 15
        %v865 = vpop.permute.xlu0 %864
        %866 = vrot.lane.b32.xlu0 %v291, 15
        %v867 = vpop.permute.xlu0 %866
        %868 = vrot.lane.b32.xlu0 %v299, 15
        %v869 = vpop.permute.xlu0 %868
        %870 = vrot.lane.b32.xlu0 %v276, 15
        %v871 = vpop.permute.xlu0 %870
        %872 = vrot.lane.b32.xlu0 %v284, 15
        %v873 = vpop.permute.xlu0 %872
        %874 = vrot.lane.b32.xlu0 %v292, 15
        %v875 = vpop.permute.xlu0 %874
        %876 = vrot.lane.b32.xlu0 %v300, 15
        %v877 = vpop.permute.xlu0 %876
        %878 = vrot.lane.b32.xlu0 %v277, 15
        %v879 = vpop.permute.xlu0 %878
        %880 = vrot.lane.b32.xlu0 %v285, 15
        %v881 = vpop.permute.xlu0 %880
        %882 = vrot.lane.b32.xlu0 %v293, 15
        %v883 = vpop.permute.xlu0 %882
        %884 = vrot.lane.b32.xlu0 %v301, 15
        %v885 = vpop.permute.xlu0 %884
        %886 = vrot.lane.b32.xlu0 %v278, 15
        %v887 = vpop.permute.xlu0 %886
        %888 = vrot.lane.b32.xlu0 %v286, 15
        %v889 = vpop.permute.xlu0 %888
        %890 = vrot.lane.b32.xlu0 %v294, 15
        %v891 = vpop.permute.xlu0 %890
        %892 = vrot.lane.b32.xlu0 %v302, 15
        %v893 = vpop.permute.xlu0 %892
        %894 = vrot.lane.b32.xlu0 %v279, 15
        %v895 = vpop.permute.xlu0 %894
        %896 = vrot.lane.b32.xlu0 %v287, 15
        %v897 = vpop.permute.xlu0 %896
        %898 = vrot.lane.b32.xlu0 %v295, 15
        %v899 = vpop.permute.xlu0 %898
        %900 = vrot.lane.b32.xlu0 %v303, 15
        %v901 = vpop.permute.xlu0 %900
        %902 = vrot.lane.b32.xlu0 %v280, 15
        %v903 = vpop.permute.xlu0 %902
        %904 = vrot.lane.b32.xlu0 %v288, 15
        %v905 = vpop.permute.xlu0 %904
        %906 = vrot.lane.b32.xlu0 %v296, 15
        %v907 = vpop.permute.xlu0 %906
        %908 = vrot.lane.b32.xlu0 %v304, 15
        %v909 = vpop.permute.xlu0 %908
        %910 = vrot.lane.b32.xlu0 %v281, 15
        %v911 = vpop.permute.xlu0 %910
        %912 = vrot.lane.b32.xlu0 %v289, 15
        %v913 = vpop.permute.xlu0 %912
        %914 = vrot.lane.b32.xlu0 %v297, 15
        %v915 = vpop.permute.xlu0 %914
        %916 = vrot.lane.b32.xlu0 %v305, 15
        %v917 = vpop.permute.xlu0 %916
        %918 = vrot.lane.b32.xlu0 %v282, 15
        %v919 = vpop.permute.xlu0 %918
        %920 = vrot.lane.b32.xlu0 %v290, 15
        %v921 = vpop.permute.xlu0 %920
        %922 = vrot.lane.b32.xlu0 %v298, 15
        %v923 = vpop.permute.xlu0 %922
        %924 = vrot.lane.b32.xlu0 %v306, 15
        %v925 = vpop.permute.xlu0 %924
        %vm926 = vcmp.lt.s32.totalorder %v308, 15
        %v927 = vsel %vm926, %v911, %v919
        %v928 = vsel %vm926, %v913, %v921
        %v929 = vsel %vm926, %v915, %v923
        %v930 = vsel %vm926, %v917, %v925
        %v931 = vsel %vm926, %v903, %v911
        %v932 = vsel %vm926, %v905, %v913
        %v933 = vsel %vm926, %v907, %v915
        %v934 = vsel %vm926, %v909, %v917
        %v935 = vsel %vm926, %v895, %v903
        %v936 = vsel %vm926, %v897, %v905
        %v937 = vsel %vm926, %v899, %v907
        %v938 = vsel %vm926, %v901, %v909
        %v939 = vsel %vm926, %v887, %v895
        %v940 = vsel %vm926, %v889, %v897
        %v941 = vsel %vm926, %v891, %v899
        %v942 = vsel %vm926, %v893, %v901
        %v943 = vsel %vm926, %v879, %v887
        %v944 = vsel %vm926, %v881, %v889
        %v945 = vsel %vm926, %v883, %v891
        %v946 = vsel %vm926, %v885, %v893
        %v947 = vsel %vm926, %v871, %v879
        %v948 = vsel %vm926, %v873, %v881
        %v949 = vsel %vm926, %v875, %v883
        %v950 = vsel %vm926, %v877, %v885
        %v951 = vsel %vm926, %v863, %v871
        %v952 = vsel %vm926, %v865, %v873
        %v953 = vsel %vm926, %v867, %v875
        %v954 = vsel %vm926, %v869, %v877
        %v955 = vsel %vm926, %v919, %v863
        %v956 = vsel %vm926, %v921, %v865
        %v957 = vsel %vm926, %v923, %v867
        %v958 = vsel %vm926, %v925, %v869
        %v959 = vsel %vm364, 1, 0
        %v960 = vsel %vm365, 1, 0
        %v961 = vsel %vm366, 1, 0
        %v962 = vsel %vm367, 1, 0
        %v963 = vsel %vm368, 1, 0
        %v964 = vsel %vm369, 1, 0
        %v965 = vsel %vm370, 1, 0
        %v966 = vsel %vm371, 1, 0
        %vm967 = vcmp.eq.s32.totalorder %v959, 1
        %vm968 = vcmp.eq.s32.totalorder %v960, 1
        %vm969 = vcmp.eq.s32.totalorder %v961, 1
        %vm970 = vcmp.eq.s32.totalorder %v962, 1
        %vm971 = vcmp.eq.s32.totalorder %v963, 1
        %vm972 = vcmp.eq.s32.totalorder %v964, 1
        %vm973 = vcmp.eq.s32.totalorder %v965, 1
        %vm974 = vcmp.eq.s32.totalorder %v966, 1
        %v975 = vsel %vm967, %v955, 0.0
        %v976 = vsel %vm968, %v951, 0.0
        %v977 = vsel %vm969, %v947, 0.0
        %v978 = vsel %vm970, %v943, 0.0
        %v979 = vsel %vm971, %v939, 0.0
        %v980 = vsel %vm972, %v935, 0.0
        %v981 = vsel %vm973, %v931, 0.0
        %v982 = vsel %vm974, %v927, 0.0
        %v983 = vsel %vm967, %v956, 0.0
        %v984 = vsel %vm968, %v952, 0.0
        %v985 = vsel %vm969, %v948, 0.0
        %v986 = vsel %vm970, %v944, 0.0
        %v987 = vsel %vm971, %v940, 0.0
        %v988 = vsel %vm972, %v936, 0.0
        %v989 = vsel %vm973, %v932, 0.0
        %v990 = vsel %vm974, %v928, 0.0
        %v991 = vsel %vm967, %v957, 0.0
        %v992 = vsel %vm968, %v953, 0.0
        %v993 = vsel %vm969, %v949, 0.0
        %v994 = vsel %vm970, %v945, 0.0
        %v995 = vsel %vm971, %v941, 0.0
        %v996 = vsel %vm972, %v937, 0.0
        %v997 = vsel %vm973, %v933, 0.0
        %v998 = vsel %vm974, %v929, 0.0
        %v999 = vsel %vm967, %v958, 0.0
        %v1000 = vsel %vm968, %v954, 0.0
        %v1001 = vsel %vm969, %v950, 0.0
        %v1002 = vsel %vm970, %v946, 0.0
        %v1003 = vsel %vm971, %v942, 0.0
        %v1004 = vsel %vm972, %v938, 0.0
        %v1005 = vsel %vm973, %v934, 0.0
        %v1006 = vsel %vm974, %v930, 0.0
        %1007 = vset.pattern.permute.xlu0 2
        %1008 = vperm.xlu0 %1007, %v396
        %v1009 = vpop.permute.xlu0 %1008
        %1011 = vset.pattern.permute.xlu0 2
        %1012 = vperm.xlu0 %1011, %v397
        %v1013 = vpop.permute.xlu0 %1012
        %1015 = vset.pattern.permute.xlu0 2
        %1016 = vperm.xlu0 %1015, %v398
        %v1017 = vpop.permute.xlu0 %1016
        %1019 = vset.pattern.permute.xlu0 2
        %1020 = vperm.xlu0 %1019, %v399
        %v1021 = vpop.permute.xlu0 %1020
        %v1023 = vmul.f32 %v975, %v1009
        %v1024 = vmul.f32 %v976, %v1009
        %v1025 = vmul.f32 %v977, %v1009
        %v1026 = vmul.f32 %v978, %v1009
        %v1027 = vmul.f32 %v979, %v1009
        %v1028 = vmul.f32 %v980, %v1009
        %v1029 = vmul.f32 %v981, %v1009
        %v1030 = vmul.f32 %v982, %v1009
        %v1031 = vmul.f32 %v983, %v1013
        %v1032 = vmul.f32 %v984, %v1013
        %v1033 = vmul.f32 %v985, %v1013
        %v1034 = vmul.f32 %v986, %v1013
        %v1035 = vmul.f32 %v987, %v1013
        %v1036 = vmul.f32 %v988, %v1013
        %v1037 = vmul.f32 %v989, %v1013
        %v1038 = vmul.f32 %v990, %v1013
        %v1039 = vmul.f32 %v991, %v1017
        %v1040 = vmul.f32 %v992, %v1017
        %v1041 = vmul.f32 %v993, %v1017
        %v1042 = vmul.f32 %v994, %v1017
        %v1043 = vmul.f32 %v995, %v1017
        %v1044 = vmul.f32 %v996, %v1017
        %v1045 = vmul.f32 %v997, %v1017
        %v1046 = vmul.f32 %v998, %v1017
        %v1047 = vmul.f32 %v999, %v1021
        %v1048 = vmul.f32 %v1000, %v1021
        %v1049 = vmul.f32 %v1001, %v1021
        %v1050 = vmul.f32 %v1002, %v1021
        %v1051 = vmul.f32 %v1003, %v1021
        %v1052 = vmul.f32 %v1004, %v1021
        %v1053 = vmul.f32 %v1005, %v1021
        %v1054 = vmul.f32 %v1006, %v1021
        %v1055 = vadd.f32 %v830, %v1023
        %v1056 = vadd.f32 %v831, %v1024
        %v1057 = vadd.f32 %v832, %v1025
        %v1058 = vadd.f32 %v833, %v1026
        %v1059 = vadd.f32 %v834, %v1027
        %v1060 = vadd.f32 %v835, %v1028
        %v1061 = vadd.f32 %v836, %v1029
        %v1062 = vadd.f32 %v837, %v1030
        %v1063 = vadd.f32 %v838, %v1031
        %v1064 = vadd.f32 %v839, %v1032
        %v1065 = vadd.f32 %v840, %v1033
        %v1066 = vadd.f32 %v841, %v1034
        %v1067 = vadd.f32 %v842, %v1035
        %v1068 = vadd.f32 %v843, %v1036
        %v1069 = vadd.f32 %v844, %v1037
        %v1070 = vadd.f32 %v845, %v1038
        %v1071 = vadd.f32 %v846, %v1039
        %v1072 = vadd.f32 %v847, %v1040
        %v1073 = vadd.f32 %v848, %v1041
        %v1074 = vadd.f32 %v849, %v1042
        %v1075 = vadd.f32 %v850, %v1043
        %v1076 = vadd.f32 %v851, %v1044
        %v1077 = vadd.f32 %v852, %v1045
        %v1078 = vadd.f32 %v853, %v1046
        %v1079 = vadd.f32 %v854, %v1047
        %v1080 = vadd.f32 %v855, %v1048
        %v1081 = vadd.f32 %v856, %v1049
        %v1082 = vadd.f32 %v857, %v1050
        %v1083 = vadd.f32 %v858, %v1051
        %v1084 = vadd.f32 %v859, %v1052
        %v1085 = vadd.f32 %v860, %v1053
        %v1086 = vadd.f32 %v861, %v1054
        %1087 = vrot.lane.b32.xlu0 %v275, 1
        %v1088 = vpop.permute.xlu0 %1087
        %1089 = vrot.lane.b32.xlu0 %v283, 1
        %v1090 = vpop.permute.xlu0 %1089
        %1091 = vrot.lane.b32.xlu0 %v291, 1
        %v1092 = vpop.permute.xlu0 %1091
        %1093 = vrot.lane.b32.xlu0 %v299, 1
        %v1094 = vpop.permute.xlu0 %1093
        %1095 = vrot.lane.b32.xlu0 %v276, 1
        %v1096 = vpop.permute.xlu0 %1095
        %1097 = vrot.lane.b32.xlu0 %v284, 1
        %v1098 = vpop.permute.xlu0 %1097
        %1099 = vrot.lane.b32.xlu0 %v292, 1
        %v1100 = vpop.permute.xlu0 %1099
        %1101 = vrot.lane.b32.xlu0 %v300, 1
        %v1102 = vpop.permute.xlu0 %1101
        %1103 = vrot.lane.b32.xlu0 %v277, 1
        %v1104 = vpop.permute.xlu0 %1103
        %1105 = vrot.lane.b32.xlu0 %v285, 1
        %v1106 = vpop.permute.xlu0 %1105
        %1107 = vrot.lane.b32.xlu0 %v293, 1
        %v1108 = vpop.permute.xlu0 %1107
        %1109 = vrot.lane.b32.xlu0 %v301, 1
        %v1110 = vpop.permute.xlu0 %1109
        %1111 = vrot.lane.b32.xlu0 %v278, 1
        %v1112 = vpop.permute.xlu0 %1111
        %1113 = vrot.lane.b32.xlu0 %v286, 1
        %v1114 = vpop.permute.xlu0 %1113
        %1115 = vrot.lane.b32.xlu0 %v294, 1
        %v1116 = vpop.permute.xlu0 %1115
        %1117 = vrot.lane.b32.xlu0 %v302, 1
        %v1118 = vpop.permute.xlu0 %1117
        %1119 = vrot.lane.b32.xlu0 %v279, 1
        %v1120 = vpop.permute.xlu0 %1119
        %1121 = vrot.lane.b32.xlu0 %v287, 1
        %v1122 = vpop.permute.xlu0 %1121
        %1123 = vrot.lane.b32.xlu0 %v295, 1
        %v1124 = vpop.permute.xlu0 %1123
        %1125 = vrot.lane.b32.xlu0 %v303, 1
        %v1126 = vpop.permute.xlu0 %1125
        %1127 = vrot.lane.b32.xlu0 %v280, 1
        %v1128 = vpop.permute.xlu0 %1127
        %1129 = vrot.lane.b32.xlu0 %v288, 1
        %v1130 = vpop.permute.xlu0 %1129
        %1131 = vrot.lane.b32.xlu0 %v296, 1
        %v1132 = vpop.permute.xlu0 %1131
        %1133 = vrot.lane.b32.xlu0 %v304, 1
        %v1134 = vpop.permute.xlu0 %1133
        %1135 = vrot.lane.b32.xlu0 %v281, 1
        %v1136 = vpop.permute.xlu0 %1135
        %1137 = vrot.lane.b32.xlu0 %v289, 1
        %v1138 = vpop.permute.xlu0 %1137
        %1139 = vrot.lane.b32.xlu0 %v297, 1
        %v1140 = vpop.permute.xlu0 %1139
        %1141 = vrot.lane.b32.xlu0 %v305, 1
        %v1142 = vpop.permute.xlu0 %1141
        %1143 = vrot.lane.b32.xlu0 %v282, 1
        %v1144 = vpop.permute.xlu0 %1143
        %1145 = vrot.lane.b32.xlu0 %v290, 1
        %v1146 = vpop.permute.xlu0 %1145
        %1147 = vrot.lane.b32.xlu0 %v298, 1
        %v1148 = vpop.permute.xlu0 %1147
        %1149 = vrot.lane.b32.xlu0 %v306, 1
        %v1150 = vpop.permute.xlu0 %1149
        %vm1151 = vcmp.lt.s32.totalorder %v308, 1
        %v1152 = vsel %vm1151, %v1136, %v1144
        %v1153 = vsel %vm1151, %v1138, %v1146
        %v1154 = vsel %vm1151, %v1140, %v1148
        %v1155 = vsel %vm1151, %v1142, %v1150
        %v1156 = vsel %vm1151, %v1128, %v1136
        %v1157 = vsel %vm1151, %v1130, %v1138
        %v1158 = vsel %vm1151, %v1132, %v1140
        %v1159 = vsel %vm1151, %v1134, %v1142
        %v1160 = vsel %vm1151, %v1120, %v1128
        %v1161 = vsel %vm1151, %v1122, %v1130
        %v1162 = vsel %vm1151, %v1124, %v1132
        %v1163 = vsel %vm1151, %v1126, %v1134
        %v1164 = vsel %vm1151, %v1112, %v1120
        %v1165 = vsel %vm1151, %v1114, %v1122
        %v1166 = vsel %vm1151, %v1116, %v1124
        %v1167 = vsel %vm1151, %v1118, %v1126
        %v1168 = vsel %vm1151, %v1104, %v1112
        %v1169 = vsel %vm1151, %v1106, %v1114
        %v1170 = vsel %vm1151, %v1108, %v1116
        %v1171 = vsel %vm1151, %v1110, %v1118
        %v1172 = vsel %vm1151, %v1096, %v1104
        %v1173 = vsel %vm1151, %v1098, %v1106
        %v1174 = vsel %vm1151, %v1100, %v1108
        %v1175 = vsel %vm1151, %v1102, %v1110
        %v1176 = vsel %vm1151, %v1088, %v1096
        %v1177 = vsel %vm1151, %v1090, %v1098
        %v1178 = vsel %vm1151, %v1092, %v1100
        %v1179 = vsel %vm1151, %v1094, %v1102
        %v1180 = vsel %vm1151, %v1144, %v1088
        %v1181 = vsel %vm1151, %v1146, %v1090
        %v1182 = vsel %vm1151, %v1148, %v1092
        %v1183 = vsel %vm1151, %v1150, %v1094
        %v1184 = vsel %vm340, 1, 0
        %v1185 = vsel %vm341, 1, 0
        %v1186 = vsel %vm342, 1, 0
        %v1187 = vsel %vm343, 1, 0
        %v1188 = vsel %vm344, 1, 0
        %v1189 = vsel %vm345, 1, 0
        %v1190 = vsel %vm346, 1, 0
        %v1191 = vsel %vm347, 1, 0
        %vm1192 = vcmp.eq.s32.totalorder %v1184, 1
        %vm1193 = vcmp.eq.s32.totalorder %v1185, 1
        %vm1194 = vcmp.eq.s32.totalorder %v1186, 1
        %vm1195 = vcmp.eq.s32.totalorder %v1187, 1
        %vm1196 = vcmp.eq.s32.totalorder %v1188, 1
        %vm1197 = vcmp.eq.s32.totalorder %v1189, 1
        %vm1198 = vcmp.eq.s32.totalorder %v1190, 1
        %vm1199 = vcmp.eq.s32.totalorder %v1191, 1
        %v1200 = vsel %vm1192, %v1180, 0.0
        %v1201 = vsel %vm1193, %v1176, 0.0
        %v1202 = vsel %vm1194, %v1172, 0.0
        %v1203 = vsel %vm1195, %v1168, 0.0
        %v1204 = vsel %vm1196, %v1164, 0.0
        %v1205 = vsel %vm1197, %v1160, 0.0
        %v1206 = vsel %vm1198, %v1156, 0.0
        %v1207 = vsel %vm1199, %v1152, 0.0
        %v1208 = vsel %vm1192, %v1181, 0.0
        %v1209 = vsel %vm1193, %v1177, 0.0
        %v1210 = vsel %vm1194, %v1173, 0.0
        %v1211 = vsel %vm1195, %v1169, 0.0
        %v1212 = vsel %vm1196, %v1165, 0.0
        %v1213 = vsel %vm1197, %v1161, 0.0
        %v1214 = vsel %vm1198, %v1157, 0.0
        %v1215 = vsel %vm1199, %v1153, 0.0
        %v1216 = vsel %vm1192, %v1182, 0.0
        %v1217 = vsel %vm1193, %v1178, 0.0
        %v1218 = vsel %vm1194, %v1174, 0.0
        %v1219 = vsel %vm1195, %v1170, 0.0
        %v1220 = vsel %vm1196, %v1166, 0.0
        %v1221 = vsel %vm1197, %v1162, 0.0
        %v1222 = vsel %vm1198, %v1158, 0.0
        %v1223 = vsel %vm1199, %v1154, 0.0
        %v1224 = vsel %vm1192, %v1183, 0.0
        %v1225 = vsel %vm1193, %v1179, 0.0
        %v1226 = vsel %vm1194, %v1175, 0.0
        %v1227 = vsel %vm1195, %v1171, 0.0
        %v1228 = vsel %vm1196, %v1167, 0.0
        %v1229 = vsel %vm1197, %v1163, 0.0
        %v1230 = vsel %vm1198, %v1159, 0.0
        %v1231 = vsel %vm1199, %v1155, 0.0
        %1232 = vset.pattern.permute.xlu0 3
        %1233 = vperm.xlu0 %1232, %v396
        %v1234 = vpop.permute.xlu0 %1233
        %1236 = vset.pattern.permute.xlu0 3
        %1237 = vperm.xlu0 %1236, %v397
        %v1238 = vpop.permute.xlu0 %1237
        %1240 = vset.pattern.permute.xlu0 3
        %1241 = vperm.xlu0 %1240, %v398
        %v1242 = vpop.permute.xlu0 %1241
        %1244 = vset.pattern.permute.xlu0 3
        %1245 = vperm.xlu0 %1244, %v399
        %v1246 = vpop.permute.xlu0 %1245
        %v1248 = vmul.f32 %v1200, %v1234
        %v1249 = vmul.f32 %v1201, %v1234
        %v1250 = vmul.f32 %v1202, %v1234
        %v1251 = vmul.f32 %v1203, %v1234
        %v1252 = vmul.f32 %v1204, %v1234
        %v1253 = vmul.f32 %v1205, %v1234
        %v1254 = vmul.f32 %v1206, %v1234
        %v1255 = vmul.f32 %v1207, %v1234
        %v1256 = vmul.f32 %v1208, %v1238
        %v1257 = vmul.f32 %v1209, %v1238
        %v1258 = vmul.f32 %v1210, %v1238
        %v1259 = vmul.f32 %v1211, %v1238
        %v1260 = vmul.f32 %v1212, %v1238
        %v1261 = vmul.f32 %v1213, %v1238
        %v1262 = vmul.f32 %v1214, %v1238
        %v1263 = vmul.f32 %v1215, %v1238
        %v1264 = vmul.f32 %v1216, %v1242
        %v1265 = vmul.f32 %v1217, %v1242
        %v1266 = vmul.f32 %v1218, %v1242
        %v1267 = vmul.f32 %v1219, %v1242
        %v1268 = vmul.f32 %v1220, %v1242
        %v1269 = vmul.f32 %v1221, %v1242
        %v1270 = vmul.f32 %v1222, %v1242
        %v1271 = vmul.f32 %v1223, %v1242
        %v1272 = vmul.f32 %v1224, %v1246
        %v1273 = vmul.f32 %v1225, %v1246
        %v1274 = vmul.f32 %v1226, %v1246
        %v1275 = vmul.f32 %v1227, %v1246
        %v1276 = vmul.f32 %v1228, %v1246
        %v1277 = vmul.f32 %v1229, %v1246
        %v1278 = vmul.f32 %v1230, %v1246
        %v1279 = vmul.f32 %v1231, %v1246
        %v1280 = vadd.f32 %v1055, %v1248
        %v1281 = vadd.f32 %v1056, %v1249
        %v1282 = vadd.f32 %v1057, %v1250
        %v1283 = vadd.f32 %v1058, %v1251
        %v1284 = vadd.f32 %v1059, %v1252
        %v1285 = vadd.f32 %v1060, %v1253
        %v1286 = vadd.f32 %v1061, %v1254
        %v1287 = vadd.f32 %v1062, %v1255
        %v1288 = vadd.f32 %v1063, %v1256
        %v1289 = vadd.f32 %v1064, %v1257
        %v1290 = vadd.f32 %v1065, %v1258
        %v1291 = vadd.f32 %v1066, %v1259
        %v1292 = vadd.f32 %v1067, %v1260
        %v1293 = vadd.f32 %v1068, %v1261
        %v1294 = vadd.f32 %v1069, %v1262
        %v1295 = vadd.f32 %v1070, %v1263
        %v1296 = vadd.f32 %v1071, %v1264
        %v1297 = vadd.f32 %v1072, %v1265
        %v1298 = vadd.f32 %v1073, %v1266
        %v1299 = vadd.f32 %v1074, %v1267
        %v1300 = vadd.f32 %v1075, %v1268
        %v1301 = vadd.f32 %v1076, %v1269
        %v1302 = vadd.f32 %v1077, %v1270
        %v1303 = vadd.f32 %v1078, %v1271
        %v1304 = vadd.f32 %v1079, %v1272
        %v1305 = vadd.f32 %v1080, %v1273
        %v1306 = vadd.f32 %v1081, %v1274
        %v1307 = vadd.f32 %v1082, %v1275
        %v1308 = vadd.f32 %v1083, %v1276
        %v1309 = vadd.f32 %v1084, %v1277
        %v1310 = vadd.f32 %v1085, %v1278
        %v1311 = vadd.f32 %v1086, %v1279
        %1312 = vset.pattern.permute.xlu0 4
        %1313 = vperm.xlu0 %1312, %v396
        %v1314 = vpop.permute.xlu0 %1313
        %1316 = vset.pattern.permute.xlu0 4
        %1317 = vperm.xlu0 %1316, %v397
        %v1318 = vpop.permute.xlu0 %1317
        %1320 = vset.pattern.permute.xlu0 4
        %1321 = vperm.xlu0 %1320, %v398
        %v1322 = vpop.permute.xlu0 %1321
        %1324 = vset.pattern.permute.xlu0 4
        %1325 = vperm.xlu0 %1324, %v399
        %v1326 = vpop.permute.xlu0 %1325
        %v1328 = vmul.f32 %v275, %v1314
        %v1329 = vmul.f32 %v276, %v1314
        %v1330 = vmul.f32 %v277, %v1314
        %v1331 = vmul.f32 %v278, %v1314
        %v1332 = vmul.f32 %v279, %v1314
        %v1333 = vmul.f32 %v280, %v1314
        %v1334 = vmul.f32 %v281, %v1314
        %v1335 = vmul.f32 %v282, %v1314
        %v1336 = vmul.f32 %v283, %v1318
        %v1337 = vmul.f32 %v284, %v1318
        %v1338 = vmul.f32 %v285, %v1318
        %v1339 = vmul.f32 %v286, %v1318
        %v1340 = vmul.f32 %v287, %v1318
        %v1341 = vmul.f32 %v288, %v1318
        %v1342 = vmul.f32 %v289, %v1318
        %v1343 = vmul.f32 %v290, %v1318
        %v1344 = vmul.f32 %v291, %v1322
        %v1345 = vmul.f32 %v292, %v1322
        %v1346 = vmul.f32 %v293, %v1322
        %v1347 = vmul.f32 %v294, %v1322
        %v1348 = vmul.f32 %v295, %v1322
        %v1349 = vmul.f32 %v296, %v1322
        %v1350 = vmul.f32 %v297, %v1322
        %v1351 = vmul.f32 %v298, %v1322
        %v1352 = vmul.f32 %v299, %v1326
        %v1353 = vmul.f32 %v300, %v1326
        %v1354 = vmul.f32 %v301, %v1326
        %v1355 = vmul.f32 %v302, %v1326
        %v1356 = vmul.f32 %v303, %v1326
        %v1357 = vmul.f32 %v304, %v1326
        %v1358 = vmul.f32 %v305, %v1326
        %v1359 = vmul.f32 %v306, %v1326
        %v1360 = vadd.f32 %v1280, %v1328
        %v1361 = vadd.f32 %v1281, %v1329
        %v1362 = vadd.f32 %v1282, %v1330
        %v1363 = vadd.f32 %v1283, %v1331
        %v1364 = vadd.f32 %v1284, %v1332
        %v1365 = vadd.f32 %v1285, %v1333
        %v1366 = vadd.f32 %v1286, %v1334
        %v1367 = vadd.f32 %v1287, %v1335
        %v1368 = vadd.f32 %v1288, %v1336
        %v1369 = vadd.f32 %v1289, %v1337
        %v1370 = vadd.f32 %v1290, %v1338
        %v1371 = vadd.f32 %v1291, %v1339
        %v1372 = vadd.f32 %v1292, %v1340
        %v1373 = vadd.f32 %v1293, %v1341
        %v1374 = vadd.f32 %v1294, %v1342
        %v1375 = vadd.f32 %v1295, %v1343
        %v1376 = vadd.f32 %v1296, %v1344
        %v1377 = vadd.f32 %v1297, %v1345
        %v1378 = vadd.f32 %v1298, %v1346
        %v1379 = vadd.f32 %v1299, %v1347
        %v1380 = vadd.f32 %v1300, %v1348
        %v1381 = vadd.f32 %v1301, %v1349
        %v1382 = vadd.f32 %v1302, %v1350
        %v1383 = vadd.f32 %v1303, %v1351
        %v1384 = vadd.f32 %v1304, %v1352
        %v1385 = vadd.f32 %v1305, %v1353
        %v1386 = vadd.f32 %v1306, %v1354
        %v1387 = vadd.f32 %v1307, %v1355
        %v1388 = vadd.f32 %v1308, %v1356
        %v1389 = vadd.f32 %v1309, %v1357
        %v1390 = vadd.f32 %v1310, %v1358
        %v1391 = vadd.f32 %v1311, %v1359
        %1392 = vrot.lane.b32.xlu0 %v275, 127
        %v1393 = vpop.permute.xlu0 %1392
        %1394 = vrot.lane.b32.xlu0 %v283, 127
        %v1395 = vpop.permute.xlu0 %1394
        %1396 = vrot.lane.b32.xlu0 %v291, 127
        %v1397 = vpop.permute.xlu0 %1396
        %1398 = vrot.lane.b32.xlu0 %v299, 127
        %v1399 = vpop.permute.xlu0 %1398
        %1400 = vrot.lane.b32.xlu0 %v276, 127
        %v1401 = vpop.permute.xlu0 %1400
        %1402 = vrot.lane.b32.xlu0 %v284, 127
        %v1403 = vpop.permute.xlu0 %1402
        %1404 = vrot.lane.b32.xlu0 %v292, 127
        %v1405 = vpop.permute.xlu0 %1404
        %1406 = vrot.lane.b32.xlu0 %v300, 127
        %v1407 = vpop.permute.xlu0 %1406
        %1408 = vrot.lane.b32.xlu0 %v277, 127
        %v1409 = vpop.permute.xlu0 %1408
        %1410 = vrot.lane.b32.xlu0 %v285, 127
        %v1411 = vpop.permute.xlu0 %1410
        %1412 = vrot.lane.b32.xlu0 %v293, 127
        %v1413 = vpop.permute.xlu0 %1412
        %1414 = vrot.lane.b32.xlu0 %v301, 127
        %v1415 = vpop.permute.xlu0 %1414
        %1416 = vrot.lane.b32.xlu0 %v278, 127
        %v1417 = vpop.permute.xlu0 %1416
        %1418 = vrot.lane.b32.xlu0 %v286, 127
        %v1419 = vpop.permute.xlu0 %1418
        %1420 = vrot.lane.b32.xlu0 %v294, 127
        %v1421 = vpop.permute.xlu0 %1420
        %1422 = vrot.lane.b32.xlu0 %v302, 127
        %v1423 = vpop.permute.xlu0 %1422
        %1424 = vrot.lane.b32.xlu0 %v279, 127
        %v1425 = vpop.permute.xlu0 %1424
        %1426 = vrot.lane.b32.xlu0 %v287, 127
        %v1427 = vpop.permute.xlu0 %1426
        %1428 = vrot.lane.b32.xlu0 %v295, 127
        %v1429 = vpop.permute.xlu0 %1428
        %1430 = vrot.lane.b32.xlu0 %v303, 127
        %v1431 = vpop.permute.xlu0 %1430
        %1432 = vrot.lane.b32.xlu0 %v280, 127
        %v1433 = vpop.permute.xlu0 %1432
        %1434 = vrot.lane.b32.xlu0 %v288, 127
        %v1435 = vpop.permute.xlu0 %1434
        %1436 = vrot.lane.b32.xlu0 %v296, 127
        %v1437 = vpop.permute.xlu0 %1436
        %1438 = vrot.lane.b32.xlu0 %v304, 127
        %v1439 = vpop.permute.xlu0 %1438
        %1440 = vrot.lane.b32.xlu0 %v281, 127
        %v1441 = vpop.permute.xlu0 %1440
        %1442 = vrot.lane.b32.xlu0 %v289, 127
        %v1443 = vpop.permute.xlu0 %1442
        %1444 = vrot.lane.b32.xlu0 %v297, 127
        %v1445 = vpop.permute.xlu0 %1444
        %1446 = vrot.lane.b32.xlu0 %v305, 127
        %v1447 = vpop.permute.xlu0 %1446
        %1448 = vrot.lane.b32.xlu0 %v282, 127
        %v1449 = vpop.permute.xlu0 %1448
        %1450 = vrot.lane.b32.xlu0 %v290, 127
        %v1451 = vpop.permute.xlu0 %1450
        %1452 = vrot.lane.b32.xlu0 %v298, 127
        %v1453 = vpop.permute.xlu0 %1452
        %1454 = vrot.lane.b32.xlu0 %v306, 127
        %v1455 = vpop.permute.xlu0 %1454
        %vm1456 = vcmp.lt.s32.totalorder %v308, 127
        %v1457 = vsel %vm1456, %v1441, %v1449
        %v1458 = vsel %vm1456, %v1443, %v1451
        %v1459 = vsel %vm1456, %v1445, %v1453
        %v1460 = vsel %vm1456, %v1447, %v1455
        %v1461 = vsel %vm1456, %v1433, %v1441
        %v1462 = vsel %vm1456, %v1435, %v1443
        %v1463 = vsel %vm1456, %v1437, %v1445
        %v1464 = vsel %vm1456, %v1439, %v1447
        %v1465 = vsel %vm1456, %v1425, %v1433
        %v1466 = vsel %vm1456, %v1427, %v1435
        %v1467 = vsel %vm1456, %v1429, %v1437
        %v1468 = vsel %vm1456, %v1431, %v1439
        %v1469 = vsel %vm1456, %v1417, %v1425
        %v1470 = vsel %vm1456, %v1419, %v1427
        %v1471 = vsel %vm1456, %v1421, %v1429
        %v1472 = vsel %vm1456, %v1423, %v1431
        %v1473 = vsel %vm1456, %v1409, %v1417
        %v1474 = vsel %vm1456, %v1411, %v1419
        %v1475 = vsel %vm1456, %v1413, %v1421
        %v1476 = vsel %vm1456, %v1415, %v1423
        %v1477 = vsel %vm1456, %v1401, %v1409
        %v1478 = vsel %vm1456, %v1403, %v1411
        %v1479 = vsel %vm1456, %v1405, %v1413
        %v1480 = vsel %vm1456, %v1407, %v1415
        %v1481 = vsel %vm1456, %v1393, %v1401
        %v1482 = vsel %vm1456, %v1395, %v1403
        %v1483 = vsel %vm1456, %v1397, %v1405
        %v1484 = vsel %vm1456, %v1399, %v1407
        %v1485 = vsel %vm1456, %v1449, %v1393
        %v1486 = vsel %vm1456, %v1451, %v1395
        %v1487 = vsel %vm1456, %v1453, %v1397
        %v1488 = vsel %vm1456, %v1455, %v1399
        %v1489 = vsel %vm356, 1, 0
        %v1490 = vsel %vm357, 1, 0
        %v1491 = vsel %vm358, 1, 0
        %v1492 = vsel %vm359, 1, 0
        %v1493 = vsel %vm360, 1, 0
        %v1494 = vsel %vm361, 1, 0
        %v1495 = vsel %vm362, 1, 0
        %v1496 = vsel %vm363, 1, 0
        %vm1497 = vcmp.eq.s32.totalorder %v1489, 1
        %vm1498 = vcmp.eq.s32.totalorder %v1490, 1
        %vm1499 = vcmp.eq.s32.totalorder %v1491, 1
        %vm1500 = vcmp.eq.s32.totalorder %v1492, 1
        %vm1501 = vcmp.eq.s32.totalorder %v1493, 1
        %vm1502 = vcmp.eq.s32.totalorder %v1494, 1
        %vm1503 = vcmp.eq.s32.totalorder %v1495, 1
        %vm1504 = vcmp.eq.s32.totalorder %v1496, 1
        %v1505 = vsel %vm1497, %v1481, 0.0
        %v1506 = vsel %vm1498, %v1477, 0.0
        %v1507 = vsel %vm1499, %v1473, 0.0
        %v1508 = vsel %vm1500, %v1469, 0.0
        %v1509 = vsel %vm1501, %v1465, 0.0
        %v1510 = vsel %vm1502, %v1461, 0.0
        %v1511 = vsel %vm1503, %v1457, 0.0
        %v1512 = vsel %vm1504, %v1485, 0.0
        %v1513 = vsel %vm1497, %v1482, 0.0
        %v1514 = vsel %vm1498, %v1478, 0.0
        %v1515 = vsel %vm1499, %v1474, 0.0
        %v1516 = vsel %vm1500, %v1470, 0.0
        %v1517 = vsel %vm1501, %v1466, 0.0
        %v1518 = vsel %vm1502, %v1462, 0.0
        %v1519 = vsel %vm1503, %v1458, 0.0
        %v1520 = vsel %vm1504, %v1486, 0.0
        %v1521 = vsel %vm1497, %v1483, 0.0
        %v1522 = vsel %vm1498, %v1479, 0.0
        %v1523 = vsel %vm1499, %v1475, 0.0
        %v1524 = vsel %vm1500, %v1471, 0.0
        %v1525 = vsel %vm1501, %v1467, 0.0
        %v1526 = vsel %vm1502, %v1463, 0.0
        %v1527 = vsel %vm1503, %v1459, 0.0
        %v1528 = vsel %vm1504, %v1487, 0.0
        %v1529 = vsel %vm1497, %v1484, 0.0
        %v1530 = vsel %vm1498, %v1480, 0.0
        %v1531 = vsel %vm1499, %v1476, 0.0
        %v1532 = vsel %vm1500, %v1472, 0.0
        %v1533 = vsel %vm1501, %v1468, 0.0
        %v1534 = vsel %vm1502, %v1464, 0.0
        %v1535 = vsel %vm1503, %v1460, 0.0
        %v1536 = vsel %vm1504, %v1488, 0.0
        %1537 = vset.pattern.permute.xlu0 5
        %1538 = vperm.xlu0 %1537, %v396
        %v1539 = vpop.permute.xlu0 %1538
        %1541 = vset.pattern.permute.xlu0 5
        %1542 = vperm.xlu0 %1541, %v397
        %v1543 = vpop.permute.xlu0 %1542
        %1545 = vset.pattern.permute.xlu0 5
        %1546 = vperm.xlu0 %1545, %v398
        %v1547 = vpop.permute.xlu0 %1546
        %1549 = vset.pattern.permute.xlu0 5
        %1550 = vperm.xlu0 %1549, %v399
        %v1551 = vpop.permute.xlu0 %1550
        %v1553 = vmul.f32 %v1505, %v1539
        %v1554 = vmul.f32 %v1506, %v1539
        %v1555 = vmul.f32 %v1507, %v1539
        %v1556 = vmul.f32 %v1508, %v1539
        %v1557 = vmul.f32 %v1509, %v1539
        %v1558 = vmul.f32 %v1510, %v1539
        %v1559 = vmul.f32 %v1511, %v1539
        %v1560 = vmul.f32 %v1512, %v1539
        %v1561 = vmul.f32 %v1513, %v1543
        %v1562 = vmul.f32 %v1514, %v1543
        %v1563 = vmul.f32 %v1515, %v1543
        %v1564 = vmul.f32 %v1516, %v1543
        %v1565 = vmul.f32 %v1517, %v1543
        %v1566 = vmul.f32 %v1518, %v1543
        %v1567 = vmul.f32 %v1519, %v1543
        %v1568 = vmul.f32 %v1520, %v1543
        %v1569 = vmul.f32 %v1521, %v1547
        %v1570 = vmul.f32 %v1522, %v1547
        %v1571 = vmul.f32 %v1523, %v1547
        %v1572 = vmul.f32 %v1524, %v1547
        %v1573 = vmul.f32 %v1525, %v1547
        %v1574 = vmul.f32 %v1526, %v1547
        %v1575 = vmul.f32 %v1527, %v1547
        %v1576 = vmul.f32 %v1528, %v1547
        %v1577 = vmul.f32 %v1529, %v1551
        %v1578 = vmul.f32 %v1530, %v1551
        %v1579 = vmul.f32 %v1531, %v1551
        %v1580 = vmul.f32 %v1532, %v1551
        %v1581 = vmul.f32 %v1533, %v1551
        %v1582 = vmul.f32 %v1534, %v1551
        %v1583 = vmul.f32 %v1535, %v1551
        %v1584 = vmul.f32 %v1536, %v1551
        %v1585 = vadd.f32 %v1360, %v1553
        %v1586 = vadd.f32 %v1361, %v1554
        %v1587 = vadd.f32 %v1362, %v1555
        %v1588 = vadd.f32 %v1363, %v1556
        %v1589 = vadd.f32 %v1364, %v1557
        %v1590 = vadd.f32 %v1365, %v1558
        %v1591 = vadd.f32 %v1366, %v1559
        %v1592 = vadd.f32 %v1367, %v1560
        %v1593 = vadd.f32 %v1368, %v1561
        %v1594 = vadd.f32 %v1369, %v1562
        %v1595 = vadd.f32 %v1370, %v1563
        %v1596 = vadd.f32 %v1371, %v1564
        %v1597 = vadd.f32 %v1372, %v1565
        %v1598 = vadd.f32 %v1373, %v1566
        %v1599 = vadd.f32 %v1374, %v1567
        %v1600 = vadd.f32 %v1375, %v1568
        %v1601 = vadd.f32 %v1376, %v1569
        %v1602 = vadd.f32 %v1377, %v1570
        %v1603 = vadd.f32 %v1378, %v1571
        %v1604 = vadd.f32 %v1379, %v1572
        %v1605 = vadd.f32 %v1380, %v1573
        %v1606 = vadd.f32 %v1381, %v1574
        %v1607 = vadd.f32 %v1382, %v1575
        %v1608 = vadd.f32 %v1383, %v1576
        %v1609 = vadd.f32 %v1384, %v1577
        %v1610 = vadd.f32 %v1385, %v1578
        %v1611 = vadd.f32 %v1386, %v1579
        %v1612 = vadd.f32 %v1387, %v1580
        %v1613 = vadd.f32 %v1388, %v1581
        %v1614 = vadd.f32 %v1389, %v1582
        %v1615 = vadd.f32 %v1390, %v1583
        %v1616 = vadd.f32 %v1391, %v1584
        %1617 = vrot.lane.b32.xlu0 %v275, 113
        %v1618 = vpop.permute.xlu0 %1617
        %1619 = vrot.lane.b32.xlu0 %v283, 113
        %v1620 = vpop.permute.xlu0 %1619
        %1621 = vrot.lane.b32.xlu0 %v291, 113
        %v1622 = vpop.permute.xlu0 %1621
        %1623 = vrot.lane.b32.xlu0 %v299, 113
        %v1624 = vpop.permute.xlu0 %1623
        %1625 = vrot.lane.b32.xlu0 %v276, 113
        %v1626 = vpop.permute.xlu0 %1625
        %1627 = vrot.lane.b32.xlu0 %v284, 113
        %v1628 = vpop.permute.xlu0 %1627
        %1629 = vrot.lane.b32.xlu0 %v292, 113
        %v1630 = vpop.permute.xlu0 %1629
        %1631 = vrot.lane.b32.xlu0 %v300, 113
        %v1632 = vpop.permute.xlu0 %1631
        %1633 = vrot.lane.b32.xlu0 %v277, 113
        %v1634 = vpop.permute.xlu0 %1633
        %1635 = vrot.lane.b32.xlu0 %v285, 113
        %v1636 = vpop.permute.xlu0 %1635
        %1637 = vrot.lane.b32.xlu0 %v293, 113
        %v1638 = vpop.permute.xlu0 %1637
        %1639 = vrot.lane.b32.xlu0 %v301, 113
        %v1640 = vpop.permute.xlu0 %1639
        %1641 = vrot.lane.b32.xlu0 %v278, 113
        %v1642 = vpop.permute.xlu0 %1641
        %1643 = vrot.lane.b32.xlu0 %v286, 113
        %v1644 = vpop.permute.xlu0 %1643
        %1645 = vrot.lane.b32.xlu0 %v294, 113
        %v1646 = vpop.permute.xlu0 %1645
        %1647 = vrot.lane.b32.xlu0 %v302, 113
        %v1648 = vpop.permute.xlu0 %1647
        %1649 = vrot.lane.b32.xlu0 %v279, 113
        %v1650 = vpop.permute.xlu0 %1649
        %1651 = vrot.lane.b32.xlu0 %v287, 113
        %v1652 = vpop.permute.xlu0 %1651
        %1653 = vrot.lane.b32.xlu0 %v295, 113
        %v1654 = vpop.permute.xlu0 %1653
        %1655 = vrot.lane.b32.xlu0 %v303, 113
        %v1656 = vpop.permute.xlu0 %1655
        %1657 = vrot.lane.b32.xlu0 %v280, 113
        %v1658 = vpop.permute.xlu0 %1657
        %1659 = vrot.lane.b32.xlu0 %v288, 113
        %v1660 = vpop.permute.xlu0 %1659
        %1661 = vrot.lane.b32.xlu0 %v296, 113
        %v1662 = vpop.permute.xlu0 %1661
        %1663 = vrot.lane.b32.xlu0 %v304, 113
        %v1664 = vpop.permute.xlu0 %1663
        %1665 = vrot.lane.b32.xlu0 %v281, 113
        %v1666 = vpop.permute.xlu0 %1665
        %1667 = vrot.lane.b32.xlu0 %v289, 113
        %v1668 = vpop.permute.xlu0 %1667
        %1669 = vrot.lane.b32.xlu0 %v297, 113
        %v1670 = vpop.permute.xlu0 %1669
        %1671 = vrot.lane.b32.xlu0 %v305, 113
        %v1672 = vpop.permute.xlu0 %1671
        %1673 = vrot.lane.b32.xlu0 %v282, 113
        %v1674 = vpop.permute.xlu0 %1673
        %1675 = vrot.lane.b32.xlu0 %v290, 113
        %v1676 = vpop.permute.xlu0 %1675
        %1677 = vrot.lane.b32.xlu0 %v298, 113
        %v1678 = vpop.permute.xlu0 %1677
        %1679 = vrot.lane.b32.xlu0 %v306, 113
        %v1680 = vpop.permute.xlu0 %1679
        %vm1681 = vcmp.lt.s32.totalorder %v308, 113
        %v1682 = vsel %vm1681, %v1666, %v1674
        %v1683 = vsel %vm1681, %v1668, %v1676
        %v1684 = vsel %vm1681, %v1670, %v1678
        %v1685 = vsel %vm1681, %v1672, %v1680
        %v1686 = vsel %vm1681, %v1658, %v1666
        %v1687 = vsel %vm1681, %v1660, %v1668
        %v1688 = vsel %vm1681, %v1662, %v1670
        %v1689 = vsel %vm1681, %v1664, %v1672
        %v1690 = vsel %vm1681, %v1650, %v1658
        %v1691 = vsel %vm1681, %v1652, %v1660
        %v1692 = vsel %vm1681, %v1654, %v1662
        %v1693 = vsel %vm1681, %v1656, %v1664
        %v1694 = vsel %vm1681, %v1642, %v1650
        %v1695 = vsel %vm1681, %v1644, %v1652
        %v1696 = vsel %vm1681, %v1646, %v1654
        %v1697 = vsel %vm1681, %v1648, %v1656
        %v1698 = vsel %vm1681, %v1634, %v1642
        %v1699 = vsel %vm1681, %v1636, %v1644
        %v1700 = vsel %vm1681, %v1638, %v1646
        %v1701 = vsel %vm1681, %v1640, %v1648
        %v1702 = vsel %vm1681, %v1626, %v1634
        %v1703 = vsel %vm1681, %v1628, %v1636
        %v1704 = vsel %vm1681, %v1630, %v1638
        %v1705 = vsel %vm1681, %v1632, %v1640
        %v1706 = vsel %vm1681, %v1618, %v1626
        %v1707 = vsel %vm1681, %v1620, %v1628
        %v1708 = vsel %vm1681, %v1622, %v1630
        %v1709 = vsel %vm1681, %v1624, %v1632
        %v1710 = vsel %vm1681, %v1674, %v1618
        %v1711 = vsel %vm1681, %v1676, %v1620
        %v1712 = vsel %vm1681, %v1678, %v1622
        %v1713 = vsel %vm1681, %v1680, %v1624
        %v1714 = vsel %vm380, 1, 0
        %v1715 = vsel %vm381, 1, 0
        %v1716 = vsel %vm382, 1, 0
        %v1717 = vsel %vm383, 1, 0
        %v1718 = vsel %vm384, 1, 0
        %v1719 = vsel %vm385, 1, 0
        %v1720 = vsel %vm386, 1, 0
        %v1721 = vsel %vm387, 1, 0
        %vm1722 = vcmp.eq.s32.totalorder %v1714, 1
        %vm1723 = vcmp.eq.s32.totalorder %v1715, 1
        %vm1724 = vcmp.eq.s32.totalorder %v1716, 1
        %vm1725 = vcmp.eq.s32.totalorder %v1717, 1
        %vm1726 = vcmp.eq.s32.totalorder %v1718, 1
        %vm1727 = vcmp.eq.s32.totalorder %v1719, 1
        %vm1728 = vcmp.eq.s32.totalorder %v1720, 1
        %vm1729 = vcmp.eq.s32.totalorder %v1721, 1
        %v1730 = vsel %vm1722, %v1706, 0.0
        %v1731 = vsel %vm1723, %v1702, 0.0
        %v1732 = vsel %vm1724, %v1698, 0.0
        %v1733 = vsel %vm1725, %v1694, 0.0
        %v1734 = vsel %vm1726, %v1690, 0.0
        %v1735 = vsel %vm1727, %v1686, 0.0
        %v1736 = vsel %vm1728, %v1682, 0.0
        %v1737 = vsel %vm1729, %v1710, 0.0
        %v1738 = vsel %vm1722, %v1707, 0.0
        %v1739 = vsel %vm1723, %v1703, 0.0
        %v1740 = vsel %vm1724, %v1699, 0.0
        %v1741 = vsel %vm1725, %v1695, 0.0
        %v1742 = vsel %vm1726, %v1691, 0.0
        %v1743 = vsel %vm1727, %v1687, 0.0
        %v1744 = vsel %vm1728, %v1683, 0.0
        %v1745 = vsel %vm1729, %v1711, 0.0
        %v1746 = vsel %vm1722, %v1708, 0.0
        %v1747 = vsel %vm1723, %v1704, 0.0
        %v1748 = vsel %vm1724, %v1700, 0.0
        %v1749 = vsel %vm1725, %v1696, 0.0
        %v1750 = vsel %vm1726, %v1692, 0.0
        %v1751 = vsel %vm1727, %v1688, 0.0
        %v1752 = vsel %vm1728, %v1684, 0.0
        %v1753 = vsel %vm1729, %v1712, 0.0
        %v1754 = vsel %vm1722, %v1709, 0.0
        %v1755 = vsel %vm1723, %v1705, 0.0
        %v1756 = vsel %vm1724, %v1701, 0.0
        %v1757 = vsel %vm1725, %v1697, 0.0
        %v1758 = vsel %vm1726, %v1693, 0.0
        %v1759 = vsel %vm1727, %v1689, 0.0
        %v1760 = vsel %vm1728, %v1685, 0.0
        %v1761 = vsel %vm1729, %v1713, 0.0
        %1762 = vset.pattern.permute.xlu0 6
        %1763 = vperm.xlu0 %1762, %v396
        %v1764 = vpop.permute.xlu0 %1763
        %1766 = vset.pattern.permute.xlu0 6
        %1767 = vperm.xlu0 %1766, %v397
        %v1768 = vpop.permute.xlu0 %1767
        %1770 = vset.pattern.permute.xlu0 6
        %1771 = vperm.xlu0 %1770, %v398
        %v1772 = vpop.permute.xlu0 %1771
        %1774 = vset.pattern.permute.xlu0 6
        %1775 = vperm.xlu0 %1774, %v399
        %v1776 = vpop.permute.xlu0 %1775
        %v1778 = vmul.f32 %v1730, %v1764
        %v1779 = vmul.f32 %v1731, %v1764
        %v1780 = vmul.f32 %v1732, %v1764
        %v1781 = vmul.f32 %v1733, %v1764
        %v1782 = vmul.f32 %v1734, %v1764
        %v1783 = vmul.f32 %v1735, %v1764
        %v1784 = vmul.f32 %v1736, %v1764
        %v1785 = vmul.f32 %v1737, %v1764
        %v1786 = vmul.f32 %v1738, %v1768
        %v1787 = vmul.f32 %v1739, %v1768
        %v1788 = vmul.f32 %v1740, %v1768
        %v1789 = vmul.f32 %v1741, %v1768
        %v1790 = vmul.f32 %v1742, %v1768
        %v1791 = vmul.f32 %v1743, %v1768
        %v1792 = vmul.f32 %v1744, %v1768
        %v1793 = vmul.f32 %v1745, %v1768
        %v1794 = vmul.f32 %v1746, %v1772
        %v1795 = vmul.f32 %v1747, %v1772
        %v1796 = vmul.f32 %v1748, %v1772
        %v1797 = vmul.f32 %v1749, %v1772
        %v1798 = vmul.f32 %v1750, %v1772
        %v1799 = vmul.f32 %v1751, %v1772
        %v1800 = vmul.f32 %v1752, %v1772
        %v1801 = vmul.f32 %v1753, %v1772
        %v1802 = vmul.f32 %v1754, %v1776
        %v1803 = vmul.f32 %v1755, %v1776
        %v1804 = vmul.f32 %v1756, %v1776
        %v1805 = vmul.f32 %v1757, %v1776
        %v1806 = vmul.f32 %v1758, %v1776
        %v1807 = vmul.f32 %v1759, %v1776
        %v1808 = vmul.f32 %v1760, %v1776
        %v1809 = vmul.f32 %v1761, %v1776
        %v1810 = vadd.f32 %v1585, %v1778
        %v1811 = vadd.f32 %v1586, %v1779
        %v1812 = vadd.f32 %v1587, %v1780
        %v1813 = vadd.f32 %v1588, %v1781
        %v1814 = vadd.f32 %v1589, %v1782
        %v1815 = vadd.f32 %v1590, %v1783
        %v1816 = vadd.f32 %v1591, %v1784
        %v1817 = vadd.f32 %v1592, %v1785
        %v1818 = vadd.f32 %v1593, %v1786
        %v1819 = vadd.f32 %v1594, %v1787
        %v1820 = vadd.f32 %v1595, %v1788
        %v1821 = vadd.f32 %v1596, %v1789
        %v1822 = vadd.f32 %v1597, %v1790
        %v1823 = vadd.f32 %v1598, %v1791
        %v1824 = vadd.f32 %v1599, %v1792
        %v1825 = vadd.f32 %v1600, %v1793
        %v1826 = vadd.f32 %v1601, %v1794
        %v1827 = vadd.f32 %v1602, %v1795
        %v1828 = vadd.f32 %v1603, %v1796
        %v1829 = vadd.f32 %v1604, %v1797
        %v1830 = vadd.f32 %v1605, %v1798
        %v1831 = vadd.f32 %v1606, %v1799
        %v1832 = vadd.f32 %v1607, %v1800
        %v1833 = vadd.f32 %v1608, %v1801
        %v1834 = vadd.f32 %v1609, %v1802
        %v1835 = vadd.f32 %v1610, %v1803
        %v1836 = vadd.f32 %v1611, %v1804
        %v1837 = vadd.f32 %v1612, %v1805
        %v1838 = vadd.f32 %v1613, %v1806
        %v1839 = vadd.f32 %v1614, %v1807
        %v1840 = vadd.f32 %v1615, %v1808
        %v1841 = vadd.f32 %v1616, %v1809
        %1842 = vrot.lane.b32.xlu0 %v275, 112
        %v1843 = vpop.permute.xlu0 %1842
        %1844 = vrot.lane.b32.xlu0 %v283, 112
        %v1845 = vpop.permute.xlu0 %1844
        %1846 = vrot.lane.b32.xlu0 %v291, 112
        %v1847 = vpop.permute.xlu0 %1846
        %1848 = vrot.lane.b32.xlu0 %v299, 112
        %v1849 = vpop.permute.xlu0 %1848
        %1850 = vrot.lane.b32.xlu0 %v276, 112
        %v1851 = vpop.permute.xlu0 %1850
        %1852 = vrot.lane.b32.xlu0 %v284, 112
        %v1853 = vpop.permute.xlu0 %1852
        %1854 = vrot.lane.b32.xlu0 %v292, 112
        %v1855 = vpop.permute.xlu0 %1854
        %1856 = vrot.lane.b32.xlu0 %v300, 112
        %v1857 = vpop.permute.xlu0 %1856
        %1858 = vrot.lane.b32.xlu0 %v277, 112
        %v1859 = vpop.permute.xlu0 %1858
        %1860 = vrot.lane.b32.xlu0 %v285, 112
        %v1861 = vpop.permute.xlu0 %1860
        %1862 = vrot.lane.b32.xlu0 %v293, 112
        %v1863 = vpop.permute.xlu0 %1862
        %1864 = vrot.lane.b32.xlu0 %v301, 112
        %v1865 = vpop.permute.xlu0 %1864
        %1866 = vrot.lane.b32.xlu0 %v278, 112
        %v1867 = vpop.permute.xlu0 %1866
        %1868 = vrot.lane.b32.xlu0 %v286, 112
        %v1869 = vpop.permute.xlu0 %1868
        %1870 = vrot.lane.b32.xlu0 %v294, 112
        %v1871 = vpop.permute.xlu0 %1870
        %1872 = vrot.lane.b32.xlu0 %v302, 112
        %v1873 = vpop.permute.xlu0 %1872
        %1874 = vrot.lane.b32.xlu0 %v279, 112
        %v1875 = vpop.permute.xlu0 %1874
        %1876 = vrot.lane.b32.xlu0 %v287, 112
        %v1877 = vpop.permute.xlu0 %1876
        %1878 = vrot.lane.b32.xlu0 %v295, 112
        %v1879 = vpop.permute.xlu0 %1878
        %1880 = vrot.lane.b32.xlu0 %v303, 112
        %v1881 = vpop.permute.xlu0 %1880
        %1882 = vrot.lane.b32.xlu0 %v280, 112
        %v1883 = vpop.permute.xlu0 %1882
        %1884 = vrot.lane.b32.xlu0 %v288, 112
        %v1885 = vpop.permute.xlu0 %1884
        %1886 = vrot.lane.b32.xlu0 %v296, 112
        %v1887 = vpop.permute.xlu0 %1886
        %1888 = vrot.lane.b32.xlu0 %v304, 112
        %v1889 = vpop.permute.xlu0 %1888
        %1890 = vrot.lane.b32.xlu0 %v281, 112
        %v1891 = vpop.permute.xlu0 %1890
        %1892 = vrot.lane.b32.xlu0 %v289, 112
        %v1893 = vpop.permute.xlu0 %1892
        %1894 = vrot.lane.b32.xlu0 %v297, 112
        %v1895 = vpop.permute.xlu0 %1894
        %1896 = vrot.lane.b32.xlu0 %v305, 112
        %v1897 = vpop.permute.xlu0 %1896
        %1898 = vrot.lane.b32.xlu0 %v282, 112
        %v1899 = vpop.permute.xlu0 %1898
        %1900 = vrot.lane.b32.xlu0 %v290, 112
        %v1901 = vpop.permute.xlu0 %1900
        %1902 = vrot.lane.b32.xlu0 %v298, 112
        %v1903 = vpop.permute.xlu0 %1902
        %1904 = vrot.lane.b32.xlu0 %v306, 112
        %v1905 = vpop.permute.xlu0 %1904
        %vm1906 = vcmp.lt.s32.totalorder %v308, 112
        %v1907 = vsel %vm1906, %v1891, %v1899
        %v1908 = vsel %vm1906, %v1893, %v1901
        %v1909 = vsel %vm1906, %v1895, %v1903
        %v1910 = vsel %vm1906, %v1897, %v1905
        %v1911 = vsel %vm1906, %v1883, %v1891
        %v1912 = vsel %vm1906, %v1885, %v1893
        %v1913 = vsel %vm1906, %v1887, %v1895
        %v1914 = vsel %vm1906, %v1889, %v1897
        %v1915 = vsel %vm1906, %v1875, %v1883
        %v1916 = vsel %vm1906, %v1877, %v1885
        %v1917 = vsel %vm1906, %v1879, %v1887
        %v1918 = vsel %vm1906, %v1881, %v1889
        %v1919 = vsel %vm1906, %v1867, %v1875
        %v1920 = vsel %vm1906, %v1869, %v1877
        %v1921 = vsel %vm1906, %v1871, %v1879
        %v1922 = vsel %vm1906, %v1873, %v1881
        %v1923 = vsel %vm1906, %v1859, %v1867
        %v1924 = vsel %vm1906, %v1861, %v1869
        %v1925 = vsel %vm1906, %v1863, %v1871
        %v1926 = vsel %vm1906, %v1865, %v1873
        %v1927 = vsel %vm1906, %v1851, %v1859
        %v1928 = vsel %vm1906, %v1853, %v1861
        %v1929 = vsel %vm1906, %v1855, %v1863
        %v1930 = vsel %vm1906, %v1857, %v1865
        %v1931 = vsel %vm1906, %v1843, %v1851
        %v1932 = vsel %vm1906, %v1845, %v1853
        %v1933 = vsel %vm1906, %v1847, %v1855
        %v1934 = vsel %vm1906, %v1849, %v1857
        %v1935 = vsel %vm1906, %v1899, %v1843
        %v1936 = vsel %vm1906, %v1901, %v1845
        %v1937 = vsel %vm1906, %v1903, %v1847
        %v1938 = vsel %vm1906, %v1905, %v1849
        %v1939 = vsel %vm372, 1, 0
        %v1940 = vsel %vm373, 1, 0
        %v1941 = vsel %vm374, 1, 0
        %v1942 = vsel %vm375, 1, 0
        %v1943 = vsel %vm376, 1, 0
        %v1944 = vsel %vm377, 1, 0
        %v1945 = vsel %vm378, 1, 0
        %v1946 = vsel %vm379, 1, 0
        %vm1947 = vcmp.eq.s32.totalorder %v1939, 1
        %vm1948 = vcmp.eq.s32.totalorder %v1940, 1
        %vm1949 = vcmp.eq.s32.totalorder %v1941, 1
        %vm1950 = vcmp.eq.s32.totalorder %v1942, 1
        %vm1951 = vcmp.eq.s32.totalorder %v1943, 1
        %vm1952 = vcmp.eq.s32.totalorder %v1944, 1
        %vm1953 = vcmp.eq.s32.totalorder %v1945, 1
        %vm1954 = vcmp.eq.s32.totalorder %v1946, 1
        %v1955 = vsel %vm1947, %v1931, 0.0
        %v1956 = vsel %vm1948, %v1927, 0.0
        %v1957 = vsel %vm1949, %v1923, 0.0
        %v1958 = vsel %vm1950, %v1919, 0.0
        %v1959 = vsel %vm1951, %v1915, 0.0
        %v1960 = vsel %vm1952, %v1911, 0.0
        %v1961 = vsel %vm1953, %v1907, 0.0
        %v1962 = vsel %vm1954, %v1935, 0.0
        %v1963 = vsel %vm1947, %v1932, 0.0
        %v1964 = vsel %vm1948, %v1928, 0.0
        %v1965 = vsel %vm1949, %v1924, 0.0
        %v1966 = vsel %vm1950, %v1920, 0.0
        %v1967 = vsel %vm1951, %v1916, 0.0
        %v1968 = vsel %vm1952, %v1912, 0.0
        %v1969 = vsel %vm1953, %v1908, 0.0
        %v1970 = vsel %vm1954, %v1936, 0.0
        %v1971 = vsel %vm1947, %v1933, 0.0
        %v1972 = vsel %vm1948, %v1929, 0.0
        %v1973 = vsel %vm1949, %v1925, 0.0
        %v1974 = vsel %vm1950, %v1921, 0.0
        %v1975 = vsel %vm1951, %v1917, 0.0
        %v1976 = vsel %vm1952, %v1913, 0.0
        %v1977 = vsel %vm1953, %v1909, 0.0
        %v1978 = vsel %vm1954, %v1937, 0.0
        %v1979 = vsel %vm1947, %v1934, 0.0
        %v1980 = vsel %vm1948, %v1930, 0.0
        %v1981 = vsel %vm1949, %v1926, 0.0
        %v1982 = vsel %vm1950, %v1922, 0.0
        %v1983 = vsel %vm1951, %v1918, 0.0
        %v1984 = vsel %vm1952, %v1914, 0.0
        %v1985 = vsel %vm1953, %v1910, 0.0
        %v1986 = vsel %vm1954, %v1938, 0.0
        %1987 = vset.pattern.permute.xlu0 7
        %1988 = vperm.xlu0 %1987, %v396
        %v1989 = vpop.permute.xlu0 %1988
        %1991 = vset.pattern.permute.xlu0 7
        %1992 = vperm.xlu0 %1991, %v397
        %v1993 = vpop.permute.xlu0 %1992
        %1995 = vset.pattern.permute.xlu0 7
        %1996 = vperm.xlu0 %1995, %v398
        %v1997 = vpop.permute.xlu0 %1996
        %1999 = vset.pattern.permute.xlu0 7
        %2000 = vperm.xlu0 %1999, %v399
        %v2001 = vpop.permute.xlu0 %2000
        %v2003 = vmul.f32 %v1955, %v1989
        %v2004 = vmul.f32 %v1956, %v1989
        %v2005 = vmul.f32 %v1957, %v1989
        %v2006 = vmul.f32 %v1958, %v1989
        %v2007 = vmul.f32 %v1959, %v1989
        %v2008 = vmul.f32 %v1960, %v1989
        %v2009 = vmul.f32 %v1961, %v1989
        %v2010 = vmul.f32 %v1962, %v1989
        %v2011 = vmul.f32 %v1963, %v1993
        %v2012 = vmul.f32 %v1964, %v1993
        %v2013 = vmul.f32 %v1965, %v1993
        %v2014 = vmul.f32 %v1966, %v1993
        %v2015 = vmul.f32 %v1967, %v1993
        %v2016 = vmul.f32 %v1968, %v1993
        %v2017 = vmul.f32 %v1969, %v1993
        %v2018 = vmul.f32 %v1970, %v1993
        %v2019 = vmul.f32 %v1971, %v1997
        %v2020 = vmul.f32 %v1972, %v1997
        %v2021 = vmul.f32 %v1973, %v1997
        %v2022 = vmul.f32 %v1974, %v1997
        %v2023 = vmul.f32 %v1975, %v1997
        %v2024 = vmul.f32 %v1976, %v1997
        %v2025 = vmul.f32 %v1977, %v1997
        %v2026 = vmul.f32 %v1978, %v1997
        %v2027 = vmul.f32 %v1979, %v2001
        %v2028 = vmul.f32 %v1980, %v2001
        %v2029 = vmul.f32 %v1981, %v2001
        %v2030 = vmul.f32 %v1982, %v2001
        %v2031 = vmul.f32 %v1983, %v2001
        %v2032 = vmul.f32 %v1984, %v2001
        %v2033 = vmul.f32 %v1985, %v2001
        %v2034 = vmul.f32 %v1986, %v2001
        %v2035 = vadd.f32 %v1810, %v2003
        %v2036 = vadd.f32 %v1811, %v2004
        %v2037 = vadd.f32 %v1812, %v2005
        %v2038 = vadd.f32 %v1813, %v2006
        %v2039 = vadd.f32 %v1814, %v2007
        %v2040 = vadd.f32 %v1815, %v2008
        %v2041 = vadd.f32 %v1816, %v2009
        %v2042 = vadd.f32 %v1817, %v2010
        %v2043 = vadd.f32 %v1818, %v2011
        %v2044 = vadd.f32 %v1819, %v2012
        %v2045 = vadd.f32 %v1820, %v2013
        %v2046 = vadd.f32 %v1821, %v2014
        %v2047 = vadd.f32 %v1822, %v2015
        %v2048 = vadd.f32 %v1823, %v2016
        %v2049 = vadd.f32 %v1824, %v2017
        %v2050 = vadd.f32 %v1825, %v2018
        %v2051 = vadd.f32 %v1826, %v2019
        %v2052 = vadd.f32 %v1827, %v2020
        %v2053 = vadd.f32 %v1828, %v2021
        %v2054 = vadd.f32 %v1829, %v2022
        %v2055 = vadd.f32 %v1830, %v2023
        %v2056 = vadd.f32 %v1831, %v2024
        %v2057 = vadd.f32 %v1832, %v2025
        %v2058 = vadd.f32 %v1833, %v2026
        %v2059 = vadd.f32 %v1834, %v2027
        %v2060 = vadd.f32 %v1835, %v2028
        %v2061 = vadd.f32 %v1836, %v2029
        %v2062 = vadd.f32 %v1837, %v2030
        %v2063 = vadd.f32 %v1838, %v2031
        %v2064 = vadd.f32 %v1839, %v2032
        %v2065 = vadd.f32 %v1840, %v2033
        %v2066 = vadd.f32 %v1841, %v2034
        %2067 = vrot.lane.b32.xlu0 %v275, 111
        %v2068 = vpop.permute.xlu0 %2067
        %2069 = vrot.lane.b32.xlu0 %v283, 111
        %v2070 = vpop.permute.xlu0 %2069
        %2071 = vrot.lane.b32.xlu0 %v291, 111
        %v2072 = vpop.permute.xlu0 %2071
        %2073 = vrot.lane.b32.xlu0 %v299, 111
        %v2074 = vpop.permute.xlu0 %2073
        %2075 = vrot.lane.b32.xlu0 %v276, 111
        %v2076 = vpop.permute.xlu0 %2075
        %2077 = vrot.lane.b32.xlu0 %v284, 111
        %v2078 = vpop.permute.xlu0 %2077
        %2079 = vrot.lane.b32.xlu0 %v292, 111
        %v2080 = vpop.permute.xlu0 %2079
        %2081 = vrot.lane.b32.xlu0 %v300, 111
        %v2082 = vpop.permute.xlu0 %2081
        %2083 = vrot.lane.b32.xlu0 %v277, 111
        %v2084 = vpop.permute.xlu0 %2083
        %2085 = vrot.lane.b32.xlu0 %v285, 111
        %v2086 = vpop.permute.xlu0 %2085
        %2087 = vrot.lane.b32.xlu0 %v293, 111
        %v2088 = vpop.permute.xlu0 %2087
        %2089 = vrot.lane.b32.xlu0 %v301, 111
        %v2090 = vpop.permute.xlu0 %2089
        %2091 = vrot.lane.b32.xlu0 %v278, 111
        %v2092 = vpop.permute.xlu0 %2091
        %2093 = vrot.lane.b32.xlu0 %v286, 111
        %v2094 = vpop.permute.xlu0 %2093
        %2095 = vrot.lane.b32.xlu0 %v294, 111
        %v2096 = vpop.permute.xlu0 %2095
        %2097 = vrot.lane.b32.xlu0 %v302, 111
        %v2098 = vpop.permute.xlu0 %2097
        %2099 = vrot.lane.b32.xlu0 %v279, 111
        %v2100 = vpop.permute.xlu0 %2099
        %2101 = vrot.lane.b32.xlu0 %v287, 111
        %v2102 = vpop.permute.xlu0 %2101
        %2103 = vrot.lane.b32.xlu0 %v295, 111
        %v2104 = vpop.permute.xlu0 %2103
        %2105 = vrot.lane.b32.xlu0 %v303, 111
        %v2106 = vpop.permute.xlu0 %2105
        %2107 = vrot.lane.b32.xlu0 %v280, 111
        %v2108 = vpop.permute.xlu0 %2107
        %2109 = vrot.lane.b32.xlu0 %v288, 111
        %v2110 = vpop.permute.xlu0 %2109
        %2111 = vrot.lane.b32.xlu0 %v296, 111
        %v2112 = vpop.permute.xlu0 %2111
        %2113 = vrot.lane.b32.xlu0 %v304, 111
        %v2114 = vpop.permute.xlu0 %2113
        %2115 = vrot.lane.b32.xlu0 %v281, 111
        %v2116 = vpop.permute.xlu0 %2115
        %2117 = vrot.lane.b32.xlu0 %v289, 111
        %v2118 = vpop.permute.xlu0 %2117
        %2119 = vrot.lane.b32.xlu0 %v297, 111
        %v2120 = vpop.permute.xlu0 %2119
        %2121 = vrot.lane.b32.xlu0 %v305, 111
        %v2122 = vpop.permute.xlu0 %2121
        %2123 = vrot.lane.b32.xlu0 %v282, 111
        %v2124 = vpop.permute.xlu0 %2123
        %2125 = vrot.lane.b32.xlu0 %v290, 111
        %v2126 = vpop.permute.xlu0 %2125
        %2127 = vrot.lane.b32.xlu0 %v298, 111
        %v2128 = vpop.permute.xlu0 %2127
        %2129 = vrot.lane.b32.xlu0 %v306, 111
        %v2130 = vpop.permute.xlu0 %2129
        %vm2131 = vcmp.lt.s32.totalorder %v308, 111
        %v2132 = vsel %vm2131, %v2116, %v2124
        %v2133 = vsel %vm2131, %v2118, %v2126
        %v2134 = vsel %vm2131, %v2120, %v2128
        %v2135 = vsel %vm2131, %v2122, %v2130
        %v2136 = vsel %vm2131, %v2108, %v2116
        %v2137 = vsel %vm2131, %v2110, %v2118
        %v2138 = vsel %vm2131, %v2112, %v2120
        %v2139 = vsel %vm2131, %v2114, %v2122
        %v2140 = vsel %vm2131, %v2100, %v2108
        %v2141 = vsel %vm2131, %v2102, %v2110
        %v2142 = vsel %vm2131, %v2104, %v2112
        %v2143 = vsel %vm2131, %v2106, %v2114
        %v2144 = vsel %vm2131, %v2092, %v2100
        %v2145 = vsel %vm2131, %v2094, %v2102
        %v2146 = vsel %vm2131, %v2096, %v2104
        %v2147 = vsel %vm2131, %v2098, %v2106
        %v2148 = vsel %vm2131, %v2084, %v2092
        %v2149 = vsel %vm2131, %v2086, %v2094
        %v2150 = vsel %vm2131, %v2088, %v2096
        %v2151 = vsel %vm2131, %v2090, %v2098
        %v2152 = vsel %vm2131, %v2076, %v2084
        %v2153 = vsel %vm2131, %v2078, %v2086
        %v2154 = vsel %vm2131, %v2080, %v2088
        %v2155 = vsel %vm2131, %v2082, %v2090
        %v2156 = vsel %vm2131, %v2068, %v2076
        %v2157 = vsel %vm2131, %v2070, %v2078
        %v2158 = vsel %vm2131, %v2072, %v2080
        %v2159 = vsel %vm2131, %v2074, %v2082
        %v2160 = vsel %vm2131, %v2124, %v2068
        %v2161 = vsel %vm2131, %v2126, %v2070
        %v2162 = vsel %vm2131, %v2128, %v2072
        %v2163 = vsel %vm2131, %v2130, %v2074
        %v2164 = vsel %vm388, 1, 0
        %v2165 = vsel %vm389, 1, 0
        %v2166 = vsel %vm390, 1, 0
        %v2167 = vsel %vm391, 1, 0
        %v2168 = vsel %vm392, 1, 0
        %v2169 = vsel %vm393, 1, 0
        %v2170 = vsel %vm394, 1, 0
        %v2171 = vsel %vm395, 1, 0
        %vm2172 = vcmp.eq.s32.totalorder %v2164, 1
        %vm2173 = vcmp.eq.s32.totalorder %v2165, 1
        %vm2174 = vcmp.eq.s32.totalorder %v2166, 1
        %vm2175 = vcmp.eq.s32.totalorder %v2167, 1
        %vm2176 = vcmp.eq.s32.totalorder %v2168, 1
        %vm2177 = vcmp.eq.s32.totalorder %v2169, 1
        %vm2178 = vcmp.eq.s32.totalorder %v2170, 1
        %vm2179 = vcmp.eq.s32.totalorder %v2171, 1
        %v2180 = vsel %vm2172, %v2156, 0.0
        %v2181 = vsel %vm2173, %v2152, 0.0
        %v2182 = vsel %vm2174, %v2148, 0.0
        %v2183 = vsel %vm2175, %v2144, 0.0
        %v2184 = vsel %vm2176, %v2140, 0.0
        %v2185 = vsel %vm2177, %v2136, 0.0
        %v2186 = vsel %vm2178, %v2132, 0.0
        %v2187 = vsel %vm2179, %v2160, 0.0
        %v2188 = vsel %vm2172, %v2157, 0.0
        %v2189 = vsel %vm2173, %v2153, 0.0
        %v2190 = vsel %vm2174, %v2149, 0.0
        %v2191 = vsel %vm2175, %v2145, 0.0
        %v2192 = vsel %vm2176, %v2141, 0.0
        %v2193 = vsel %vm2177, %v2137, 0.0
        %v2194 = vsel %vm2178, %v2133, 0.0
        %v2195 = vsel %vm2179, %v2161, 0.0
        %v2196 = vsel %vm2172, %v2158, 0.0
        %v2197 = vsel %vm2173, %v2154, 0.0
        %v2198 = vsel %vm2174, %v2150, 0.0
        %v2199 = vsel %vm2175, %v2146, 0.0
        %v2200 = vsel %vm2176, %v2142, 0.0
        %v2201 = vsel %vm2177, %v2138, 0.0
        %v2202 = vsel %vm2178, %v2134, 0.0
        %v2203 = vsel %vm2179, %v2162, 0.0
        %v2204 = vsel %vm2172, %v2159, 0.0
        %v2205 = vsel %vm2173, %v2155, 0.0
        %v2206 = vsel %vm2174, %v2151, 0.0
        %v2207 = vsel %vm2175, %v2147, 0.0
        %v2208 = vsel %vm2176, %v2143, 0.0
        %v2209 = vsel %vm2177, %v2139, 0.0
        %v2210 = vsel %vm2178, %v2135, 0.0
        %v2211 = vsel %vm2179, %v2163, 0.0
        %2212 = vset.pattern.permute.xlu0 8
        %2213 = vperm.xlu0 %2212, %v396
        %v2214 = vpop.permute.xlu0 %2213
        %2216 = vset.pattern.permute.xlu0 8
        %2217 = vperm.xlu0 %2216, %v397
        %v2218 = vpop.permute.xlu0 %2217
        %2220 = vset.pattern.permute.xlu0 8
        %2221 = vperm.xlu0 %2220, %v398
        %v2222 = vpop.permute.xlu0 %2221
        %2224 = vset.pattern.permute.xlu0 8
        %2225 = vperm.xlu0 %2224, %v399
        %v2226 = vpop.permute.xlu0 %2225
        %v2228 = vmul.f32 %v2180, %v2214
        %v2229 = vmul.f32 %v2181, %v2214
        %v2230 = vmul.f32 %v2182, %v2214
        %v2231 = vmul.f32 %v2183, %v2214
        %v2232 = vmul.f32 %v2184, %v2214
        %v2233 = vmul.f32 %v2185, %v2214
        %v2234 = vmul.f32 %v2186, %v2214
        %v2235 = vmul.f32 %v2187, %v2214
        %v2236 = vmul.f32 %v2188, %v2218
        %v2237 = vmul.f32 %v2189, %v2218
        %v2238 = vmul.f32 %v2190, %v2218
        %v2239 = vmul.f32 %v2191, %v2218
        %v2240 = vmul.f32 %v2192, %v2218
        %v2241 = vmul.f32 %v2193, %v2218
        %v2242 = vmul.f32 %v2194, %v2218
        %v2243 = vmul.f32 %v2195, %v2218
        %v2244 = vmul.f32 %v2196, %v2222
        %v2245 = vmul.f32 %v2197, %v2222
        %v2246 = vmul.f32 %v2198, %v2222
        %v2247 = vmul.f32 %v2199, %v2222
        %v2248 = vmul.f32 %v2200, %v2222
        %v2249 = vmul.f32 %v2201, %v2222
        %v2250 = vmul.f32 %v2202, %v2222
        %v2251 = vmul.f32 %v2203, %v2222
        %v2252 = vmul.f32 %v2204, %v2226
        %v2253 = vmul.f32 %v2205, %v2226
        %v2254 = vmul.f32 %v2206, %v2226
        %v2255 = vmul.f32 %v2207, %v2226
        %v2256 = vmul.f32 %v2208, %v2226
        %v2257 = vmul.f32 %v2209, %v2226
        %v2258 = vmul.f32 %v2210, %v2226
        %v2259 = vmul.f32 %v2211, %v2226
        %v2260 = vadd.f32 %v2035, %v2228
        %v2261 = vadd.f32 %v2036, %v2229
        %v2262 = vadd.f32 %v2037, %v2230
        %v2263 = vadd.f32 %v2038, %v2231
        %v2264 = vadd.f32 %v2039, %v2232
        %v2265 = vadd.f32 %v2040, %v2233
        %v2266 = vadd.f32 %v2041, %v2234
        %v2267 = vadd.f32 %v2042, %v2235
        %v2268 = vadd.f32 %v2043, %v2236
        %v2269 = vadd.f32 %v2044, %v2237
        %v2270 = vadd.f32 %v2045, %v2238
        %v2271 = vadd.f32 %v2046, %v2239
        %v2272 = vadd.f32 %v2047, %v2240
        %v2273 = vadd.f32 %v2048, %v2241
        %v2274 = vadd.f32 %v2049, %v2242
        %v2275 = vadd.f32 %v2050, %v2243
        %v2276 = vadd.f32 %v2051, %v2244
        %v2277 = vadd.f32 %v2052, %v2245
        %v2278 = vadd.f32 %v2053, %v2246
        %v2279 = vadd.f32 %v2054, %v2247
        %v2280 = vadd.f32 %v2055, %v2248
        %v2281 = vadd.f32 %v2056, %v2249
        %v2282 = vadd.f32 %v2057, %v2250
        %v2283 = vadd.f32 %v2058, %v2251
        %v2284 = vadd.f32 %v2059, %v2252
        %v2285 = vadd.f32 %v2060, %v2253
        %v2286 = vadd.f32 %v2061, %v2254
        %v2287 = vadd.f32 %v2062, %v2255
        %v2288 = vadd.f32 %v2063, %v2256
        %v2289 = vadd.f32 %v2064, %v2257
        %v2290 = vadd.f32 %v2065, %v2258
        %v2291 = vadd.f32 %v2066, %v2259
        %2293 = vset.pattern.permute.xlu0 0
        %2294 = vperm.xlu0 %2293, %v400
        %v2295 = vpop.permute.xlu0 %2294
        %2298 = vset.pattern.permute.xlu0 0
        %2299 = vperm.xlu0 %2298, %v401
        %v2300 = vpop.permute.xlu0 %2299
        %2303 = vset.pattern.permute.xlu0 0
        %2304 = vperm.xlu0 %2303, %v402
        %v2305 = vpop.permute.xlu0 %2304
        %2308 = vset.pattern.permute.xlu0 0
        %2309 = vperm.xlu0 %2308, %v403
        %v2310 = vpop.permute.xlu0 %2309
        %v2312 = vadd.f32 %v2260, %v2295
        %v2313 = vadd.f32 %v2261, %v2295
        %v2314 = vadd.f32 %v2262, %v2295
        %v2315 = vadd.f32 %v2263, %v2295
        %v2316 = vadd.f32 %v2264, %v2295
        %v2317 = vadd.f32 %v2265, %v2295
        %v2318 = vadd.f32 %v2266, %v2295
        %v2319 = vadd.f32 %v2267, %v2295
        %v2320 = vadd.f32 %v2268, %v2300
        %v2321 = vadd.f32 %v2269, %v2300
        %v2322 = vadd.f32 %v2270, %v2300
        %v2323 = vadd.f32 %v2271, %v2300
        %v2324 = vadd.f32 %v2272, %v2300
        %v2325 = vadd.f32 %v2273, %v2300
        %v2326 = vadd.f32 %v2274, %v2300
        %v2327 = vadd.f32 %v2275, %v2300
        %v2328 = vadd.f32 %v2276, %v2305
        %v2329 = vadd.f32 %v2277, %v2305
        %v2330 = vadd.f32 %v2278, %v2305
        %v2331 = vadd.f32 %v2279, %v2305
        %v2332 = vadd.f32 %v2280, %v2305
        %v2333 = vadd.f32 %v2281, %v2305
        %v2334 = vadd.f32 %v2282, %v2305
        %v2335 = vadd.f32 %v2283, %v2305
        %v2336 = vadd.f32 %v2284, %v2310
        %v2337 = vadd.f32 %v2285, %v2310
        %v2338 = vadd.f32 %v2286, %v2310
        %v2339 = vadd.f32 %v2287, %v2310
        %v2340 = vadd.f32 %v2288, %v2310
        %v2341 = vadd.f32 %v2289, %v2310
        %v2342 = vadd.f32 %v2290, %v2310
        %v2343 = vadd.f32 %v2291, %v2310
        %v2344 = vmax.f32 %v2312, 0.0
        %v2345 = vmax.f32 %v2313, 0.0
        %v2346 = vmax.f32 %v2314, 0.0
        %v2347 = vmax.f32 %v2315, 0.0
        %v2348 = vmax.f32 %v2316, 0.0
        %v2349 = vmax.f32 %v2317, 0.0
        %v2350 = vmax.f32 %v2318, 0.0
        %v2351 = vmax.f32 %v2319, 0.0
        %v2352 = vmax.f32 %v2320, 0.0
        %v2353 = vmax.f32 %v2321, 0.0
        %v2354 = vmax.f32 %v2322, 0.0
        %v2355 = vmax.f32 %v2323, 0.0
        %v2356 = vmax.f32 %v2324, 0.0
        %v2357 = vmax.f32 %v2325, 0.0
        %v2358 = vmax.f32 %v2326, 0.0
        %v2359 = vmax.f32 %v2327, 0.0
        %v2360 = vmax.f32 %v2328, 0.0
        %v2361 = vmax.f32 %v2329, 0.0
        %v2362 = vmax.f32 %v2330, 0.0
        %v2363 = vmax.f32 %v2331, 0.0
        %v2364 = vmax.f32 %v2332, 0.0
        %v2365 = vmax.f32 %v2333, 0.0
        %v2366 = vmax.f32 %v2334, 0.0
        %v2367 = vmax.f32 %v2335, 0.0
        %v2368 = vmax.f32 %v2336, 0.0
        %v2369 = vmax.f32 %v2337, 0.0
        %v2370 = vmax.f32 %v2338, 0.0
        %v2371 = vmax.f32 %v2339, 0.0
        %v2372 = vmax.f32 %v2340, 0.0
        %v2373 = vmax.f32 %v2341, 0.0
        %v2374 = vmax.f32 %v2342, 0.0
        %v2375 = vmax.f32 %v2343, 0.0
        %v2376 = vpack.c.bf16 %v2352, %v2344
        %v2377 = vpack.c.bf16 %v2353, %v2345
        %v2378 = vpack.c.bf16 %v2354, %v2346
        %v2379 = vpack.c.bf16 %v2355, %v2347
        %v2380 = vpack.c.bf16 %v2356, %v2348
        %v2381 = vpack.c.bf16 %v2357, %v2349
        %v2382 = vpack.c.bf16 %v2358, %v2350
        %v2383 = vpack.c.bf16 %v2359, %v2351
        %v2384 = vpack.c.bf16 %v2368, %v2360
        %v2385 = vpack.c.bf16 %v2369, %v2361
        %v2386 = vpack.c.bf16 %v2370, %v2362
        %v2387 = vpack.c.bf16 %v2371, %v2363
        %v2388 = vpack.c.bf16 %v2372, %v2364
        %v2389 = vpack.c.bf16 %v2373, %v2365
        %v2390 = vpack.c.bf16 %v2374, %v2366
        %v2391 = vpack.c.bf16 %v2375, %v2367
        %2392 = vset.pattern.permute.xlu0 1
        %2393 = vperm.xlu0 %2392, %v400
        %v2394 = vpop.permute.xlu0 %2393
        %2396 = vset.pattern.permute.xlu0 1
        %2397 = vperm.xlu0 %2396, %v401
        %v2398 = vpop.permute.xlu0 %2397
        %2400 = vset.pattern.permute.xlu0 1
        %2401 = vperm.xlu0 %2400, %v402
        %v2402 = vpop.permute.xlu0 %2401
        %2404 = vset.pattern.permute.xlu0 1
        %2405 = vperm.xlu0 %2404, %v403
        %v2406 = vpop.permute.xlu0 %2405
        %v2412 = vunpack.c.l.b16 %v404
        %v2413 = vunpack.c.l.b16 %v405
        %v2414 = vunpack.c.l.b16 %v406
        %v2415 = vunpack.c.l.b16 %v407
        %v2416 = vpack.c.b16 %v2413, %v2412
        %v2417 = vpack.c.b16 %v2415, %v2414
        %vm2418 = vcmask 261120
        %v2420 = vsel %vm2418, %v2416, 0
        %v2423 = vsel %vm2418, %v2417, 0
        %2425 = vmatpush.bf16.msra.mxu0 0
        %2426 = vmatpush.bf16.msra.mxu0 0
        %2427 = vmatpush.bf16.msra.mxu0 0
        %2428 = vmatpush.bf16.msra.mxu0 0
        %2429 = vmatpush.bf16.msra.mxu0 0
        %2430 = vmatpush.bf16.msra.mxu0 0
        %2431 = vmatpush.bf16.msra.mxu0 %v2384
        %2432 = vmatpush.bf16.msra.mxu0 %v2376
        %2433 = vmatmul.bf16.gmra.mxu0 %v2420
        %v2434 = vpop.f32.mrf.mxu0
        %v2435 = vadd.f32 %v2394, %v2434
        %v2436 = vpop.f32.mrf.mxu0
        %v2437 = vadd.f32 %v2398, %v2436
        %2438 = vmatmul.bf16.gmra.mxu0 %v2423
        %v2439 = vpop.f32.mrf.mxu0
        %v2440 = vadd.f32 %v2402, %v2439
        %v2441 = vpop.f32.mrf.mxu0
        %v2442 = vadd.f32 %v2406, %v2441
        %2443 = vdwg.mxu0
        %2444 = vmatpush.bf16.msra.mxu0 0
        %2445 = vmatpush.bf16.msra.mxu0 0
        %2446 = vmatpush.bf16.msra.mxu0 0
        %2447 = vmatpush.bf16.msra.mxu0 0
        %2448 = vmatpush.bf16.msra.mxu0 0
        %2449 = vmatpush.bf16.msra.mxu0 0
        %2450 = vmatpush.bf16.msra.mxu0 %v2385
        %2451 = vmatpush.bf16.msra.mxu0 %v2377
        %2452 = vmatmul.bf16.gmra.mxu0 %v2420
        %v2453 = vpop.f32.mrf.mxu0
        %v2454 = vadd.f32 %v2394, %v2453
        %v2455 = vpop.f32.mrf.mxu0
        %v2456 = vadd.f32 %v2398, %v2455
        %2457 = vmatmul.bf16.gmra.mxu0 %v2423
        %v2458 = vpop.f32.mrf.mxu0
        %v2459 = vadd.f32 %v2402, %v2458
        %v2460 = vpop.f32.mrf.mxu0
        %v2461 = vadd.f32 %v2406, %v2460
        %2462 = vdwg.mxu0
        %2463 = vmatpush.bf16.msra.mxu0 0
        %2464 = vmatpush.bf16.msra.mxu0 0
        %2465 = vmatpush.bf16.msra.mxu0 0
        %2466 = vmatpush.bf16.msra.mxu0 0
        %2467 = vmatpush.bf16.msra.mxu0 0
        %2468 = vmatpush.bf16.msra.mxu0 0
        %2469 = vmatpush.bf16.msra.mxu0 %v2386
        %2470 = vmatpush.bf16.msra.mxu0 %v2378
        %2471 = vmatmul.bf16.gmra.mxu0 %v2420
        %v2472 = vpop.f32.mrf.mxu0
        %v2473 = vadd.f32 %v2394, %v2472
        %v2474 = vpop.f32.mrf.mxu0
        %v2475 = vadd.f32 %v2398, %v2474
        %2476 = vmatmul.bf16.gmra.mxu0 %v2423
        %v2477 = vpop.f32.mrf.mxu0
        %v2478 = vadd.f32 %v2402, %v2477
        %v2479 = vpop.f32.mrf.mxu0
        %v2480 = vadd.f32 %v2406, %v2479
        %2481 = vdwg.mxu0
        %2482 = vmatpush.bf16.msra.mxu0 0
        %2483 = vmatpush.bf16.msra.mxu0 0
        %2484 = vmatpush.bf16.msra.mxu0 0
        %2485 = vmatpush.bf16.msra.mxu0 0
        %2486 = vmatpush.bf16.msra.mxu0 0
        %2487 = vmatpush.bf16.msra.mxu0 0
        %2488 = vmatpush.bf16.msra.mxu0 %v2387
        %2489 = vmatpush.bf16.msra.mxu0 %v2379
        %2490 = vmatmul.bf16.gmra.mxu0 %v2420
        %v2491 = vpop.f32.mrf.mxu0
        %v2492 = vadd.f32 %v2394, %v2491
        %v2493 = vpop.f32.mrf.mxu0
        %v2494 = vadd.f32 %v2398, %v2493
        %2495 = vmatmul.bf16.gmra.mxu0 %v2423
        %v2496 = vpop.f32.mrf.mxu0
        %v2497 = vadd.f32 %v2402, %v2496
        %v2498 = vpop.f32.mrf.mxu0
        %v2499 = vadd.f32 %v2406, %v2498
        %2500 = vdwg.mxu0
        %2501 = vmatpush.bf16.msra.mxu0 0
        %2502 = vmatpush.bf16.msra.mxu0 0
        %2503 = vmatpush.bf16.msra.mxu0 0
        %2504 = vmatpush.bf16.msra.mxu0 0
        %2505 = vmatpush.bf16.msra.mxu0 0
        %2506 = vmatpush.bf16.msra.mxu0 0
        %2507 = vmatpush.bf16.msra.mxu0 %v2388
        %2508 = vmatpush.bf16.msra.mxu0 %v2380
        %2509 = vmatmul.bf16.gmra.mxu0 %v2420
        %v2510 = vpop.f32.mrf.mxu0
        %v2511 = vadd.f32 %v2394, %v2510
        %v2512 = vpop.f32.mrf.mxu0
        %v2513 = vadd.f32 %v2398, %v2512
        %2514 = vmatmul.bf16.gmra.mxu0 %v2423
        %v2515 = vpop.f32.mrf.mxu0
        %v2516 = vadd.f32 %v2402, %v2515
        %v2517 = vpop.f32.mrf.mxu0
        %v2518 = vadd.f32 %v2406, %v2517
        %2519 = vdwg.mxu0
        %2520 = vmatpush.bf16.msra.mxu0 0
        %2521 = vmatpush.bf16.msra.mxu0 0
        %2522 = vmatpush.bf16.msra.mxu0 0
        %2523 = vmatpush.bf16.msra.mxu0 0
        %2524 = vmatpush.bf16.msra.mxu0 0
        %2525 = vmatpush.bf16.msra.mxu0 0
        %2526 = vmatpush.bf16.msra.mxu0 %v2389
        %2527 = vmatpush.bf16.msra.mxu0 %v2381
        %2528 = vmatmul.bf16.gmra.mxu0 %v2420
        %v2529 = vpop.f32.mrf.mxu0
        %v2530 = vadd.f32 %v2394, %v2529
        %v2531 = vpop.f32.mrf.mxu0
        %v2532 = vadd.f32 %v2398, %v2531
        %2533 = vmatmul.bf16.gmra.mxu0 %v2423
        %v2534 = vpop.f32.mrf.mxu0
        %v2535 = vadd.f32 %v2402, %v2534
        %v2536 = vpop.f32.mrf.mxu0
        %v2537 = vadd.f32 %v2406, %v2536
        %2538 = vdwg.mxu0
        %2539 = vmatpush.bf16.msra.mxu0 0
        %2540 = vmatpush.bf16.msra.mxu0 0
        %2541 = vmatpush.bf16.msra.mxu0 0
        %2542 = vmatpush.bf16.msra.mxu0 0
        %2543 = vmatpush.bf16.msra.mxu0 0
        %2544 = vmatpush.bf16.msra.mxu0 0
        %2545 = vmatpush.bf16.msra.mxu0 %v2390
        %2546 = vmatpush.bf16.msra.mxu0 %v2382
        %2547 = vmatmul.bf16.gmra.mxu0 %v2420
        %v2548 = vpop.f32.mrf.mxu0
        %v2549 = vadd.f32 %v2394, %v2548
        %v2550 = vpop.f32.mrf.mxu0
        %v2551 = vadd.f32 %v2398, %v2550
        %2552 = vmatmul.bf16.gmra.mxu0 %v2423
        %v2553 = vpop.f32.mrf.mxu0
        %v2554 = vadd.f32 %v2402, %v2553
        %v2555 = vpop.f32.mrf.mxu0
        %v2556 = vadd.f32 %v2406, %v2555
        %2557 = vdwg.mxu0
        %2558 = vmatpush.bf16.msra.mxu0 0
        %2559 = vmatpush.bf16.msra.mxu0 0
        %2560 = vmatpush.bf16.msra.mxu0 0
        %2561 = vmatpush.bf16.msra.mxu0 0
        %2562 = vmatpush.bf16.msra.mxu0 0
        %2563 = vmatpush.bf16.msra.mxu0 0
        %2564 = vmatpush.bf16.msra.mxu0 %v2391
        %2565 = vmatpush.bf16.msra.mxu0 %v2383
        %2566 = vmatmul.bf16.gmra.mxu0 %v2420
        %v2567 = vpop.f32.mrf.mxu0
        %v2568 = vadd.f32 %v2394, %v2567
        %v2569 = vpop.f32.mrf.mxu0
        %v2570 = vadd.f32 %v2398, %v2569
        %2571 = vmatmul.bf16.gmra.mxu0 %v2423
        %v2572 = vpop.f32.mrf.mxu0
        %v2573 = vadd.f32 %v2402, %v2572
        %v2574 = vpop.f32.mrf.mxu0
        %v2575 = vadd.f32 %v2406, %v2574
        %2576 = vdwg.mxu0
        %v2577 = vmax.f32 %v2435, 0.0
        %v2578 = vmax.f32 %v2454, 0.0
        %v2579 = vmax.f32 %v2473, 0.0
        %v2580 = vmax.f32 %v2492, 0.0
        %v2581 = vmax.f32 %v2511, 0.0
        %v2582 = vmax.f32 %v2530, 0.0
        %v2583 = vmax.f32 %v2549, 0.0
        %v2584 = vmax.f32 %v2568, 0.0
        %v2585 = vmax.f32 %v2437, 0.0
        %v2586 = vmax.f32 %v2456, 0.0
        %v2587 = vmax.f32 %v2475, 0.0
        %v2588 = vmax.f32 %v2494, 0.0
        %v2589 = vmax.f32 %v2513, 0.0
        %v2590 = vmax.f32 %v2532, 0.0
        %v2591 = vmax.f32 %v2551, 0.0
        %v2592 = vmax.f32 %v2570, 0.0
        %v2593 = vmax.f32 %v2440, 0.0
        %v2594 = vmax.f32 %v2459, 0.0
        %v2595 = vmax.f32 %v2478, 0.0
        %v2596 = vmax.f32 %v2497, 0.0
        %v2597 = vmax.f32 %v2516, 0.0
        %v2598 = vmax.f32 %v2535, 0.0
        %v2599 = vmax.f32 %v2554, 0.0
        %v2600 = vmax.f32 %v2573, 0.0
        %v2601 = vmax.f32 %v2442, 0.0
        %v2602 = vmax.f32 %v2461, 0.0
        %v2603 = vmax.f32 %v2480, 0.0
        %v2604 = vmax.f32 %v2499, 0.0
        %v2605 = vmax.f32 %v2518, 0.0
        %v2606 = vmax.f32 %v2537, 0.0
        %v2607 = vmax.f32 %v2556, 0.0
        %v2608 = vmax.f32 %v2575, 0.0
        %s2609 = scalar_lea.vmem %s1, 32
        %v2610 = vld [vmem:[%s2609] sm:$0xff]
        %v2611 = vld [vmem:[%s2609 + $0x8] sm:$0xff]
        %v2612 = vld [vmem:[%s2609 + $0x10] sm:$0xff]
        %v2613 = vld [vmem:[%s2609 + $0x18] sm:$0xff]
        %s2614 = scalar_lea.vmem %s3, 16
        %v2615 = vld [vmem:[%s2614] sm:$0xf]
        %v2616 = vld [vmem:[%s2614 + $0x4] sm:$0xf]
        %v2617 = vld [vmem:[%s2614 + $0x8] sm:$0xf]
        %v2618 = vld [vmem:[%s2614 + $0xc] sm:$0xf]
        %2619 = vrot.lane.b32.xlu0 %v2577, 17
        %v2620 = vpop.permute.xlu0 %2619
        %2621 = vrot.lane.b32.xlu0 %v2585, 17
        %v2622 = vpop.permute.xlu0 %2621
        %2623 = vrot.lane.b32.xlu0 %v2593, 17
        %v2624 = vpop.permute.xlu0 %2623
        %2625 = vrot.lane.b32.xlu0 %v2601, 17
        %v2626 = vpop.permute.xlu0 %2625
        %2627 = vrot.lane.b32.xlu0 %v2578, 17
        %v2628 = vpop.permute.xlu0 %2627
        %2629 = vrot.lane.b32.xlu0 %v2586, 17
        %v2630 = vpop.permute.xlu0 %2629
        %2631 = vrot.lane.b32.xlu0 %v2594, 17
        %v2632 = vpop.permute.xlu0 %2631
        %2633 = vrot.lane.b32.xlu0 %v2602, 17
        %v2634 = vpop.permute.xlu0 %2633
        %2635 = vrot.lane.b32.xlu0 %v2579, 17
        %v2636 = vpop.permute.xlu0 %2635
        %2637 = vrot.lane.b32.xlu0 %v2587, 17
        %v2638 = vpop.permute.xlu0 %2637
        %2639 = vrot.lane.b32.xlu0 %v2595, 17
        %v2640 = vpop.permute.xlu0 %2639
        %2641 = vrot.lane.b32.xlu0 %v2603, 17
        %v2642 = vpop.permute.xlu0 %2641
        %2643 = vrot.lane.b32.xlu0 %v2580, 17
        %v2644 = vpop.permute.xlu0 %2643
        %2645 = vrot.lane.b32.xlu0 %v2588, 17
        %v2646 = vpop.permute.xlu0 %2645
        %2647 = vrot.lane.b32.xlu0 %v2596, 17
        %v2648 = vpop.permute.xlu0 %2647
        %2649 = vrot.lane.b32.xlu0 %v2604, 17
        %v2650 = vpop.permute.xlu0 %2649
        %2651 = vrot.lane.b32.xlu0 %v2581, 17
        %v2652 = vpop.permute.xlu0 %2651
        %2653 = vrot.lane.b32.xlu0 %v2589, 17
        %v2654 = vpop.permute.xlu0 %2653
        %2655 = vrot.lane.b32.xlu0 %v2597, 17
        %v2656 = vpop.permute.xlu0 %2655
        %2657 = vrot.lane.b32.xlu0 %v2605, 17
        %v2658 = vpop.permute.xlu0 %2657
        %2659 = vrot.lane.b32.xlu0 %v2582, 17
        %v2660 = vpop.permute.xlu0 %2659
        %2661 = vrot.lane.b32.xlu0 %v2590, 17
        %v2662 = vpop.permute.xlu0 %2661
        %2663 = vrot.lane.b32.xlu0 %v2598, 17
        %v2664 = vpop.permute.xlu0 %2663
        %2665 = vrot.lane.b32.xlu0 %v2606, 17
        %v2666 = vpop.permute.xlu0 %2665
        %2667 = vrot.lane.b32.xlu0 %v2583, 17
        %v2668 = vpop.permute.xlu0 %2667
        %2669 = vrot.lane.b32.xlu0 %v2591, 17
        %v2670 = vpop.permute.xlu0 %2669
        %2671 = vrot.lane.b32.xlu0 %v2599, 17
        %v2672 = vpop.permute.xlu0 %2671
        %2673 = vrot.lane.b32.xlu0 %v2607, 17
        %v2674 = vpop.permute.xlu0 %2673
        %2675 = vrot.lane.b32.xlu0 %v2584, 17
        %v2676 = vpop.permute.xlu0 %2675
        %2677 = vrot.lane.b32.xlu0 %v2592, 17
        %v2678 = vpop.permute.xlu0 %2677
        %2679 = vrot.lane.b32.xlu0 %v2600, 17
        %v2680 = vpop.permute.xlu0 %2679
        %2681 = vrot.lane.b32.xlu0 %v2608, 17
        %v2682 = vpop.permute.xlu0 %2681
        %v2683 = vsel %vm472, %v2668, %v2676
        %v2684 = vsel %vm472, %v2670, %v2678
        %v2685 = vsel %vm472, %v2672, %v2680
        %v2686 = vsel %vm472, %v2674, %v2682
        %v2687 = vsel %vm472, %v2660, %v2668
        %v2688 = vsel %vm472, %v2662, %v2670
        %v2689 = vsel %vm472, %v2664, %v2672
        %v2690 = vsel %vm472, %v2666, %v2674
        %v2691 = vsel %vm472, %v2652, %v2660
        %v2692 = vsel %vm472, %v2654, %v2662
        %v2693 = vsel %vm472, %v2656, %v2664
        %v2694 = vsel %vm472, %v2658, %v2666
        %v2695 = vsel %vm472, %v2644, %v2652
        %v2696 = vsel %vm472, %v2646, %v2654
        %v2697 = vsel %vm472, %v2648, %v2656
        %v2698 = vsel %vm472, %v2650, %v2658
        %v2699 = vsel %vm472, %v2636, %v2644
        %v2700 = vsel %vm472, %v2638, %v2646
        %v2701 = vsel %vm472, %v2640, %v2648
        %v2702 = vsel %vm472, %v2642, %v2650
        %v2703 = vsel %vm472, %v2628, %v2636
        %v2704 = vsel %vm472, %v2630, %v2638
        %v2705 = vsel %vm472, %v2632, %v2640
        %v2706 = vsel %vm472, %v2634, %v2642
        %v2707 = vsel %vm472, %v2620, %v2628
        %v2708 = vsel %vm472, %v2622, %v2630
        %v2709 = vsel %vm472, %v2624, %v2632
        %v2710 = vsel %vm472, %v2626, %v2634
        %v2711 = vsel %vm472, %v2676, %v2620
        %v2712 = vsel %vm472, %v2678, %v2622
        %v2713 = vsel %vm472, %v2680, %v2624
        %v2714 = vsel %vm472, %v2682, %v2626
        %v2715 = vsel %vm513, %v2711, 0.0
        %v2716 = vsel %vm514, %v2707, 0.0
        %v2717 = vsel %vm515, %v2703, 0.0
        %v2718 = vsel %vm516, %v2699, 0.0
        %v2719 = vsel %vm517, %v2695, 0.0
        %v2720 = vsel %vm518, %v2691, 0.0
        %v2721 = vsel %vm519, %v2687, 0.0
        %v2722 = vsel %vm520, %v2683, 0.0
        %v2723 = vsel %vm513, %v2712, 0.0
        %v2724 = vsel %vm514, %v2708, 0.0
        %v2725 = vsel %vm515, %v2704, 0.0
        %v2726 = vsel %vm516, %v2700, 0.0
        %v2727 = vsel %vm517, %v2696, 0.0
        %v2728 = vsel %vm518, %v2692, 0.0
        %v2729 = vsel %vm519, %v2688, 0.0
        %v2730 = vsel %vm520, %v2684, 0.0
        %v2731 = vsel %vm513, %v2713, 0.0
        %v2732 = vsel %vm514, %v2709, 0.0
        %v2733 = vsel %vm515, %v2705, 0.0
        %v2734 = vsel %vm516, %v2701, 0.0
        %v2735 = vsel %vm517, %v2697, 0.0
        %v2736 = vsel %vm518, %v2693, 0.0
        %v2737 = vsel %vm519, %v2689, 0.0
        %v2738 = vsel %vm520, %v2685, 0.0
        %v2739 = vsel %vm513, %v2714, 0.0
        %v2740 = vsel %vm514, %v2710, 0.0
        %v2741 = vsel %vm515, %v2706, 0.0
        %v2742 = vsel %vm516, %v2702, 0.0
        %v2743 = vsel %vm517, %v2698, 0.0
        %v2744 = vsel %vm518, %v2694, 0.0
        %v2745 = vsel %vm519, %v2690, 0.0
        %v2746 = vsel %vm520, %v2686, 0.0
        %2748 = vset.pattern.permute.xlu0 0
        %2749 = vperm.xlu0 %2748, %v2610
        %v2750 = vpop.permute.xlu0 %2749
        %2753 = vset.pattern.permute.xlu0 0
        %2754 = vperm.xlu0 %2753, %v2611
        %v2755 = vpop.permute.xlu0 %2754
        %2758 = vset.pattern.permute.xlu0 0
        %2759 = vperm.xlu0 %2758, %v2612
        %v2760 = vpop.permute.xlu0 %2759
        %2763 = vset.pattern.permute.xlu0 0
        %2764 = vperm.xlu0 %2763, %v2613
        %v2765 = vpop.permute.xlu0 %2764
        %v2767 = vmul.f32 %v2715, %v2750
        %v2768 = vmul.f32 %v2716, %v2750
        %v2769 = vmul.f32 %v2717, %v2750
        %v2770 = vmul.f32 %v2718, %v2750
        %v2771 = vmul.f32 %v2719, %v2750
        %v2772 = vmul.f32 %v2720, %v2750
        %v2773 = vmul.f32 %v2721, %v2750
        %v2774 = vmul.f32 %v2722, %v2750
        %v2775 = vmul.f32 %v2723, %v2755
        %v2776 = vmul.f32 %v2724, %v2755
        %v2777 = vmul.f32 %v2725, %v2755
        %v2778 = vmul.f32 %v2726, %v2755
        %v2779 = vmul.f32 %v2727, %v2755
        %v2780 = vmul.f32 %v2728, %v2755
        %v2781 = vmul.f32 %v2729, %v2755
        %v2782 = vmul.f32 %v2730, %v2755
        %v2783 = vmul.f32 %v2731, %v2760
        %v2784 = vmul.f32 %v2732, %v2760
        %v2785 = vmul.f32 %v2733, %v2760
        %v2786 = vmul.f32 %v2734, %v2760
        %v2787 = vmul.f32 %v2735, %v2760
        %v2788 = vmul.f32 %v2736, %v2760
        %v2789 = vmul.f32 %v2737, %v2760
        %v2790 = vmul.f32 %v2738, %v2760
        %v2791 = vmul.f32 %v2739, %v2765
        %v2792 = vmul.f32 %v2740, %v2765
        %v2793 = vmul.f32 %v2741, %v2765
        %v2794 = vmul.f32 %v2742, %v2765
        %v2795 = vmul.f32 %v2743, %v2765
        %v2796 = vmul.f32 %v2744, %v2765
        %v2797 = vmul.f32 %v2745, %v2765
        %v2798 = vmul.f32 %v2746, %v2765
        %v2799 = vadd.f32 %v2767, 0.0
        %v2800 = vadd.f32 %v2768, 0.0
        %v2801 = vadd.f32 %v2769, 0.0
        %v2802 = vadd.f32 %v2770, 0.0
        %v2803 = vadd.f32 %v2771, 0.0
        %v2804 = vadd.f32 %v2772, 0.0
        %v2805 = vadd.f32 %v2773, 0.0
        %v2806 = vadd.f32 %v2774, 0.0
        %v2807 = vadd.f32 %v2775, 0.0
        %v2808 = vadd.f32 %v2776, 0.0
        %v2809 = vadd.f32 %v2777, 0.0
        %v2810 = vadd.f32 %v2778, 0.0
        %v2811 = vadd.f32 %v2779, 0.0
        %v2812 = vadd.f32 %v2780, 0.0
        %v2813 = vadd.f32 %v2781, 0.0
        %v2814 = vadd.f32 %v2782, 0.0
        %v2815 = vadd.f32 %v2783, 0.0
        %v2816 = vadd.f32 %v2784, 0.0
        %v2817 = vadd.f32 %v2785, 0.0
        %v2818 = vadd.f32 %v2786, 0.0
        %v2819 = vadd.f32 %v2787, 0.0
        %v2820 = vadd.f32 %v2788, 0.0
        %v2821 = vadd.f32 %v2789, 0.0
        %v2822 = vadd.f32 %v2790, 0.0
        %v2823 = vadd.f32 %v2791, 0.0
        %v2824 = vadd.f32 %v2792, 0.0
        %v2825 = vadd.f32 %v2793, 0.0
        %v2826 = vadd.f32 %v2794, 0.0
        %v2827 = vadd.f32 %v2795, 0.0
        %v2828 = vadd.f32 %v2796, 0.0
        %v2829 = vadd.f32 %v2797, 0.0
        %v2830 = vadd.f32 %v2798, 0.0
        %2831 = vrot.lane.b32.xlu0 %v2577, 16
        %v2832 = vpop.permute.xlu0 %2831
        %2833 = vrot.lane.b32.xlu0 %v2585, 16
        %v2834 = vpop.permute.xlu0 %2833
        %2835 = vrot.lane.b32.xlu0 %v2593, 16
        %v2836 = vpop.permute.xlu0 %2835
        %2837 = vrot.lane.b32.xlu0 %v2601, 16
        %v2838 = vpop.permute.xlu0 %2837
        %2839 = vrot.lane.b32.xlu0 %v2578, 16
        %v2840 = vpop.permute.xlu0 %2839
        %2841 = vrot.lane.b32.xlu0 %v2586, 16
        %v2842 = vpop.permute.xlu0 %2841
        %2843 = vrot.lane.b32.xlu0 %v2594, 16
        %v2844 = vpop.permute.xlu0 %2843
        %2845 = vrot.lane.b32.xlu0 %v2602, 16
        %v2846 = vpop.permute.xlu0 %2845
        %2847 = vrot.lane.b32.xlu0 %v2579, 16
        %v2848 = vpop.permute.xlu0 %2847
        %2849 = vrot.lane.b32.xlu0 %v2587, 16
        %v2850 = vpop.permute.xlu0 %2849
        %2851 = vrot.lane.b32.xlu0 %v2595, 16
        %v2852 = vpop.permute.xlu0 %2851
        %2853 = vrot.lane.b32.xlu0 %v2603, 16
        %v2854 = vpop.permute.xlu0 %2853
        %2855 = vrot.lane.b32.xlu0 %v2580, 16
        %v2856 = vpop.permute.xlu0 %2855
        %2857 = vrot.lane.b32.xlu0 %v2588, 16
        %v2858 = vpop.permute.xlu0 %2857
        %2859 = vrot.lane.b32.xlu0 %v2596, 16
        %v2860 = vpop.permute.xlu0 %2859
        %2861 = vrot.lane.b32.xlu0 %v2604, 16
        %v2862 = vpop.permute.xlu0 %2861
        %2863 = vrot.lane.b32.xlu0 %v2581, 16
        %v2864 = vpop.permute.xlu0 %2863
        %2865 = vrot.lane.b32.xlu0 %v2589, 16
        %v2866 = vpop.permute.xlu0 %2865
        %2867 = vrot.lane.b32.xlu0 %v2597, 16
        %v2868 = vpop.permute.xlu0 %2867
        %2869 = vrot.lane.b32.xlu0 %v2605, 16
        %v2870 = vpop.permute.xlu0 %2869
        %2871 = vrot.lane.b32.xlu0 %v2582, 16
        %v2872 = vpop.permute.xlu0 %2871
        %2873 = vrot.lane.b32.xlu0 %v2590, 16
        %v2874 = vpop.permute.xlu0 %2873
        %2875 = vrot.lane.b32.xlu0 %v2598, 16
        %v2876 = vpop.permute.xlu0 %2875
        %2877 = vrot.lane.b32.xlu0 %v2606, 16
        %v2878 = vpop.permute.xlu0 %2877
        %2879 = vrot.lane.b32.xlu0 %v2583, 16
        %v2880 = vpop.permute.xlu0 %2879
        %2881 = vrot.lane.b32.xlu0 %v2591, 16
        %v2882 = vpop.permute.xlu0 %2881
        %2883 = vrot.lane.b32.xlu0 %v2599, 16
        %v2884 = vpop.permute.xlu0 %2883
        %2885 = vrot.lane.b32.xlu0 %v2607, 16
        %v2886 = vpop.permute.xlu0 %2885
        %2887 = vrot.lane.b32.xlu0 %v2584, 16
        %v2888 = vpop.permute.xlu0 %2887
        %2889 = vrot.lane.b32.xlu0 %v2592, 16
        %v2890 = vpop.permute.xlu0 %2889
        %2891 = vrot.lane.b32.xlu0 %v2600, 16
        %v2892 = vpop.permute.xlu0 %2891
        %2893 = vrot.lane.b32.xlu0 %v2608, 16
        %v2894 = vpop.permute.xlu0 %2893
        %v2895 = vsel %vm701, %v2880, %v2888
        %v2896 = vsel %vm701, %v2882, %v2890
        %v2897 = vsel %vm701, %v2884, %v2892
        %v2898 = vsel %vm701, %v2886, %v2894
        %v2899 = vsel %vm701, %v2872, %v2880
        %v2900 = vsel %vm701, %v2874, %v2882
        %v2901 = vsel %vm701, %v2876, %v2884
        %v2902 = vsel %vm701, %v2878, %v2886
        %v2903 = vsel %vm701, %v2864, %v2872
        %v2904 = vsel %vm701, %v2866, %v2874
        %v2905 = vsel %vm701, %v2868, %v2876
        %v2906 = vsel %vm701, %v2870, %v2878
        %v2907 = vsel %vm701, %v2856, %v2864
        %v2908 = vsel %vm701, %v2858, %v2866
        %v2909 = vsel %vm701, %v2860, %v2868
        %v2910 = vsel %vm701, %v2862, %v2870
        %v2911 = vsel %vm701, %v2848, %v2856
        %v2912 = vsel %vm701, %v2850, %v2858
        %v2913 = vsel %vm701, %v2852, %v2860
        %v2914 = vsel %vm701, %v2854, %v2862
        %v2915 = vsel %vm701, %v2840, %v2848
        %v2916 = vsel %vm701, %v2842, %v2850
        %v2917 = vsel %vm701, %v2844, %v2852
        %v2918 = vsel %vm701, %v2846, %v2854
        %v2919 = vsel %vm701, %v2832, %v2840
        %v2920 = vsel %vm701, %v2834, %v2842
        %v2921 = vsel %vm701, %v2836, %v2844
        %v2922 = vsel %vm701, %v2838, %v2846
        %v2923 = vsel %vm701, %v2888, %v2832
        %v2924 = vsel %vm701, %v2890, %v2834
        %v2925 = vsel %vm701, %v2892, %v2836
        %v2926 = vsel %vm701, %v2894, %v2838
        %v2927 = vsel %vm742, %v2923, 0.0
        %v2928 = vsel %vm743, %v2919, 0.0
        %v2929 = vsel %vm744, %v2915, 0.0
        %v2930 = vsel %vm745, %v2911, 0.0
        %v2931 = vsel %vm746, %v2907, 0.0
        %v2932 = vsel %vm747, %v2903, 0.0
        %v2933 = vsel %vm748, %v2899, 0.0
        %v2934 = vsel %vm749, %v2895, 0.0
        %v2935 = vsel %vm742, %v2924, 0.0
        %v2936 = vsel %vm743, %v2920, 0.0
        %v2937 = vsel %vm744, %v2916, 0.0
        %v2938 = vsel %vm745, %v2912, 0.0
        %v2939 = vsel %vm746, %v2908, 0.0
        %v2940 = vsel %vm747, %v2904, 0.0
        %v2941 = vsel %vm748, %v2900, 0.0
        %v2942 = vsel %vm749, %v2896, 0.0
        %v2943 = vsel %vm742, %v2925, 0.0
        %v2944 = vsel %vm743, %v2921, 0.0
        %v2945 = vsel %vm744, %v2917, 0.0
        %v2946 = vsel %vm745, %v2913, 0.0
        %v2947 = vsel %vm746, %v2909, 0.0
        %v2948 = vsel %vm747, %v2905, 0.0
        %v2949 = vsel %vm748, %v2901, 0.0
        %v2950 = vsel %vm749, %v2897, 0.0
        %v2951 = vsel %vm742, %v2926, 0.0
        %v2952 = vsel %vm743, %v2922, 0.0
        %v2953 = vsel %vm744, %v2918, 0.0
        %v2954 = vsel %vm745, %v2914, 0.0
        %v2955 = vsel %vm746, %v2910, 0.0
        %v2956 = vsel %vm747, %v2906, 0.0
        %v2957 = vsel %vm748, %v2902, 0.0
        %v2958 = vsel %vm749, %v2898, 0.0
        %2959 = vset.pattern.permute.xlu0 1
        %2960 = vperm.xlu0 %2959, %v2610
        %v2961 = vpop.permute.xlu0 %2960
        %2963 = vset.pattern.permute.xlu0 1
        %2964 = vperm.xlu0 %2963, %v2611
        %v2965 = vpop.permute.xlu0 %2964
        %2967 = vset.pattern.permute.xlu0 1
        %2968 = vperm.xlu0 %2967, %v2612
        %v2969 = vpop.permute.xlu0 %2968
        %2971 = vset.pattern.permute.xlu0 1
        %2972 = vperm.xlu0 %2971, %v2613
        %v2973 = vpop.permute.xlu0 %2972
        %v2975 = vmul.f32 %v2927, %v2961
        %v2976 = vmul.f32 %v2928, %v2961
        %v2977 = vmul.f32 %v2929, %v2961
        %v2978 = vmul.f32 %v2930, %v2961
        %v2979 = vmul.f32 %v2931, %v2961
        %v2980 = vmul.f32 %v2932, %v2961
        %v2981 = vmul.f32 %v2933, %v2961
        %v2982 = vmul.f32 %v2934, %v2961
        %v2983 = vmul.f32 %v2935, %v2965
        %v2984 = vmul.f32 %v2936, %v2965
        %v2985 = vmul.f32 %v2937, %v2965
        %v2986 = vmul.f32 %v2938, %v2965
        %v2987 = vmul.f32 %v2939, %v2965
        %v2988 = vmul.f32 %v2940, %v2965
        %v2989 = vmul.f32 %v2941, %v2965
        %v2990 = vmul.f32 %v2942, %v2965
        %v2991 = vmul.f32 %v2943, %v2969
        %v2992 = vmul.f32 %v2944, %v2969
        %v2993 = vmul.f32 %v2945, %v2969
        %v2994 = vmul.f32 %v2946, %v2969
        %v2995 = vmul.f32 %v2947, %v2969
        %v2996 = vmul.f32 %v2948, %v2969
        %v2997 = vmul.f32 %v2949, %v2969
        %v2998 = vmul.f32 %v2950, %v2969
        %v2999 = vmul.f32 %v2951, %v2973
        %v3000 = vmul.f32 %v2952, %v2973
        %v3001 = vmul.f32 %v2953, %v2973
        %v3002 = vmul.f32 %v2954, %v2973
        %v3003 = vmul.f32 %v2955, %v2973
        %v3004 = vmul.f32 %v2956, %v2973
        %v3005 = vmul.f32 %v2957, %v2973
        %v3006 = vmul.f32 %v2958, %v2973
        %v3007 = vadd.f32 %v2799, %v2975
        %v3008 = vadd.f32 %v2800, %v2976
        %v3009 = vadd.f32 %v2801, %v2977
        %v3010 = vadd.f32 %v2802, %v2978
        %v3011 = vadd.f32 %v2803, %v2979
        %v3012 = vadd.f32 %v2804, %v2980
        %v3013 = vadd.f32 %v2805, %v2981
        %v3014 = vadd.f32 %v2806, %v2982
        %v3015 = vadd.f32 %v2807, %v2983
        %v3016 = vadd.f32 %v2808, %v2984
        %v3017 = vadd.f32 %v2809, %v2985
        %v3018 = vadd.f32 %v2810, %v2986
        %v3019 = vadd.f32 %v2811, %v2987
        %v3020 = vadd.f32 %v2812, %v2988
        %v3021 = vadd.f32 %v2813, %v2989
        %v3022 = vadd.f32 %v2814, %v2990
        %v3023 = vadd.f32 %v2815, %v2991
        %v3024 = vadd.f32 %v2816, %v2992
        %v3025 = vadd.f32 %v2817, %v2993
        %v3026 = vadd.f32 %v2818, %v2994
        %v3027 = vadd.f32 %v2819, %v2995
        %v3028 = vadd.f32 %v2820, %v2996
        %v3029 = vadd.f32 %v2821, %v2997
        %v3030 = vadd.f32 %v2822, %v2998
        %v3031 = vadd.f32 %v2823, %v2999
        %v3032 = vadd.f32 %v2824, %v3000
        %v3033 = vadd.f32 %v2825, %v3001
        %v3034 = vadd.f32 %v2826, %v3002
        %v3035 = vadd.f32 %v2827, %v3003
        %v3036 = vadd.f32 %v2828, %v3004
        %v3037 = vadd.f32 %v2829, %v3005
        %v3038 = vadd.f32 %v2830, %v3006
        %3039 = vrot.lane.b32.xlu0 %v2577, 15
        %v3040 = vpop.permute.xlu0 %3039
        %3041 = vrot.lane.b32.xlu0 %v2585, 15
        %v3042 = vpop.permute.xlu0 %3041
        %3043 = vrot.lane.b32.xlu0 %v2593, 15
        %v3044 = vpop.permute.xlu0 %3043
        %3045 = vrot.lane.b32.xlu0 %v2601, 15
        %v3046 = vpop.permute.xlu0 %3045
        %3047 = vrot.lane.b32.xlu0 %v2578, 15
        %v3048 = vpop.permute.xlu0 %3047
        %3049 = vrot.lane.b32.xlu0 %v2586, 15
        %v3050 = vpop.permute.xlu0 %3049
        %3051 = vrot.lane.b32.xlu0 %v2594, 15
        %v3052 = vpop.permute.xlu0 %3051
        %3053 = vrot.lane.b32.xlu0 %v2602, 15
        %v3054 = vpop.permute.xlu0 %3053
        %3055 = vrot.lane.b32.xlu0 %v2579, 15
        %v3056 = vpop.permute.xlu0 %3055
        %3057 = vrot.lane.b32.xlu0 %v2587, 15
        %v3058 = vpop.permute.xlu0 %3057
        %3059 = vrot.lane.b32.xlu0 %v2595, 15
        %v3060 = vpop.permute.xlu0 %3059
        %3061 = vrot.lane.b32.xlu0 %v2603, 15
        %v3062 = vpop.permute.xlu0 %3061
        %3063 = vrot.lane.b32.xlu0 %v2580, 15
        %v3064 = vpop.permute.xlu0 %3063
        %3065 = vrot.lane.b32.xlu0 %v2588, 15
        %v3066 = vpop.permute.xlu0 %3065
        %3067 = vrot.lane.b32.xlu0 %v2596, 15
        %v3068 = vpop.permute.xlu0 %3067
        %3069 = vrot.lane.b32.xlu0 %v2604, 15
        %v3070 = vpop.permute.xlu0 %3069
        %3071 = vrot.lane.b32.xlu0 %v2581, 15
        %v3072 = vpop.permute.xlu0 %3071
        %3073 = vrot.lane.b32.xlu0 %v2589, 15
        %v3074 = vpop.permute.xlu0 %3073
        %3075 = vrot.lane.b32.xlu0 %v2597, 15
        %v3076 = vpop.permute.xlu0 %3075
        %3077 = vrot.lane.b32.xlu0 %v2605, 15
        %v3078 = vpop.permute.xlu0 %3077
        %3079 = vrot.lane.b32.xlu0 %v2582, 15
        %v3080 = vpop.permute.xlu0 %3079
        %3081 = vrot.lane.b32.xlu0 %v2590, 15
        %v3082 = vpop.permute.xlu0 %3081
        %3083 = vrot.lane.b32.xlu0 %v2598, 15
        %v3084 = vpop.permute.xlu0 %3083
        %3085 = vrot.lane.b32.xlu0 %v2606, 15
        %v3086 = vpop.permute.xlu0 %3085
        %3087 = vrot.lane.b32.xlu0 %v2583, 15
        %v3088 = vpop.permute.xlu0 %3087
        %3089 = vrot.lane.b32.xlu0 %v2591, 15
        %v3090 = vpop.permute.xlu0 %3089
        %3091 = vrot.lane.b32.xlu0 %v2599, 15
        %v3092 = vpop.permute.xlu0 %3091
        %3093 = vrot.lane.b32.xlu0 %v2607, 15
        %v3094 = vpop.permute.xlu0 %3093
        %3095 = vrot.lane.b32.xlu0 %v2584, 15
        %v3096 = vpop.permute.xlu0 %3095
        %3097 = vrot.lane.b32.xlu0 %v2592, 15
        %v3098 = vpop.permute.xlu0 %3097
        %3099 = vrot.lane.b32.xlu0 %v2600, 15
        %v3100 = vpop.permute.xlu0 %3099
        %3101 = vrot.lane.b32.xlu0 %v2608, 15
        %v3102 = vpop.permute.xlu0 %3101
        %v3103 = vsel %vm926, %v3088, %v3096
        %v3104 = vsel %vm926, %v3090, %v3098
        %v3105 = vsel %vm926, %v3092, %v3100
        %v3106 = vsel %vm926, %v3094, %v3102
        %v3107 = vsel %vm926, %v3080, %v3088
        %v3108 = vsel %vm926, %v3082, %v3090
        %v3109 = vsel %vm926, %v3084, %v3092
        %v3110 = vsel %vm926, %v3086, %v3094
        %v3111 = vsel %vm926, %v3072, %v3080
        %v3112 = vsel %vm926, %v3074, %v3082
        %v3113 = vsel %vm926, %v3076, %v3084
        %v3114 = vsel %vm926, %v3078, %v3086
        %v3115 = vsel %vm926, %v3064, %v3072
        %v3116 = vsel %vm926, %v3066, %v3074
        %v3117 = vsel %vm926, %v3068, %v3076
        %v3118 = vsel %vm926, %v3070, %v3078
        %v3119 = vsel %vm926, %v3056, %v3064
        %v3120 = vsel %vm926, %v3058, %v3066
        %v3121 = vsel %vm926, %v3060, %v3068
        %v3122 = vsel %vm926, %v3062, %v3070
        %v3123 = vsel %vm926, %v3048, %v3056
        %v3124 = vsel %vm926, %v3050, %v3058
        %v3125 = vsel %vm926, %v3052, %v3060
        %v3126 = vsel %vm926, %v3054, %v3062
        %v3127 = vsel %vm926, %v3040, %v3048
        %v3128 = vsel %vm926, %v3042, %v3050
        %v3129 = vsel %vm926, %v3044, %v3052
        %v3130 = vsel %vm926, %v3046, %v3054
        %v3131 = vsel %vm926, %v3096, %v3040
        %v3132 = vsel %vm926, %v3098, %v3042
        %v3133 = vsel %vm926, %v3100, %v3044
        %v3134 = vsel %vm926, %v3102, %v3046
        %v3135 = vsel %vm967, %v3131, 0.0
        %v3136 = vsel %vm968, %v3127, 0.0
        %v3137 = vsel %vm969, %v3123, 0.0
        %v3138 = vsel %vm970, %v3119, 0.0
        %v3139 = vsel %vm971, %v3115, 0.0
        %v3140 = vsel %vm972, %v3111, 0.0
        %v3141 = vsel %vm973, %v3107, 0.0
        %v3142 = vsel %vm974, %v3103, 0.0
        %v3143 = vsel %vm967, %v3132, 0.0
        %v3144 = vsel %vm968, %v3128, 0.0
        %v3145 = vsel %vm969, %v3124, 0.0
        %v3146 = vsel %vm970, %v3120, 0.0
        %v3147 = vsel %vm971, %v3116, 0.0
        %v3148 = vsel %vm972, %v3112, 0.0
        %v3149 = vsel %vm973, %v3108, 0.0
        %v3150 = vsel %vm974, %v3104, 0.0
        %v3151 = vsel %vm967, %v3133, 0.0
        %v3152 = vsel %vm968, %v3129, 0.0
        %v3153 = vsel %vm969, %v3125, 0.0
        %v3154 = vsel %vm970, %v3121, 0.0
        %v3155 = vsel %vm971, %v3117, 0.0
        %v3156 = vsel %vm972, %v3113, 0.0
        %v3157 = vsel %vm973, %v3109, 0.0
        %v3158 = vsel %vm974, %v3105, 0.0
        %v3159 = vsel %vm967, %v3134, 0.0
        %v3160 = vsel %vm968, %v3130, 0.0
        %v3161 = vsel %vm969, %v3126, 0.0
        %v3162 = vsel %vm970, %v3122, 0.0
        %v3163 = vsel %vm971, %v3118, 0.0
        %v3164 = vsel %vm972, %v3114, 0.0
        %v3165 = vsel %vm973, %v3110, 0.0
        %v3166 = vsel %vm974, %v3106, 0.0
        %3167 = vset.pattern.permute.xlu0 2
        %3168 = vperm.xlu0 %3167, %v2610
        %v3169 = vpop.permute.xlu0 %3168
        %3171 = vset.pattern.permute.xlu0 2
        %3172 = vperm.xlu0 %3171, %v2611
        %v3173 = vpop.permute.xlu0 %3172
        %3175 = vset.pattern.permute.xlu0 2
        %3176 = vperm.xlu0 %3175, %v2612
        %v3177 = vpop.permute.xlu0 %3176
        %3179 = vset.pattern.permute.xlu0 2
        %3180 = vperm.xlu0 %3179, %v2613
        %v3181 = vpop.permute.xlu0 %3180
        %v3183 = vmul.f32 %v3135, %v3169
        %v3184 = vmul.f32 %v3136, %v3169
        %v3185 = vmul.f32 %v3137, %v3169
        %v3186 = vmul.f32 %v3138, %v3169
        %v3187 = vmul.f32 %v3139, %v3169
        %v3188 = vmul.f32 %v3140, %v3169
        %v3189 = vmul.f32 %v3141, %v3169
        %v3190 = vmul.f32 %v3142, %v3169
        %v3191 = vmul.f32 %v3143, %v3173
        %v3192 = vmul.f32 %v3144, %v3173
        %v3193 = vmul.f32 %v3145, %v3173
        %v3194 = vmul.f32 %v3146, %v3173
        %v3195 = vmul.f32 %v3147, %v3173
        %v3196 = vmul.f32 %v3148, %v3173
        %v3197 = vmul.f32 %v3149, %v3173
        %v3198 = vmul.f32 %v3150, %v3173
        %v3199 = vmul.f32 %v3151, %v3177
        %v3200 = vmul.f32 %v3152, %v3177
        %v3201 = vmul.f32 %v3153, %v3177
        %v3202 = vmul.f32 %v3154, %v3177
        %v3203 = vmul.f32 %v3155, %v3177
        %v3204 = vmul.f32 %v3156, %v3177
        %v3205 = vmul.f32 %v3157, %v3177
        %v3206 = vmul.f32 %v3158, %v3177
        %v3207 = vmul.f32 %v3159, %v3181
        %v3208 = vmul.f32 %v3160, %v3181
        %v3209 = vmul.f32 %v3161, %v3181
        %v3210 = vmul.f32 %v3162, %v3181
        %v3211 = vmul.f32 %v3163, %v3181
        %v3212 = vmul.f32 %v3164, %v3181
        %v3213 = vmul.f32 %v3165, %v3181
        %v3214 = vmul.f32 %v3166, %v3181
        %v3215 = vadd.f32 %v3007, %v3183
        %v3216 = vadd.f32 %v3008, %v3184
        %v3217 = vadd.f32 %v3009, %v3185
        %v3218 = vadd.f32 %v3010, %v3186
        %v3219 = vadd.f32 %v3011, %v3187
        %v3220 = vadd.f32 %v3012, %v3188
        %v3221 = vadd.f32 %v3013, %v3189
        %v3222 = vadd.f32 %v3014, %v3190
        %v3223 = vadd.f32 %v3015, %v3191
        %v3224 = vadd.f32 %v3016, %v3192
        %v3225 = vadd.f32 %v3017, %v3193
        %v3226 = vadd.f32 %v3018, %v3194
        %v3227 = vadd.f32 %v3019, %v3195
        %v3228 = vadd.f32 %v3020, %v3196
        %v3229 = vadd.f32 %v3021, %v3197
        %v3230 = vadd.f32 %v3022, %v3198
        %v3231 = vadd.f32 %v3023, %v3199
        %v3232 = vadd.f32 %v3024, %v3200
        %v3233 = vadd.f32 %v3025, %v3201
        %v3234 = vadd.f32 %v3026, %v3202
        %v3235 = vadd.f32 %v3027, %v3203
        %v3236 = vadd.f32 %v3028, %v3204
        %v3237 = vadd.f32 %v3029, %v3205
        %v3238 = vadd.f32 %v3030, %v3206
        %v3239 = vadd.f32 %v3031, %v3207
        %v3240 = vadd.f32 %v3032, %v3208
        %v3241 = vadd.f32 %v3033, %v3209
        %v3242 = vadd.f32 %v3034, %v3210
        %v3243 = vadd.f32 %v3035, %v3211
        %v3244 = vadd.f32 %v3036, %v3212
        %v3245 = vadd.f32 %v3037, %v3213
        %v3246 = vadd.f32 %v3038, %v3214
        %3247 = vrot.lane.b32.xlu0 %v2577, 1
        %v3248 = vpop.permute.xlu0 %3247
        %3249 = vrot.lane.b32.xlu0 %v2585, 1
        %v3250 = vpop.permute.xlu0 %3249
        %3251 = vrot.lane.b32.xlu0 %v2593, 1
        %v3252 = vpop.permute.xlu0 %3251
        %3253 = vrot.lane.b32.xlu0 %v2601, 1
        %v3254 = vpop.permute.xlu0 %3253
        %3255 = vrot.lane.b32.xlu0 %v2578, 1
        %v3256 = vpop.permute.xlu0 %3255
        %3257 = vrot.lane.b32.xlu0 %v2586, 1
        %v3258 = vpop.permute.xlu0 %3257
        %3259 = vrot.lane.b32.xlu0 %v2594, 1
        %v3260 = vpop.permute.xlu0 %3259
        %3261 = vrot.lane.b32.xlu0 %v2602, 1
        %v3262 = vpop.permute.xlu0 %3261
        %3263 = vrot.lane.b32.xlu0 %v2579, 1
        %v3264 = vpop.permute.xlu0 %3263
        %3265 = vrot.lane.b32.xlu0 %v2587, 1
        %v3266 = vpop.permute.xlu0 %3265
        %3267 = vrot.lane.b32.xlu0 %v2595, 1
        %v3268 = vpop.permute.xlu0 %3267
        %3269 = vrot.lane.b32.xlu0 %v2603, 1
        %v3270 = vpop.permute.xlu0 %3269
        %3271 = vrot.lane.b32.xlu0 %v2580, 1
        %v3272 = vpop.permute.xlu0 %3271
        %3273 = vrot.lane.b32.xlu0 %v2588, 1
        %v3274 = vpop.permute.xlu0 %3273
        %3275 = vrot.lane.b32.xlu0 %v2596, 1
        %v3276 = vpop.permute.xlu0 %3275
        %3277 = vrot.lane.b32.xlu0 %v2604, 1
        %v3278 = vpop.permute.xlu0 %3277
        %3279 = vrot.lane.b32.xlu0 %v2581, 1
        %v3280 = vpop.permute.xlu0 %3279
        %3281 = vrot.lane.b32.xlu0 %v2589, 1
        %v3282 = vpop.permute.xlu0 %3281
        %3283 = vrot.lane.b32.xlu0 %v2597, 1
        %v3284 = vpop.permute.xlu0 %3283
        %3285 = vrot.lane.b32.xlu0 %v2605, 1
        %v3286 = vpop.permute.xlu0 %3285
        %3287 = vrot.lane.b32.xlu0 %v2582, 1
        %v3288 = vpop.permute.xlu0 %3287
        %3289 = vrot.lane.b32.xlu0 %v2590, 1
        %v3290 = vpop.permute.xlu0 %3289
        %3291 = vrot.lane.b32.xlu0 %v2598, 1
        %v3292 = vpop.permute.xlu0 %3291
        %3293 = vrot.lane.b32.xlu0 %v2606, 1
        %v3294 = vpop.permute.xlu0 %3293
        %3295 = vrot.lane.b32.xlu0 %v2583, 1
        %v3296 = vpop.permute.xlu0 %3295
        %3297 = vrot.lane.b32.xlu0 %v2591, 1
        %v3298 = vpop.permute.xlu0 %3297
        %3299 = vrot.lane.b32.xlu0 %v2599, 1
        %v3300 = vpop.permute.xlu0 %3299
        %3301 = vrot.lane.b32.xlu0 %v2607, 1
        %v3302 = vpop.permute.xlu0 %3301
        %3303 = vrot.lane.b32.xlu0 %v2584, 1
        %v3304 = vpop.permute.xlu0 %3303
        %3305 = vrot.lane.b32.xlu0 %v2592, 1
        %v3306 = vpop.permute.xlu0 %3305
        %3307 = vrot.lane.b32.xlu0 %v2600, 1
        %v3308 = vpop.permute.xlu0 %3307
        %3309 = vrot.lane.b32.xlu0 %v2608, 1
        %v3310 = vpop.permute.xlu0 %3309
        %v3311 = vsel %vm1151, %v3296, %v3304
        %v3312 = vsel %vm1151, %v3298, %v3306
        %v3313 = vsel %vm1151, %v3300, %v3308
        %v3314 = vsel %vm1151, %v3302, %v3310
        %v3315 = vsel %vm1151, %v3288, %v3296
        %v3316 = vsel %vm1151, %v3290, %v3298
        %v3317 = vsel %vm1151, %v3292, %v3300
        %v3318 = vsel %vm1151, %v3294, %v3302
        %v3319 = vsel %vm1151, %v3280, %v3288
        %v3320 = vsel %vm1151, %v3282, %v3290
        %v3321 = vsel %vm1151, %v3284, %v3292
        %v3322 = vsel %vm1151, %v3286, %v3294
        %v3323 = vsel %vm1151, %v3272, %v3280
        %v3324 = vsel %vm1151, %v3274, %v3282
        %v3325 = vsel %vm1151, %v3276, %v3284
        %v3326 = vsel %vm1151, %v3278, %v3286
        %v3327 = vsel %vm1151, %v3264, %v3272
        %v3328 = vsel %vm1151, %v3266, %v3274
        %v3329 = vsel %vm1151, %v3268, %v3276
        %v3330 = vsel %vm1151, %v3270, %v3278
        %v3331 = vsel %vm1151, %v3256, %v3264
        %v3332 = vsel %vm1151, %v3258, %v3266
        %v3333 = vsel %vm1151, %v3260, %v3268
        %v3334 = vsel %vm1151, %v3262, %v3270
        %v3335 = vsel %vm1151, %v3248, %v3256
        %v3336 = vsel %vm1151, %v3250, %v3258
        %v3337 = vsel %vm1151, %v3252, %v3260
        %v3338 = vsel %vm1151, %v3254, %v3262
        %v3339 = vsel %vm1151, %v3304, %v3248
        %v3340 = vsel %vm1151, %v3306, %v3250
        %v3341 = vsel %vm1151, %v3308, %v3252
        %v3342 = vsel %vm1151, %v3310, %v3254
        %v3343 = vsel %vm1192, %v3339, 0.0
        %v3344 = vsel %vm1193, %v3335, 0.0
        %v3345 = vsel %vm1194, %v3331, 0.0
        %v3346 = vsel %vm1195, %v3327, 0.0
        %v3347 = vsel %vm1196, %v3323, 0.0
        %v3348 = vsel %vm1197, %v3319, 0.0
        %v3349 = vsel %vm1198, %v3315, 0.0
        %v3350 = vsel %vm1199, %v3311, 0.0
        %v3351 = vsel %vm1192, %v3340, 0.0
        %v3352 = vsel %vm1193, %v3336, 0.0
        %v3353 = vsel %vm1194, %v3332, 0.0
        %v3354 = vsel %vm1195, %v3328, 0.0
        %v3355 = vsel %vm1196, %v3324, 0.0
        %v3356 = vsel %vm1197, %v3320, 0.0
        %v3357 = vsel %vm1198, %v3316, 0.0
        %v3358 = vsel %vm1199, %v3312, 0.0
        %v3359 = vsel %vm1192, %v3341, 0.0
        %v3360 = vsel %vm1193, %v3337, 0.0
        %v3361 = vsel %vm1194, %v3333, 0.0
        %v3362 = vsel %vm1195, %v3329, 0.0
        %v3363 = vsel %vm1196, %v3325, 0.0
        %v3364 = vsel %vm1197, %v3321, 0.0
        %v3365 = vsel %vm1198, %v3317, 0.0
        %v3366 = vsel %vm1199, %v3313, 0.0
        %v3367 = vsel %vm1192, %v3342, 0.0
        %v3368 = vsel %vm1193, %v3338, 0.0
        %v3369 = vsel %vm1194, %v3334, 0.0
        %v3370 = vsel %vm1195, %v3330, 0.0
        %v3371 = vsel %vm1196, %v3326, 0.0
        %v3372 = vsel %vm1197, %v3322, 0.0
        %v3373 = vsel %vm1198, %v3318, 0.0
        %v3374 = vsel %vm1199, %v3314, 0.0
        %3375 = vset.pattern.permute.xlu0 3
        %3376 = vperm.xlu0 %3375, %v2610
        %v3377 = vpop.permute.xlu0 %3376
        %3379 = vset.pattern.permute.xlu0 3
        %3380 = vperm.xlu0 %3379, %v2611
        %v3381 = vpop.permute.xlu0 %3380
        %3383 = vset.pattern.permute.xlu0 3
        %3384 = vperm.xlu0 %3383, %v2612
        %v3385 = vpop.permute.xlu0 %3384
        %3387 = vset.pattern.permute.xlu0 3
        %3388 = vperm.xlu0 %3387, %v2613
        %v3389 = vpop.permute.xlu0 %3388
        %v3391 = vmul.f32 %v3343, %v3377
        %v3392 = vmul.f32 %v3344, %v3377
        %v3393 = vmul.f32 %v3345, %v3377
        %v3394 = vmul.f32 %v3346, %v3377
        %v3395 = vmul.f32 %v3347, %v3377
        %v3396 = vmul.f32 %v3348, %v3377
        %v3397 = vmul.f32 %v3349, %v3377
        %v3398 = vmul.f32 %v3350, %v3377
        %v3399 = vmul.f32 %v3351, %v3381
        %v3400 = vmul.f32 %v3352, %v3381
        %v3401 = vmul.f32 %v3353, %v3381
        %v3402 = vmul.f32 %v3354, %v3381
        %v3403 = vmul.f32 %v3355, %v3381
        %v3404 = vmul.f32 %v3356, %v3381
        %v3405 = vmul.f32 %v3357, %v3381
        %v3406 = vmul.f32 %v3358, %v3381
        %v3407 = vmul.f32 %v3359, %v3385
        %v3408 = vmul.f32 %v3360, %v3385
        %v3409 = vmul.f32 %v3361, %v3385
        %v3410 = vmul.f32 %v3362, %v3385
        %v3411 = vmul.f32 %v3363, %v3385
        %v3412 = vmul.f32 %v3364, %v3385
        %v3413 = vmul.f32 %v3365, %v3385
        %v3414 = vmul.f32 %v3366, %v3385
        %v3415 = vmul.f32 %v3367, %v3389
        %v3416 = vmul.f32 %v3368, %v3389
        %v3417 = vmul.f32 %v3369, %v3389
        %v3418 = vmul.f32 %v3370, %v3389
        %v3419 = vmul.f32 %v3371, %v3389
        %v3420 = vmul.f32 %v3372, %v3389
        %v3421 = vmul.f32 %v3373, %v3389
        %v3422 = vmul.f32 %v3374, %v3389
        %v3423 = vadd.f32 %v3215, %v3391
        %v3424 = vadd.f32 %v3216, %v3392
        %v3425 = vadd.f32 %v3217, %v3393
        %v3426 = vadd.f32 %v3218, %v3394
        %v3427 = vadd.f32 %v3219, %v3395
        %v3428 = vadd.f32 %v3220, %v3396
        %v3429 = vadd.f32 %v3221, %v3397
        %v3430 = vadd.f32 %v3222, %v3398
        %v3431 = vadd.f32 %v3223, %v3399
        %v3432 = vadd.f32 %v3224, %v3400
        %v3433 = vadd.f32 %v3225, %v3401
        %v3434 = vadd.f32 %v3226, %v3402
        %v3435 = vadd.f32 %v3227, %v3403
        %v3436 = vadd.f32 %v3228, %v3404
        %v3437 = vadd.f32 %v3229, %v3405
        %v3438 = vadd.f32 %v3230, %v3406
        %v3439 = vadd.f32 %v3231, %v3407
        %v3440 = vadd.f32 %v3232, %v3408
        %v3441 = vadd.f32 %v3233, %v3409
        %v3442 = vadd.f32 %v3234, %v3410
        %v3443 = vadd.f32 %v3235, %v3411
        %v3444 = vadd.f32 %v3236, %v3412
        %v3445 = vadd.f32 %v3237, %v3413
        %v3446 = vadd.f32 %v3238, %v3414
        %v3447 = vadd.f32 %v3239, %v3415
        %v3448 = vadd.f32 %v3240, %v3416
        %v3449 = vadd.f32 %v3241, %v3417
        %v3450 = vadd.f32 %v3242, %v3418
        %v3451 = vadd.f32 %v3243, %v3419
        %v3452 = vadd.f32 %v3244, %v3420
        %v3453 = vadd.f32 %v3245, %v3421
        %v3454 = vadd.f32 %v3246, %v3422
        %3455 = vset.pattern.permute.xlu0 4
        %3456 = vperm.xlu0 %3455, %v2610
        %v3457 = vpop.permute.xlu0 %3456
        %3459 = vset.pattern.permute.xlu0 4
        %3460 = vperm.xlu0 %3459, %v2611
        %v3461 = vpop.permute.xlu0 %3460
        %3463 = vset.pattern.permute.xlu0 4
        %3464 = vperm.xlu0 %3463, %v2612
        %v3465 = vpop.permute.xlu0 %3464
        %3467 = vset.pattern.permute.xlu0 4
        %3468 = vperm.xlu0 %3467, %v2613
        %v3469 = vpop.permute.xlu0 %3468
        %v3471 = vmul.f32 %v2577, %v3457
        %v3472 = vmul.f32 %v2578, %v3457
        %v3473 = vmul.f32 %v2579, %v3457
        %v3474 = vmul.f32 %v2580, %v3457
        %v3475 = vmul.f32 %v2581, %v3457
        %v3476 = vmul.f32 %v2582, %v3457
        %v3477 = vmul.f32 %v2583, %v3457
        %v3478 = vmul.f32 %v2584, %v3457
        %v3479 = vmul.f32 %v2585, %v3461
        %v3480 = vmul.f32 %v2586, %v3461
        %v3481 = vmul.f32 %v2587, %v3461
        %v3482 = vmul.f32 %v2588, %v3461
        %v3483 = vmul.f32 %v2589, %v3461
        %v3484 = vmul.f32 %v2590, %v3461
        %v3485 = vmul.f32 %v2591, %v3461
        %v3486 = vmul.f32 %v2592, %v3461
        %v3487 = vmul.f32 %v2593, %v3465
        %v3488 = vmul.f32 %v2594, %v3465
        %v3489 = vmul.f32 %v2595, %v3465
        %v3490 = vmul.f32 %v2596, %v3465
        %v3491 = vmul.f32 %v2597, %v3465
        %v3492 = vmul.f32 %v2598, %v3465
        %v3493 = vmul.f32 %v2599, %v3465
        %v3494 = vmul.f32 %v2600, %v3465
        %v3495 = vmul.f32 %v2601, %v3469
        %v3496 = vmul.f32 %v2602, %v3469
        %v3497 = vmul.f32 %v2603, %v3469
        %v3498 = vmul.f32 %v2604, %v3469
        %v3499 = vmul.f32 %v2605, %v3469
        %v3500 = vmul.f32 %v2606, %v3469
        %v3501 = vmul.f32 %v2607, %v3469
        %v3502 = vmul.f32 %v2608, %v3469
        %v3503 = vadd.f32 %v3423, %v3471
        %v3504 = vadd.f32 %v3424, %v3472
        %v3505 = vadd.f32 %v3425, %v3473
        %v3506 = vadd.f32 %v3426, %v3474
        %v3507 = vadd.f32 %v3427, %v3475
        %v3508 = vadd.f32 %v3428, %v3476
        %v3509 = vadd.f32 %v3429, %v3477
        %v3510 = vadd.f32 %v3430, %v3478
        %v3511 = vadd.f32 %v3431, %v3479
        %v3512 = vadd.f32 %v3432, %v3480
        %v3513 = vadd.f32 %v3433, %v3481
        %v3514 = vadd.f32 %v3434, %v3482
        %v3515 = vadd.f32 %v3435, %v3483
        %v3516 = vadd.f32 %v3436, %v3484
        %v3517 = vadd.f32 %v3437, %v3485
        %v3518 = vadd.f32 %v3438, %v3486
        %v3519 = vadd.f32 %v3439, %v3487
        %v3520 = vadd.f32 %v3440, %v3488
        %v3521 = vadd.f32 %v3441, %v3489
        %v3522 = vadd.f32 %v3442, %v3490
        %v3523 = vadd.f32 %v3443, %v3491
        %v3524 = vadd.f32 %v3444, %v3492
        %v3525 = vadd.f32 %v3445, %v3493
        %v3526 = vadd.f32 %v3446, %v3494
        %v3527 = vadd.f32 %v3447, %v3495
        %v3528 = vadd.f32 %v3448, %v3496
        %v3529 = vadd.f32 %v3449, %v3497
        %v3530 = vadd.f32 %v3450, %v3498
        %v3531 = vadd.f32 %v3451, %v3499
        %v3532 = vadd.f32 %v3452, %v3500
        %v3533 = vadd.f32 %v3453, %v3501
        %v3534 = vadd.f32 %v3454, %v3502
        %3535 = vrot.lane.b32.xlu0 %v2577, 127
        %v3536 = vpop.permute.xlu0 %3535
        %3537 = vrot.lane.b32.xlu0 %v2585, 127
        %v3538 = vpop.permute.xlu0 %3537
        %3539 = vrot.lane.b32.xlu0 %v2593, 127
        %v3540 = vpop.permute.xlu0 %3539
        %3541 = vrot.lane.b32.xlu0 %v2601, 127
        %v3542 = vpop.permute.xlu0 %3541
        %3543 = vrot.lane.b32.xlu0 %v2578, 127
        %v3544 = vpop.permute.xlu0 %3543
        %3545 = vrot.lane.b32.xlu0 %v2586, 127
        %v3546 = vpop.permute.xlu0 %3545
        %3547 = vrot.lane.b32.xlu0 %v2594, 127
        %v3548 = vpop.permute.xlu0 %3547
        %3549 = vrot.lane.b32.xlu0 %v2602, 127
        %v3550 = vpop.permute.xlu0 %3549
        %3551 = vrot.lane.b32.xlu0 %v2579, 127
        %v3552 = vpop.permute.xlu0 %3551
        %3553 = vrot.lane.b32.xlu0 %v2587, 127
        %v3554 = vpop.permute.xlu0 %3553
        %3555 = vrot.lane.b32.xlu0 %v2595, 127
        %v3556 = vpop.permute.xlu0 %3555
        %3557 = vrot.lane.b32.xlu0 %v2603, 127
        %v3558 = vpop.permute.xlu0 %3557
        %3559 = vrot.lane.b32.xlu0 %v2580, 127
        %v3560 = vpop.permute.xlu0 %3559
        %3561 = vrot.lane.b32.xlu0 %v2588, 127
        %v3562 = vpop.permute.xlu0 %3561
        %3563 = vrot.lane.b32.xlu0 %v2596, 127
        %v3564 = vpop.permute.xlu0 %3563
        %3565 = vrot.lane.b32.xlu0 %v2604, 127
        %v3566 = vpop.permute.xlu0 %3565
        %3567 = vrot.lane.b32.xlu0 %v2581, 127
        %v3568 = vpop.permute.xlu0 %3567
        %3569 = vrot.lane.b32.xlu0 %v2589, 127
        %v3570 = vpop.permute.xlu0 %3569
        %3571 = vrot.lane.b32.xlu0 %v2597, 127
        %v3572 = vpop.permute.xlu0 %3571
        %3573 = vrot.lane.b32.xlu0 %v2605, 127
        %v3574 = vpop.permute.xlu0 %3573
        %3575 = vrot.lane.b32.xlu0 %v2582, 127
        %v3576 = vpop.permute.xlu0 %3575
        %3577 = vrot.lane.b32.xlu0 %v2590, 127
        %v3578 = vpop.permute.xlu0 %3577
        %3579 = vrot.lane.b32.xlu0 %v2598, 127
        %v3580 = vpop.permute.xlu0 %3579
        %3581 = vrot.lane.b32.xlu0 %v2606, 127
        %v3582 = vpop.permute.xlu0 %3581
        %3583 = vrot.lane.b32.xlu0 %v2583, 127
        %v3584 = vpop.permute.xlu0 %3583
        %3585 = vrot.lane.b32.xlu0 %v2591, 127
        %v3586 = vpop.permute.xlu0 %3585
        %3587 = vrot.lane.b32.xlu0 %v2599, 127
        %v3588 = vpop.permute.xlu0 %3587
        %3589 = vrot.lane.b32.xlu0 %v2607, 127
        %v3590 = vpop.permute.xlu0 %3589
        %3591 = vrot.lane.b32.xlu0 %v2584, 127
        %v3592 = vpop.permute.xlu0 %3591
        %3593 = vrot.lane.b32.xlu0 %v2592, 127
        %v3594 = vpop.permute.xlu0 %3593
        %3595 = vrot.lane.b32.xlu0 %v2600, 127
        %v3596 = vpop.permute.xlu0 %3595
        %3597 = vrot.lane.b32.xlu0 %v2608, 127
        %v3598 = vpop.permute.xlu0 %3597
        %v3599 = vsel %vm1456, %v3584, %v3592
        %v3600 = vsel %vm1456, %v3586, %v3594
        %v3601 = vsel %vm1456, %v3588, %v3596
        %v3602 = vsel %vm1456, %v3590, %v3598
        %v3603 = vsel %vm1456, %v3576, %v3584
        %v3604 = vsel %vm1456, %v3578, %v3586
        %v3605 = vsel %vm1456, %v3580, %v3588
        %v3606 = vsel %vm1456, %v3582, %v3590
        %v3607 = vsel %vm1456, %v3568, %v3576
        %v3608 = vsel %vm1456, %v3570, %v3578
        %v3609 = vsel %vm1456, %v3572, %v3580
        %v3610 = vsel %vm1456, %v3574, %v3582
        %v3611 = vsel %vm1456, %v3560, %v3568
        %v3612 = vsel %vm1456, %v3562, %v3570
        %v3613 = vsel %vm1456, %v3564, %v3572
        %v3614 = vsel %vm1456, %v3566, %v3574
        %v3615 = vsel %vm1456, %v3552, %v3560
        %v3616 = vsel %vm1456, %v3554, %v3562
        %v3617 = vsel %vm1456, %v3556, %v3564
        %v3618 = vsel %vm1456, %v3558, %v3566
        %v3619 = vsel %vm1456, %v3544, %v3552
        %v3620 = vsel %vm1456, %v3546, %v3554
        %v3621 = vsel %vm1456, %v3548, %v3556
        %v3622 = vsel %vm1456, %v3550, %v3558
        %v3623 = vsel %vm1456, %v3536, %v3544
        %v3624 = vsel %vm1456, %v3538, %v3546
        %v3625 = vsel %vm1456, %v3540, %v3548
        %v3626 = vsel %vm1456, %v3542, %v3550
        %v3627 = vsel %vm1456, %v3592, %v3536
        %v3628 = vsel %vm1456, %v3594, %v3538
        %v3629 = vsel %vm1456, %v3596, %v3540
        %v3630 = vsel %vm1456, %v3598, %v3542
        %v3631 = vsel %vm1497, %v3623, 0.0
        %v3632 = vsel %vm1498, %v3619, 0.0
        %v3633 = vsel %vm1499, %v3615, 0.0
        %v3634 = vsel %vm1500, %v3611, 0.0
        %v3635 = vsel %vm1501, %v3607, 0.0
        %v3636 = vsel %vm1502, %v3603, 0.0
        %v3637 = vsel %vm1503, %v3599, 0.0
        %v3638 = vsel %vm1504, %v3627, 0.0
        %v3639 = vsel %vm1497, %v3624, 0.0
        %v3640 = vsel %vm1498, %v3620, 0.0
        %v3641 = vsel %vm1499, %v3616, 0.0
        %v3642 = vsel %vm1500, %v3612, 0.0
        %v3643 = vsel %vm1501, %v3608, 0.0
        %v3644 = vsel %vm1502, %v3604, 0.0
        %v3645 = vsel %vm1503, %v3600, 0.0
        %v3646 = vsel %vm1504, %v3628, 0.0
        %v3647 = vsel %vm1497, %v3625, 0.0
        %v3648 = vsel %vm1498, %v3621, 0.0
        %v3649 = vsel %vm1499, %v3617, 0.0
        %v3650 = vsel %vm1500, %v3613, 0.0
        %v3651 = vsel %vm1501, %v3609, 0.0
        %v3652 = vsel %vm1502, %v3605, 0.0
        %v3653 = vsel %vm1503, %v3601, 0.0
        %v3654 = vsel %vm1504, %v3629, 0.0
        %v3655 = vsel %vm1497, %v3626, 0.0
        %v3656 = vsel %vm1498, %v3622, 0.0
        %v3657 = vsel %vm1499, %v3618, 0.0
        %v3658 = vsel %vm1500, %v3614, 0.0
        %v3659 = vsel %vm1501, %v3610, 0.0
        %v3660 = vsel %vm1502, %v3606, 0.0
        %v3661 = vsel %vm1503, %v3602, 0.0
        %v3662 = vsel %vm1504, %v3630, 0.0
        %3663 = vset.pattern.permute.xlu0 5
        %3664 = vperm.xlu0 %3663, %v2610
        %v3665 = vpop.permute.xlu0 %3664
        %3667 = vset.pattern.permute.xlu0 5
        %3668 = vperm.xlu0 %3667, %v2611
        %v3669 = vpop.permute.xlu0 %3668
        %3671 = vset.pattern.permute.xlu0 5
        %3672 = vperm.xlu0 %3671, %v2612
        %v3673 = vpop.permute.xlu0 %3672
        %3675 = vset.pattern.permute.xlu0 5
        %3676 = vperm.xlu0 %3675, %v2613
        %v3677 = vpop.permute.xlu0 %3676
        %v3679 = vmul.f32 %v3631, %v3665
        %v3680 = vmul.f32 %v3632, %v3665
        %v3681 = vmul.f32 %v3633, %v3665
        %v3682 = vmul.f32 %v3634, %v3665
        %v3683 = vmul.f32 %v3635, %v3665
        %v3684 = vmul.f32 %v3636, %v3665
        %v3685 = vmul.f32 %v3637, %v3665
        %v3686 = vmul.f32 %v3638, %v3665
        %v3687 = vmul.f32 %v3639, %v3669
        %v3688 = vmul.f32 %v3640, %v3669
        %v3689 = vmul.f32 %v3641, %v3669
        %v3690 = vmul.f32 %v3642, %v3669
        %v3691 = vmul.f32 %v3643, %v3669
        %v3692 = vmul.f32 %v3644, %v3669
        %v3693 = vmul.f32 %v3645, %v3669
        %v3694 = vmul.f32 %v3646, %v3669
        %v3695 = vmul.f32 %v3647, %v3673
        %v3696 = vmul.f32 %v3648, %v3673
        %v3697 = vmul.f32 %v3649, %v3673
        %v3698 = vmul.f32 %v3650, %v3673
        %v3699 = vmul.f32 %v3651, %v3673
        %v3700 = vmul.f32 %v3652, %v3673
        %v3701 = vmul.f32 %v3653, %v3673
        %v3702 = vmul.f32 %v3654, %v3673
        %v3703 = vmul.f32 %v3655, %v3677
        %v3704 = vmul.f32 %v3656, %v3677
        %v3705 = vmul.f32 %v3657, %v3677
        %v3706 = vmul.f32 %v3658, %v3677
        %v3707 = vmul.f32 %v3659, %v3677
        %v3708 = vmul.f32 %v3660, %v3677
        %v3709 = vmul.f32 %v3661, %v3677
        %v3710 = vmul.f32 %v3662, %v3677
        %v3711 = vadd.f32 %v3503, %v3679
        %v3712 = vadd.f32 %v3504, %v3680
        %v3713 = vadd.f32 %v3505, %v3681
        %v3714 = vadd.f32 %v3506, %v3682
        %v3715 = vadd.f32 %v3507, %v3683
        %v3716 = vadd.f32 %v3508, %v3684
        %v3717 = vadd.f32 %v3509, %v3685
        %v3718 = vadd.f32 %v3510, %v3686
        %v3719 = vadd.f32 %v3511, %v3687
        %v3720 = vadd.f32 %v3512, %v3688
        %v3721 = vadd.f32 %v3513, %v3689
        %v3722 = vadd.f32 %v3514, %v3690
        %v3723 = vadd.f32 %v3515, %v3691
        %v3724 = vadd.f32 %v3516, %v3692
        %v3725 = vadd.f32 %v3517, %v3693
        %v3726 = vadd.f32 %v3518, %v3694
        %v3727 = vadd.f32 %v3519, %v3695
        %v3728 = vadd.f32 %v3520, %v3696
        %v3729 = vadd.f32 %v3521, %v3697
        %v3730 = vadd.f32 %v3522, %v3698
        %v3731 = vadd.f32 %v3523, %v3699
        %v3732 = vadd.f32 %v3524, %v3700
        %v3733 = vadd.f32 %v3525, %v3701
        %v3734 = vadd.f32 %v3526, %v3702
        %v3735 = vadd.f32 %v3527, %v3703
        %v3736 = vadd.f32 %v3528, %v3704
        %v3737 = vadd.f32 %v3529, %v3705
        %v3738 = vadd.f32 %v3530, %v3706
        %v3739 = vadd.f32 %v3531, %v3707
        %v3740 = vadd.f32 %v3532, %v3708
        %v3741 = vadd.f32 %v3533, %v3709
        %v3742 = vadd.f32 %v3534, %v3710
        %3743 = vrot.lane.b32.xlu0 %v2577, 113
        %v3744 = vpop.permute.xlu0 %3743
        %3745 = vrot.lane.b32.xlu0 %v2585, 113
        %v3746 = vpop.permute.xlu0 %3745
        %3747 = vrot.lane.b32.xlu0 %v2593, 113
        %v3748 = vpop.permute.xlu0 %3747
        %3749 = vrot.lane.b32.xlu0 %v2601, 113
        %v3750 = vpop.permute.xlu0 %3749
        %3751 = vrot.lane.b32.xlu0 %v2578, 113
        %v3752 = vpop.permute.xlu0 %3751
        %3753 = vrot.lane.b32.xlu0 %v2586, 113
        %v3754 = vpop.permute.xlu0 %3753
        %3755 = vrot.lane.b32.xlu0 %v2594, 113
        %v3756 = vpop.permute.xlu0 %3755
        %3757 = vrot.lane.b32.xlu0 %v2602, 113
        %v3758 = vpop.permute.xlu0 %3757
        %3759 = vrot.lane.b32.xlu0 %v2579, 113
        %v3760 = vpop.permute.xlu0 %3759
        %3761 = vrot.lane.b32.xlu0 %v2587, 113
        %v3762 = vpop.permute.xlu0 %3761
        %3763 = vrot.lane.b32.xlu0 %v2595, 113
        %v3764 = vpop.permute.xlu0 %3763
        %3765 = vrot.lane.b32.xlu0 %v2603, 113
        %v3766 = vpop.permute.xlu0 %3765
        %3767 = vrot.lane.b32.xlu0 %v2580, 113
        %v3768 = vpop.permute.xlu0 %3767
        %3769 = vrot.lane.b32.xlu0 %v2588, 113
        %v3770 = vpop.permute.xlu0 %3769
        %3771 = vrot.lane.b32.xlu0 %v2596, 113
        %v3772 = vpop.permute.xlu0 %3771
        %3773 = vrot.lane.b32.xlu0 %v2604, 113
        %v3774 = vpop.permute.xlu0 %3773
        %3775 = vrot.lane.b32.xlu0 %v2581, 113
        %v3776 = vpop.permute.xlu0 %3775
        %3777 = vrot.lane.b32.xlu0 %v2589, 113
        %v3778 = vpop.permute.xlu0 %3777
        %3779 = vrot.lane.b32.xlu0 %v2597, 113
        %v3780 = vpop.permute.xlu0 %3779
        %3781 = vrot.lane.b32.xlu0 %v2605, 113
        %v3782 = vpop.permute.xlu0 %3781
        %3783 = vrot.lane.b32.xlu0 %v2582, 113
        %v3784 = vpop.permute.xlu0 %3783
        %3785 = vrot.lane.b32.xlu0 %v2590, 113
        %v3786 = vpop.permute.xlu0 %3785
        %3787 = vrot.lane.b32.xlu0 %v2598, 113
        %v3788 = vpop.permute.xlu0 %3787
        %3789 = vrot.lane.b32.xlu0 %v2606, 113
        %v3790 = vpop.permute.xlu0 %3789
        %3791 = vrot.lane.b32.xlu0 %v2583, 113
        %v3792 = vpop.permute.xlu0 %3791
        %3793 = vrot.lane.b32.xlu0 %v2591, 113
        %v3794 = vpop.permute.xlu0 %3793
        %3795 = vrot.lane.b32.xlu0 %v2599, 113
        %v3796 = vpop.permute.xlu0 %3795
        %3797 = vrot.lane.b32.xlu0 %v2607, 113
        %v3798 = vpop.permute.xlu0 %3797
        %3799 = vrot.lane.b32.xlu0 %v2584, 113
        %v3800 = vpop.permute.xlu0 %3799
        %3801 = vrot.lane.b32.xlu0 %v2592, 113
        %v3802 = vpop.permute.xlu0 %3801
        %3803 = vrot.lane.b32.xlu0 %v2600, 113
        %v3804 = vpop.permute.xlu0 %3803
        %3805 = vrot.lane.b32.xlu0 %v2608, 113
        %v3806 = vpop.permute.xlu0 %3805
        %v3807 = vsel %vm1681, %v3792, %v3800
        %v3808 = vsel %vm1681, %v3794, %v3802
        %v3809 = vsel %vm1681, %v3796, %v3804
        %v3810 = vsel %vm1681, %v3798, %v3806
        %v3811 = vsel %vm1681, %v3784, %v3792
        %v3812 = vsel %vm1681, %v3786, %v3794
        %v3813 = vsel %vm1681, %v3788, %v3796
        %v3814 = vsel %vm1681, %v3790, %v3798
        %v3815 = vsel %vm1681, %v3776, %v3784
        %v3816 = vsel %vm1681, %v3778, %v3786
        %v3817 = vsel %vm1681, %v3780, %v3788
        %v3818 = vsel %vm1681, %v3782, %v3790
        %v3819 = vsel %vm1681, %v3768, %v3776
        %v3820 = vsel %vm1681, %v3770, %v3778
        %v3821 = vsel %vm1681, %v3772, %v3780
        %v3822 = vsel %vm1681, %v3774, %v3782
        %v3823 = vsel %vm1681, %v3760, %v3768
        %v3824 = vsel %vm1681, %v3762, %v3770
        %v3825 = vsel %vm1681, %v3764, %v3772
        %v3826 = vsel %vm1681, %v3766, %v3774
        %v3827 = vsel %vm1681, %v3752, %v3760
        %v3828 = vsel %vm1681, %v3754, %v3762
        %v3829 = vsel %vm1681, %v3756, %v3764
        %v3830 = vsel %vm1681, %v3758, %v3766
        %v3831 = vsel %vm1681, %v3744, %v3752
        %v3832 = vsel %vm1681, %v3746, %v3754
        %v3833 = vsel %vm1681, %v3748, %v3756
        %v3834 = vsel %vm1681, %v3750, %v3758
        %v3835 = vsel %vm1681, %v3800, %v3744
        %v3836 = vsel %vm1681, %v3802, %v3746
        %v3837 = vsel %vm1681, %v3804, %v3748
        %v3838 = vsel %vm1681, %v3806, %v3750
        %v3839 = vsel %vm1722, %v3831, 0.0
        %v3840 = vsel %vm1723, %v3827, 0.0
        %v3841 = vsel %vm1724, %v3823, 0.0
        %v3842 = vsel %vm1725, %v3819, 0.0
        %v3843 = vsel %vm1726, %v3815, 0.0
        %v3844 = vsel %vm1727, %v3811, 0.0
        %v3845 = vsel %vm1728, %v3807, 0.0
        %v3846 = vsel %vm1729, %v3835, 0.0
        %v3847 = vsel %vm1722, %v3832, 0.0
        %v3848 = vsel %vm1723, %v3828, 0.0
        %v3849 = vsel %vm1724, %v3824, 0.0
        %v3850 = vsel %vm1725, %v3820, 0.0
        %v3851 = vsel %vm1726, %v3816, 0.0
        %v3852 = vsel %vm1727, %v3812, 0.0
        %v3853 = vsel %vm1728, %v3808, 0.0
        %v3854 = vsel %vm1729, %v3836, 0.0
        %v3855 = vsel %vm1722, %v3833, 0.0
        %v3856 = vsel %vm1723, %v3829, 0.0
        %v3857 = vsel %vm1724, %v3825, 0.0
        %v3858 = vsel %vm1725, %v3821, 0.0
        %v3859 = vsel %vm1726, %v3817, 0.0
        %v3860 = vsel %vm1727, %v3813, 0.0
        %v3861 = vsel %vm1728, %v3809, 0.0
        %v3862 = vsel %vm1729, %v3837, 0.0
        %v3863 = vsel %vm1722, %v3834, 0.0
        %v3864 = vsel %vm1723, %v3830, 0.0
        %v3865 = vsel %vm1724, %v3826, 0.0
        %v3866 = vsel %vm1725, %v3822, 0.0
        %v3867 = vsel %vm1726, %v3818, 0.0
        %v3868 = vsel %vm1727, %v3814, 0.0
        %v3869 = vsel %vm1728, %v3810, 0.0
        %v3870 = vsel %vm1729, %v3838, 0.0
        %3871 = vset.pattern.permute.xlu0 6
        %3872 = vperm.xlu0 %3871, %v2610
        %v3873 = vpop.permute.xlu0 %3872
        %3875 = vset.pattern.permute.xlu0 6
        %3876 = vperm.xlu0 %3875, %v2611
        %v3877 = vpop.permute.xlu0 %3876
        %3879 = vset.pattern.permute.xlu0 6
        %3880 = vperm.xlu0 %3879, %v2612
        %v3881 = vpop.permute.xlu0 %3880
        %3883 = vset.pattern.permute.xlu0 6
        %3884 = vperm.xlu0 %3883, %v2613
        %v3885 = vpop.permute.xlu0 %3884
        %v3887 = vmul.f32 %v3839, %v3873
        %v3888 = vmul.f32 %v3840, %v3873
        %v3889 = vmul.f32 %v3841, %v3873
        %v3890 = vmul.f32 %v3842, %v3873
        %v3891 = vmul.f32 %v3843, %v3873
        %v3892 = vmul.f32 %v3844, %v3873
        %v3893 = vmul.f32 %v3845, %v3873
        %v3894 = vmul.f32 %v3846, %v3873
        %v3895 = vmul.f32 %v3847, %v3877
        %v3896 = vmul.f32 %v3848, %v3877
        %v3897 = vmul.f32 %v3849, %v3877
        %v3898 = vmul.f32 %v3850, %v3877
        %v3899 = vmul.f32 %v3851, %v3877
        %v3900 = vmul.f32 %v3852, %v3877
        %v3901 = vmul.f32 %v3853, %v3877
        %v3902 = vmul.f32 %v3854, %v3877
        %v3903 = vmul.f32 %v3855, %v3881
        %v3904 = vmul.f32 %v3856, %v3881
        %v3905 = vmul.f32 %v3857, %v3881
        %v3906 = vmul.f32 %v3858, %v3881
        %v3907 = vmul.f32 %v3859, %v3881
        %v3908 = vmul.f32 %v3860, %v3881
        %v3909 = vmul.f32 %v3861, %v3881
        %v3910 = vmul.f32 %v3862, %v3881
        %v3911 = vmul.f32 %v3863, %v3885
        %v3912 = vmul.f32 %v3864, %v3885
        %v3913 = vmul.f32 %v3865, %v3885
        %v3914 = vmul.f32 %v3866, %v3885
        %v3915 = vmul.f32 %v3867, %v3885
        %v3916 = vmul.f32 %v3868, %v3885
        %v3917 = vmul.f32 %v3869, %v3885
        %v3918 = vmul.f32 %v3870, %v3885
        %v3919 = vadd.f32 %v3711, %v3887
        %v3920 = vadd.f32 %v3712, %v3888
        %v3921 = vadd.f32 %v3713, %v3889
        %v3922 = vadd.f32 %v3714, %v3890
        %v3923 = vadd.f32 %v3715, %v3891
        %v3924 = vadd.f32 %v3716, %v3892
        %v3925 = vadd.f32 %v3717, %v3893
        %v3926 = vadd.f32 %v3718, %v3894
        %v3927 = vadd.f32 %v3719, %v3895
        %v3928 = vadd.f32 %v3720, %v3896
        %v3929 = vadd.f32 %v3721, %v3897
        %v3930 = vadd.f32 %v3722, %v3898
        %v3931 = vadd.f32 %v3723, %v3899
        %v3932 = vadd.f32 %v3724, %v3900
        %v3933 = vadd.f32 %v3725, %v3901
        %v3934 = vadd.f32 %v3726, %v3902
        %v3935 = vadd.f32 %v3727, %v3903
        %v3936 = vadd.f32 %v3728, %v3904
        %v3937 = vadd.f32 %v3729, %v3905
        %v3938 = vadd.f32 %v3730, %v3906
        %v3939 = vadd.f32 %v3731, %v3907
        %v3940 = vadd.f32 %v3732, %v3908
        %v3941 = vadd.f32 %v3733, %v3909
        %v3942 = vadd.f32 %v3734, %v3910
        %v3943 = vadd.f32 %v3735, %v3911
        %v3944 = vadd.f32 %v3736, %v3912
        %v3945 = vadd.f32 %v3737, %v3913
        %v3946 = vadd.f32 %v3738, %v3914
        %v3947 = vadd.f32 %v3739, %v3915
        %v3948 = vadd.f32 %v3740, %v3916
        %v3949 = vadd.f32 %v3741, %v3917
        %v3950 = vadd.f32 %v3742, %v3918
        %3951 = vrot.lane.b32.xlu0 %v2577, 112
        %v3952 = vpop.permute.xlu0 %3951
        %3953 = vrot.lane.b32.xlu0 %v2585, 112
        %v3954 = vpop.permute.xlu0 %3953
        %3955 = vrot.lane.b32.xlu0 %v2593, 112
        %v3956 = vpop.permute.xlu0 %3955
        %3957 = vrot.lane.b32.xlu0 %v2601, 112
        %v3958 = vpop.permute.xlu0 %3957
        %3959 = vrot.lane.b32.xlu0 %v2578, 112
        %v3960 = vpop.permute.xlu0 %3959
        %3961 = vrot.lane.b32.xlu0 %v2586, 112
        %v3962 = vpop.permute.xlu0 %3961
        %3963 = vrot.lane.b32.xlu0 %v2594, 112
        %v3964 = vpop.permute.xlu0 %3963
        %3965 = vrot.lane.b32.xlu0 %v2602, 112
        %v3966 = vpop.permute.xlu0 %3965
        %3967 = vrot.lane.b32.xlu0 %v2579, 112
        %v3968 = vpop.permute.xlu0 %3967
        %3969 = vrot.lane.b32.xlu0 %v2587, 112
        %v3970 = vpop.permute.xlu0 %3969
        %3971 = vrot.lane.b32.xlu0 %v2595, 112
        %v3972 = vpop.permute.xlu0 %3971
        %3973 = vrot.lane.b32.xlu0 %v2603, 112
        %v3974 = vpop.permute.xlu0 %3973
        %3975 = vrot.lane.b32.xlu0 %v2580, 112
        %v3976 = vpop.permute.xlu0 %3975
        %3977 = vrot.lane.b32.xlu0 %v2588, 112
        %v3978 = vpop.permute.xlu0 %3977
        %3979 = vrot.lane.b32.xlu0 %v2596, 112
        %v3980 = vpop.permute.xlu0 %3979
        %3981 = vrot.lane.b32.xlu0 %v2604, 112
        %v3982 = vpop.permute.xlu0 %3981
        %3983 = vrot.lane.b32.xlu0 %v2581, 112
        %v3984 = vpop.permute.xlu0 %3983
        %3985 = vrot.lane.b32.xlu0 %v2589, 112
        %v3986 = vpop.permute.xlu0 %3985
        %3987 = vrot.lane.b32.xlu0 %v2597, 112
        %v3988 = vpop.permute.xlu0 %3987
        %3989 = vrot.lane.b32.xlu0 %v2605, 112
        %v3990 = vpop.permute.xlu0 %3989
        %3991 = vrot.lane.b32.xlu0 %v2582, 112
        %v3992 = vpop.permute.xlu0 %3991
        %3993 = vrot.lane.b32.xlu0 %v2590, 112
        %v3994 = vpop.permute.xlu0 %3993
        %3995 = vrot.lane.b32.xlu0 %v2598, 112
        %v3996 = vpop.permute.xlu0 %3995
        %3997 = vrot.lane.b32.xlu0 %v2606, 112
        %v3998 = vpop.permute.xlu0 %3997
        %3999 = vrot.lane.b32.xlu0 %v2583, 112
        %v4000 = vpop.permute.xlu0 %3999
        %4001 = vrot.lane.b32.xlu0 %v2591, 112
        %v4002 = vpop.permute.xlu0 %4001
        %4003 = vrot.lane.b32.xlu0 %v2599, 112
        %v4004 = vpop.permute.xlu0 %4003
        %4005 = vrot.lane.b32.xlu0 %v2607, 112
        %v4006 = vpop.permute.xlu0 %4005
        %4007 = vrot.lane.b32.xlu0 %v2584, 112
        %v4008 = vpop.permute.xlu0 %4007
        %4009 = vrot.lane.b32.xlu0 %v2592, 112
        %v4010 = vpop.permute.xlu0 %4009
        %4011 = vrot.lane.b32.xlu0 %v2600, 112
        %v4012 = vpop.permute.xlu0 %4011
        %4013 = vrot.lane.b32.xlu0 %v2608, 112
        %v4014 = vpop.permute.xlu0 %4013
        %v4015 = vsel %vm1906, %v4000, %v4008
        %v4016 = vsel %vm1906, %v4002, %v4010
        %v4017 = vsel %vm1906, %v4004, %v4012
        %v4018 = vsel %vm1906, %v4006, %v4014
        %v4019 = vsel %vm1906, %v3992, %v4000
        %v4020 = vsel %vm1906, %v3994, %v4002
        %v4021 = vsel %vm1906, %v3996, %v4004
        %v4022 = vsel %vm1906, %v3998, %v4006
        %v4023 = vsel %vm1906, %v3984, %v3992
        %v4024 = vsel %vm1906, %v3986, %v3994
        %v4025 = vsel %vm1906, %v3988, %v3996
        %v4026 = vsel %vm1906, %v3990, %v3998
        %v4027 = vsel %vm1906, %v3976, %v3984
        %v4028 = vsel %vm1906, %v3978, %v3986
        %v4029 = vsel %vm1906, %v3980, %v3988
        %v4030 = vsel %vm1906, %v3982, %v3990
        %v4031 = vsel %vm1906, %v3968, %v3976
        %v4032 = vsel %vm1906, %v3970, %v3978
        %v4033 = vsel %vm1906, %v3972, %v3980
        %v4034 = vsel %vm1906, %v3974, %v3982
        %v4035 = vsel %vm1906, %v3960, %v3968
        %v4036 = vsel %vm1906, %v3962, %v3970
        %v4037 = vsel %vm1906, %v3964, %v3972
        %v4038 = vsel %vm1906, %v3966, %v3974
        %v4039 = vsel %vm1906, %v3952, %v3960
        %v4040 = vsel %vm1906, %v3954, %v3962
        %v4041 = vsel %vm1906, %v3956, %v3964
        %v4042 = vsel %vm1906, %v3958, %v3966
        %v4043 = vsel %vm1906, %v4008, %v3952
        %v4044 = vsel %vm1906, %v4010, %v3954
        %v4045 = vsel %vm1906, %v4012, %v3956
        %v4046 = vsel %vm1906, %v4014, %v3958
        %v4047 = vsel %vm1947, %v4039, 0.0
        %v4048 = vsel %vm1948, %v4035, 0.0
        %v4049 = vsel %vm1949, %v4031, 0.0
        %v4050 = vsel %vm1950, %v4027, 0.0
        %v4051 = vsel %vm1951, %v4023, 0.0
        %v4052 = vsel %vm1952, %v4019, 0.0
        %v4053 = vsel %vm1953, %v4015, 0.0
        %v4054 = vsel %vm1954, %v4043, 0.0
        %v4055 = vsel %vm1947, %v4040, 0.0
        %v4056 = vsel %vm1948, %v4036, 0.0
        %v4057 = vsel %vm1949, %v4032, 0.0
        %v4058 = vsel %vm1950, %v4028, 0.0
        %v4059 = vsel %vm1951, %v4024, 0.0
        %v4060 = vsel %vm1952, %v4020, 0.0
        %v4061 = vsel %vm1953, %v4016, 0.0
        %v4062 = vsel %vm1954, %v4044, 0.0
        %v4063 = vsel %vm1947, %v4041, 0.0
        %v4064 = vsel %vm1948, %v4037, 0.0
        %v4065 = vsel %vm1949, %v4033, 0.0
        %v4066 = vsel %vm1950, %v4029, 0.0
        %v4067 = vsel %vm1951, %v4025, 0.0
        %v4068 = vsel %vm1952, %v4021, 0.0
        %v4069 = vsel %vm1953, %v4017, 0.0
        %v4070 = vsel %vm1954, %v4045, 0.0
        %v4071 = vsel %vm1947, %v4042, 0.0
        %v4072 = vsel %vm1948, %v4038, 0.0
        %v4073 = vsel %vm1949, %v4034, 0.0
        %v4074 = vsel %vm1950, %v4030, 0.0
        %v4075 = vsel %vm1951, %v4026, 0.0
        %v4076 = vsel %vm1952, %v4022, 0.0
        %v4077 = vsel %vm1953, %v4018, 0.0
        %v4078 = vsel %vm1954, %v4046, 0.0
        %4079 = vset.pattern.permute.xlu0 7
        %4080 = vperm.xlu0 %4079, %v2610
        %v4081 = vpop.permute.xlu0 %4080
        %4083 = vset.pattern.permute.xlu0 7
        %4084 = vperm.xlu0 %4083, %v2611
        %v4085 = vpop.permute.xlu0 %4084
        %4087 = vset.pattern.permute.xlu0 7
        %4088 = vperm.xlu0 %4087, %v2612
        %v4089 = vpop.permute.xlu0 %4088
        %4091 = vset.pattern.permute.xlu0 7
        %4092 = vperm.xlu0 %4091, %v2613
        %v4093 = vpop.permute.xlu0 %4092
        %v4095 = vmul.f32 %v4047, %v4081
        %v4096 = vmul.f32 %v4048, %v4081
        %v4097 = vmul.f32 %v4049, %v4081
        %v4098 = vmul.f32 %v4050, %v4081
        %v4099 = vmul.f32 %v4051, %v4081
        %v4100 = vmul.f32 %v4052, %v4081
        %v4101 = vmul.f32 %v4053, %v4081
        %v4102 = vmul.f32 %v4054, %v4081
        %v4103 = vmul.f32 %v4055, %v4085
        %v4104 = vmul.f32 %v4056, %v4085
        %v4105 = vmul.f32 %v4057, %v4085
        %v4106 = vmul.f32 %v4058, %v4085
        %v4107 = vmul.f32 %v4059, %v4085
        %v4108 = vmul.f32 %v4060, %v4085
        %v4109 = vmul.f32 %v4061, %v4085
        %v4110 = vmul.f32 %v4062, %v4085
        %v4111 = vmul.f32 %v4063, %v4089
        %v4112 = vmul.f32 %v4064, %v4089
        %v4113 = vmul.f32 %v4065, %v4089
        %v4114 = vmul.f32 %v4066, %v4089
        %v4115 = vmul.f32 %v4067, %v4089
        %v4116 = vmul.f32 %v4068, %v4089
        %v4117 = vmul.f32 %v4069, %v4089
        %v4118 = vmul.f32 %v4070, %v4089
        %v4119 = vmul.f32 %v4071, %v4093
        %v4120 = vmul.f32 %v4072, %v4093
        %v4121 = vmul.f32 %v4073, %v4093
        %v4122 = vmul.f32 %v4074, %v4093
        %v4123 = vmul.f32 %v4075, %v4093
        %v4124 = vmul.f32 %v4076, %v4093
        %v4125 = vmul.f32 %v4077, %v4093
        %v4126 = vmul.f32 %v4078, %v4093
        %v4127 = vadd.f32 %v3919, %v4095
        %v4128 = vadd.f32 %v3920, %v4096
        %v4129 = vadd.f32 %v3921, %v4097
        %v4130 = vadd.f32 %v3922, %v4098
        %v4131 = vadd.f32 %v3923, %v4099
        %v4132 = vadd.f32 %v3924, %v4100
        %v4133 = vadd.f32 %v3925, %v4101
        %v4134 = vadd.f32 %v3926, %v4102
        %v4135 = vadd.f32 %v3927, %v4103
        %v4136 = vadd.f32 %v3928, %v4104
        %v4137 = vadd.f32 %v3929, %v4105
        %v4138 = vadd.f32 %v3930, %v4106
        %v4139 = vadd.f32 %v3931, %v4107
        %v4140 = vadd.f32 %v3932, %v4108
        %v4141 = vadd.f32 %v3933, %v4109
        %v4142 = vadd.f32 %v3934, %v4110
        %v4143 = vadd.f32 %v3935, %v4111
        %v4144 = vadd.f32 %v3936, %v4112
        %v4145 = vadd.f32 %v3937, %v4113
        %v4146 = vadd.f32 %v3938, %v4114
        %v4147 = vadd.f32 %v3939, %v4115
        %v4148 = vadd.f32 %v3940, %v4116
        %v4149 = vadd.f32 %v3941, %v4117
        %v4150 = vadd.f32 %v3942, %v4118
        %v4151 = vadd.f32 %v3943, %v4119
        %v4152 = vadd.f32 %v3944, %v4120
        %v4153 = vadd.f32 %v3945, %v4121
        %v4154 = vadd.f32 %v3946, %v4122
        %v4155 = vadd.f32 %v3947, %v4123
        %v4156 = vadd.f32 %v3948, %v4124
        %v4157 = vadd.f32 %v3949, %v4125
        %v4158 = vadd.f32 %v3950, %v4126
        %4159 = vrot.lane.b32.xlu0 %v2577, 111
        %v4160 = vpop.permute.xlu0 %4159
        %4161 = vrot.lane.b32.xlu0 %v2585, 111
        %v4162 = vpop.permute.xlu0 %4161
        %4163 = vrot.lane.b32.xlu0 %v2593, 111
        %v4164 = vpop.permute.xlu0 %4163
        %4165 = vrot.lane.b32.xlu0 %v2601, 111
        %v4166 = vpop.permute.xlu0 %4165
        %4167 = vrot.lane.b32.xlu0 %v2578, 111
        %v4168 = vpop.permute.xlu0 %4167
        %4169 = vrot.lane.b32.xlu0 %v2586, 111
        %v4170 = vpop.permute.xlu0 %4169
        %4171 = vrot.lane.b32.xlu0 %v2594, 111
        %v4172 = vpop.permute.xlu0 %4171
        %4173 = vrot.lane.b32.xlu0 %v2602, 111
        %v4174 = vpop.permute.xlu0 %4173
        %4175 = vrot.lane.b32.xlu0 %v2579, 111
        %v4176 = vpop.permute.xlu0 %4175
        %4177 = vrot.lane.b32.xlu0 %v2587, 111
        %v4178 = vpop.permute.xlu0 %4177
        %4179 = vrot.lane.b32.xlu0 %v2595, 111
        %v4180 = vpop.permute.xlu0 %4179
        %4181 = vrot.lane.b32.xlu0 %v2603, 111
        %v4182 = vpop.permute.xlu0 %4181
        %4183 = vrot.lane.b32.xlu0 %v2580, 111
        %v4184 = vpop.permute.xlu0 %4183
        %4185 = vrot.lane.b32.xlu0 %v2588, 111
        %v4186 = vpop.permute.xlu0 %4185
        %4187 = vrot.lane.b32.xlu0 %v2596, 111
        %v4188 = vpop.permute.xlu0 %4187
        %4189 = vrot.lane.b32.xlu0 %v2604, 111
        %v4190 = vpop.permute.xlu0 %4189
        %4191 = vrot.lane.b32.xlu0 %v2581, 111
        %v4192 = vpop.permute.xlu0 %4191
        %4193 = vrot.lane.b32.xlu0 %v2589, 111
        %v4194 = vpop.permute.xlu0 %4193
        %4195 = vrot.lane.b32.xlu0 %v2597, 111
        %v4196 = vpop.permute.xlu0 %4195
        %4197 = vrot.lane.b32.xlu0 %v2605, 111
        %v4198 = vpop.permute.xlu0 %4197
        %4199 = vrot.lane.b32.xlu0 %v2582, 111
        %v4200 = vpop.permute.xlu0 %4199
        %4201 = vrot.lane.b32.xlu0 %v2590, 111
        %v4202 = vpop.permute.xlu0 %4201
        %4203 = vrot.lane.b32.xlu0 %v2598, 111
        %v4204 = vpop.permute.xlu0 %4203
        %4205 = vrot.lane.b32.xlu0 %v2606, 111
        %v4206 = vpop.permute.xlu0 %4205
        %4207 = vrot.lane.b32.xlu0 %v2583, 111
        %v4208 = vpop.permute.xlu0 %4207
        %4209 = vrot.lane.b32.xlu0 %v2591, 111
        %v4210 = vpop.permute.xlu0 %4209
        %4211 = vrot.lane.b32.xlu0 %v2599, 111
        %v4212 = vpop.permute.xlu0 %4211
        %4213 = vrot.lane.b32.xlu0 %v2607, 111
        %v4214 = vpop.permute.xlu0 %4213
        %4215 = vrot.lane.b32.xlu0 %v2584, 111
        %v4216 = vpop.permute.xlu0 %4215
        %4217 = vrot.lane.b32.xlu0 %v2592, 111
        %v4218 = vpop.permute.xlu0 %4217
        %4219 = vrot.lane.b32.xlu0 %v2600, 111
        %v4220 = vpop.permute.xlu0 %4219
        %4221 = vrot.lane.b32.xlu0 %v2608, 111
        %v4222 = vpop.permute.xlu0 %4221
        %v4223 = vsel %vm2131, %v4208, %v4216
        %v4224 = vsel %vm2131, %v4210, %v4218
        %v4225 = vsel %vm2131, %v4212, %v4220
        %v4226 = vsel %vm2131, %v4214, %v4222
        %v4227 = vsel %vm2131, %v4200, %v4208
        %v4228 = vsel %vm2131, %v4202, %v4210
        %v4229 = vsel %vm2131, %v4204, %v4212
        %v4230 = vsel %vm2131, %v4206, %v4214
        %v4231 = vsel %vm2131, %v4192, %v4200
        %v4232 = vsel %vm2131, %v4194, %v4202
        %v4233 = vsel %vm2131, %v4196, %v4204
        %v4234 = vsel %vm2131, %v4198, %v4206
        %v4235 = vsel %vm2131, %v4184, %v4192
        %v4236 = vsel %vm2131, %v4186, %v4194
        %v4237 = vsel %vm2131, %v4188, %v4196
        %v4238 = vsel %vm2131, %v4190, %v4198
        %v4239 = vsel %vm2131, %v4176, %v4184
        %v4240 = vsel %vm2131, %v4178, %v4186
        %v4241 = vsel %vm2131, %v4180, %v4188
        %v4242 = vsel %vm2131, %v4182, %v4190
        %v4243 = vsel %vm2131, %v4168, %v4176
        %v4244 = vsel %vm2131, %v4170, %v4178
        %v4245 = vsel %vm2131, %v4172, %v4180
        %v4246 = vsel %vm2131, %v4174, %v4182
        %v4247 = vsel %vm2131, %v4160, %v4168
        %v4248 = vsel %vm2131, %v4162, %v4170
        %v4249 = vsel %vm2131, %v4164, %v4172
        %v4250 = vsel %vm2131, %v4166, %v4174
        %v4251 = vsel %vm2131, %v4216, %v4160
        %v4252 = vsel %vm2131, %v4218, %v4162
        %v4253 = vsel %vm2131, %v4220, %v4164
        %v4254 = vsel %vm2131, %v4222, %v4166
        %v4255 = vsel %vm2172, %v4247, 0.0
        %v4256 = vsel %vm2173, %v4243, 0.0
        %v4257 = vsel %vm2174, %v4239, 0.0
        %v4258 = vsel %vm2175, %v4235, 0.0
        %v4259 = vsel %vm2176, %v4231, 0.0
        %v4260 = vsel %vm2177, %v4227, 0.0
        %v4261 = vsel %vm2178, %v4223, 0.0
        %v4262 = vsel %vm2179, %v4251, 0.0
        %v4263 = vsel %vm2172, %v4248, 0.0
        %v4264 = vsel %vm2173, %v4244, 0.0
        %v4265 = vsel %vm2174, %v4240, 0.0
        %v4266 = vsel %vm2175, %v4236, 0.0
        %v4267 = vsel %vm2176, %v4232, 0.0
        %v4268 = vsel %vm2177, %v4228, 0.0
        %v4269 = vsel %vm2178, %v4224, 0.0
        %v4270 = vsel %vm2179, %v4252, 0.0
        %v4271 = vsel %vm2172, %v4249, 0.0
        %v4272 = vsel %vm2173, %v4245, 0.0
        %v4273 = vsel %vm2174, %v4241, 0.0
        %v4274 = vsel %vm2175, %v4237, 0.0
        %v4275 = vsel %vm2176, %v4233, 0.0
        %v4276 = vsel %vm2177, %v4229, 0.0
        %v4277 = vsel %vm2178, %v4225, 0.0
        %v4278 = vsel %vm2179, %v4253, 0.0
        %v4279 = vsel %vm2172, %v4250, 0.0
        %v4280 = vsel %vm2173, %v4246, 0.0
        %v4281 = vsel %vm2174, %v4242, 0.0
        %v4282 = vsel %vm2175, %v4238, 0.0
        %v4283 = vsel %vm2176, %v4234, 0.0
        %v4284 = vsel %vm2177, %v4230, 0.0
        %v4285 = vsel %vm2178, %v4226, 0.0
        %v4286 = vsel %vm2179, %v4254, 0.0
        %4287 = vset.pattern.permute.xlu0 8
        %4288 = vperm.xlu0 %4287, %v2610
        %v4289 = vpop.permute.xlu0 %4288
        %4291 = vset.pattern.permute.xlu0 8
        %4292 = vperm.xlu0 %4291, %v2611
        %v4293 = vpop.permute.xlu0 %4292
        %4295 = vset.pattern.permute.xlu0 8
        %4296 = vperm.xlu0 %4295, %v2612
        %v4297 = vpop.permute.xlu0 %4296
        %4299 = vset.pattern.permute.xlu0 8
        %4300 = vperm.xlu0 %4299, %v2613
        %v4301 = vpop.permute.xlu0 %4300
        %v4303 = vmul.f32 %v4255, %v4289
        %v4304 = vmul.f32 %v4256, %v4289
        %v4305 = vmul.f32 %v4257, %v4289
        %v4306 = vmul.f32 %v4258, %v4289
        %v4307 = vmul.f32 %v4259, %v4289
        %v4308 = vmul.f32 %v4260, %v4289
        %v4309 = vmul.f32 %v4261, %v4289
        %v4310 = vmul.f32 %v4262, %v4289
        %v4311 = vmul.f32 %v4263, %v4293
        %v4312 = vmul.f32 %v4264, %v4293
        %v4313 = vmul.f32 %v4265, %v4293
        %v4314 = vmul.f32 %v4266, %v4293
        %v4315 = vmul.f32 %v4267, %v4293
        %v4316 = vmul.f32 %v4268, %v4293
        %v4317 = vmul.f32 %v4269, %v4293
        %v4318 = vmul.f32 %v4270, %v4293
        %v4319 = vmul.f32 %v4271, %v4297
        %v4320 = vmul.f32 %v4272, %v4297
        %v4321 = vmul.f32 %v4273, %v4297
        %v4322 = vmul.f32 %v4274, %v4297
        %v4323 = vmul.f32 %v4275, %v4297
        %v4324 = vmul.f32 %v4276, %v4297
        %v4325 = vmul.f32 %v4277, %v4297
        %v4326 = vmul.f32 %v4278, %v4297
        %v4327 = vmul.f32 %v4279, %v4301
        %v4328 = vmul.f32 %v4280, %v4301
        %v4329 = vmul.f32 %v4281, %v4301
        %v4330 = vmul.f32 %v4282, %v4301
        %v4331 = vmul.f32 %v4283, %v4301
        %v4332 = vmul.f32 %v4284, %v4301
        %v4333 = vmul.f32 %v4285, %v4301
        %v4334 = vmul.f32 %v4286, %v4301
        %v4335 = vadd.f32 %v4127, %v4303
        %v4336 = vadd.f32 %v4128, %v4304
        %v4337 = vadd.f32 %v4129, %v4305
        %v4338 = vadd.f32 %v4130, %v4306
        %v4339 = vadd.f32 %v4131, %v4307
        %v4340 = vadd.f32 %v4132, %v4308
        %v4341 = vadd.f32 %v4133, %v4309
        %v4342 = vadd.f32 %v4134, %v4310
        %v4343 = vadd.f32 %v4135, %v4311
        %v4344 = vadd.f32 %v4136, %v4312
        %v4345 = vadd.f32 %v4137, %v4313
        %v4346 = vadd.f32 %v4138, %v4314
        %v4347 = vadd.f32 %v4139, %v4315
        %v4348 = vadd.f32 %v4140, %v4316
        %v4349 = vadd.f32 %v4141, %v4317
        %v4350 = vadd.f32 %v4142, %v4318
        %v4351 = vadd.f32 %v4143, %v4319
        %v4352 = vadd.f32 %v4144, %v4320
        %v4353 = vadd.f32 %v4145, %v4321
        %v4354 = vadd.f32 %v4146, %v4322
        %v4355 = vadd.f32 %v4147, %v4323
        %v4356 = vadd.f32 %v4148, %v4324
        %v4357 = vadd.f32 %v4149, %v4325
        %v4358 = vadd.f32 %v4150, %v4326
        %v4359 = vadd.f32 %v4151, %v4327
        %v4360 = vadd.f32 %v4152, %v4328
        %v4361 = vadd.f32 %v4153, %v4329
        %v4362 = vadd.f32 %v4154, %v4330
        %v4363 = vadd.f32 %v4155, %v4331
        %v4364 = vadd.f32 %v4156, %v4332
        %v4365 = vadd.f32 %v4157, %v4333
        %v4366 = vadd.f32 %v4158, %v4334
        %4367 = vset.pattern.permute.xlu0 2
        %4368 = vperm.xlu0 %4367, %v400
        %v4369 = vpop.permute.xlu0 %4368
        %4371 = vset.pattern.permute.xlu0 2
        %4372 = vperm.xlu0 %4371, %v401
        %v4373 = vpop.permute.xlu0 %4372
        %4375 = vset.pattern.permute.xlu0 2
        %4376 = vperm.xlu0 %4375, %v402
        %v4377 = vpop.permute.xlu0 %4376
        %4379 = vset.pattern.permute.xlu0 2
        %4380 = vperm.xlu0 %4379, %v403
        %v4381 = vpop.permute.xlu0 %4380
        %v4383 = vadd.f32 %v4335, %v4369
        %v4384 = vadd.f32 %v4336, %v4369
        %v4385 = vadd.f32 %v4337, %v4369
        %v4386 = vadd.f32 %v4338, %v4369
        %v4387 = vadd.f32 %v4339, %v4369
        %v4388 = vadd.f32 %v4340, %v4369
        %v4389 = vadd.f32 %v4341, %v4369
        %v4390 = vadd.f32 %v4342, %v4369
        %v4391 = vadd.f32 %v4343, %v4373
        %v4392 = vadd.f32 %v4344, %v4373
        %v4393 = vadd.f32 %v4345, %v4373
        %v4394 = vadd.f32 %v4346, %v4373
        %v4395 = vadd.f32 %v4347, %v4373
        %v4396 = vadd.f32 %v4348, %v4373
        %v4397 = vadd.f32 %v4349, %v4373
        %v4398 = vadd.f32 %v4350, %v4373
        %v4399 = vadd.f32 %v4351, %v4377
        %v4400 = vadd.f32 %v4352, %v4377
        %v4401 = vadd.f32 %v4353, %v4377
        %v4402 = vadd.f32 %v4354, %v4377
        %v4403 = vadd.f32 %v4355, %v4377
        %v4404 = vadd.f32 %v4356, %v4377
        %v4405 = vadd.f32 %v4357, %v4377
        %v4406 = vadd.f32 %v4358, %v4377
        %v4407 = vadd.f32 %v4359, %v4381
        %v4408 = vadd.f32 %v4360, %v4381
        %v4409 = vadd.f32 %v4361, %v4381
        %v4410 = vadd.f32 %v4362, %v4381
        %v4411 = vadd.f32 %v4363, %v4381
        %v4412 = vadd.f32 %v4364, %v4381
        %v4413 = vadd.f32 %v4365, %v4381
        %v4414 = vadd.f32 %v4366, %v4381
        %v4415 = vmax.f32 %v4383, 0.0
        %v4416 = vmax.f32 %v4384, 0.0
        %v4417 = vmax.f32 %v4385, 0.0
        %v4418 = vmax.f32 %v4386, 0.0
        %v4419 = vmax.f32 %v4387, 0.0
        %v4420 = vmax.f32 %v4388, 0.0
        %v4421 = vmax.f32 %v4389, 0.0
        %v4422 = vmax.f32 %v4390, 0.0
        %v4423 = vmax.f32 %v4391, 0.0
        %v4424 = vmax.f32 %v4392, 0.0
        %v4425 = vmax.f32 %v4393, 0.0
        %v4426 = vmax.f32 %v4394, 0.0
        %v4427 = vmax.f32 %v4395, 0.0
        %v4428 = vmax.f32 %v4396, 0.0
        %v4429 = vmax.f32 %v4397, 0.0
        %v4430 = vmax.f32 %v4398, 0.0
        %v4431 = vmax.f32 %v4399, 0.0
        %v4432 = vmax.f32 %v4400, 0.0
        %v4433 = vmax.f32 %v4401, 0.0
        %v4434 = vmax.f32 %v4402, 0.0
        %v4435 = vmax.f32 %v4403, 0.0
        %v4436 = vmax.f32 %v4404, 0.0
        %v4437 = vmax.f32 %v4405, 0.0
        %v4438 = vmax.f32 %v4406, 0.0
        %v4439 = vmax.f32 %v4407, 0.0
        %v4440 = vmax.f32 %v4408, 0.0
        %v4441 = vmax.f32 %v4409, 0.0
        %v4442 = vmax.f32 %v4410, 0.0
        %v4443 = vmax.f32 %v4411, 0.0
        %v4444 = vmax.f32 %v4412, 0.0
        %v4445 = vmax.f32 %v4413, 0.0
        %v4446 = vmax.f32 %v4414, 0.0
        %v4447 = vpack.c.bf16 %v4423, %v4415
        %v4448 = vpack.c.bf16 %v4424, %v4416
        %v4449 = vpack.c.bf16 %v4425, %v4417
        %v4450 = vpack.c.bf16 %v4426, %v4418
        %v4451 = vpack.c.bf16 %v4427, %v4419
        %v4452 = vpack.c.bf16 %v4428, %v4420
        %v4453 = vpack.c.bf16 %v4429, %v4421
        %v4454 = vpack.c.bf16 %v4430, %v4422
        %v4455 = vpack.c.bf16 %v4439, %v4431
        %v4456 = vpack.c.bf16 %v4440, %v4432
        %v4457 = vpack.c.bf16 %v4441, %v4433
        %v4458 = vpack.c.bf16 %v4442, %v4434
        %v4459 = vpack.c.bf16 %v4443, %v4435
        %v4460 = vpack.c.bf16 %v4444, %v4436
        %v4461 = vpack.c.bf16 %v4445, %v4437
        %v4462 = vpack.c.bf16 %v4446, %v4438
        %4463 = vset.pattern.permute.xlu0 3
        %4464 = vperm.xlu0 %4463, %v400
        %v4465 = vpop.permute.xlu0 %4464
        %4467 = vset.pattern.permute.xlu0 3
        %4468 = vperm.xlu0 %4467, %v401
        %v4469 = vpop.permute.xlu0 %4468
        %4471 = vset.pattern.permute.xlu0 3
        %4472 = vperm.xlu0 %4471, %v402
        %v4473 = vpop.permute.xlu0 %4472
        %4475 = vset.pattern.permute.xlu0 3
        %4476 = vperm.xlu0 %4475, %v403
        %v4477 = vpop.permute.xlu0 %4476
        %v4483 = vunpack.c.l.b16 %v2615
        %v4484 = vunpack.c.l.b16 %v2616
        %v4485 = vunpack.c.l.b16 %v2617
        %v4486 = vunpack.c.l.b16 %v2618
        %v4487 = vpack.c.b16 %v4484, %v4483
        %v4488 = vpack.c.b16 %v4486, %v4485
        %v4490 = vsel %vm2418, %v4487, 0
        %v4493 = vsel %vm2418, %v4488, 0
        %4495 = vmatpush.bf16.msra.mxu0 0
        %4496 = vmatpush.bf16.msra.mxu0 0
        %4497 = vmatpush.bf16.msra.mxu0 0
        %4498 = vmatpush.bf16.msra.mxu0 0
        %4499 = vmatpush.bf16.msra.mxu0 0
        %4500 = vmatpush.bf16.msra.mxu0 0
        %4501 = vmatpush.bf16.msra.mxu0 %v4455
        %4502 = vmatpush.bf16.msra.mxu0 %v4447
        %4503 = vmatmul.bf16.gmra.mxu0 %v4490
        %v4504 = vpop.f32.mrf.mxu0
        %v4505 = vadd.f32 %v4465, %v4504
        %v4506 = vpop.f32.mrf.mxu0
        %v4507 = vadd.f32 %v4469, %v4506
        %4508 = vmatmul.bf16.gmra.mxu0 %v4493
        %v4509 = vpop.f32.mrf.mxu0
        %v4510 = vadd.f32 %v4473, %v4509
        %v4511 = vpop.f32.mrf.mxu0
        %v4512 = vadd.f32 %v4477, %v4511
        %4513 = vdwg.mxu0
        %4514 = vmatpush.bf16.msra.mxu0 0
        %4515 = vmatpush.bf16.msra.mxu0 0
        %4516 = vmatpush.bf16.msra.mxu0 0
        %4517 = vmatpush.bf16.msra.mxu0 0
        %4518 = vmatpush.bf16.msra.mxu0 0
        %4519 = vmatpush.bf16.msra.mxu0 0
        %4520 = vmatpush.bf16.msra.mxu0 %v4456
        %4521 = vmatpush.bf16.msra.mxu0 %v4448
        %4522 = vmatmul.bf16.gmra.mxu0 %v4490
        %v4523 = vpop.f32.mrf.mxu0
        %v4524 = vadd.f32 %v4465, %v4523
        %v4525 = vpop.f32.mrf.mxu0
        %v4526 = vadd.f32 %v4469, %v4525
        %4527 = vmatmul.bf16.gmra.mxu0 %v4493
        %v4528 = vpop.f32.mrf.mxu0
        %v4529 = vadd.f32 %v4473, %v4528
        %v4530 = vpop.f32.mrf.mxu0
        %v4531 = vadd.f32 %v4477, %v4530
        %4532 = vdwg.mxu0
        %4533 = vmatpush.bf16.msra.mxu0 0
        %4534 = vmatpush.bf16.msra.mxu0 0
        %4535 = vmatpush.bf16.msra.mxu0 0
        %4536 = vmatpush.bf16.msra.mxu0 0
        %4537 = vmatpush.bf16.msra.mxu0 0
        %4538 = vmatpush.bf16.msra.mxu0 0
        %4539 = vmatpush.bf16.msra.mxu0 %v4457
        %4540 = vmatpush.bf16.msra.mxu0 %v4449
        %4541 = vmatmul.bf16.gmra.mxu0 %v4490
        %v4542 = vpop.f32.mrf.mxu0
        %v4543 = vadd.f32 %v4465, %v4542
        %v4544 = vpop.f32.mrf.mxu0
        %v4545 = vadd.f32 %v4469, %v4544
        %4546 = vmatmul.bf16.gmra.mxu0 %v4493
        %v4547 = vpop.f32.mrf.mxu0
        %v4548 = vadd.f32 %v4473, %v4547
        %v4549 = vpop.f32.mrf.mxu0
        %v4550 = vadd.f32 %v4477, %v4549
        %4551 = vdwg.mxu0
        %4552 = vmatpush.bf16.msra.mxu0 0
        %4553 = vmatpush.bf16.msra.mxu0 0
        %4554 = vmatpush.bf16.msra.mxu0 0
        %4555 = vmatpush.bf16.msra.mxu0 0
        %4556 = vmatpush.bf16.msra.mxu0 0
        %4557 = vmatpush.bf16.msra.mxu0 0
        %4558 = vmatpush.bf16.msra.mxu0 %v4458
        %4559 = vmatpush.bf16.msra.mxu0 %v4450
        %4560 = vmatmul.bf16.gmra.mxu0 %v4490
        %v4561 = vpop.f32.mrf.mxu0
        %v4562 = vadd.f32 %v4465, %v4561
        %v4563 = vpop.f32.mrf.mxu0
        %v4564 = vadd.f32 %v4469, %v4563
        %4565 = vmatmul.bf16.gmra.mxu0 %v4493
        %v4566 = vpop.f32.mrf.mxu0
        %v4567 = vadd.f32 %v4473, %v4566
        %v4568 = vpop.f32.mrf.mxu0
        %v4569 = vadd.f32 %v4477, %v4568
        %4570 = vdwg.mxu0
        %4571 = vmatpush.bf16.msra.mxu0 0
        %4572 = vmatpush.bf16.msra.mxu0 0
        %4573 = vmatpush.bf16.msra.mxu0 0
        %4574 = vmatpush.bf16.msra.mxu0 0
        %4575 = vmatpush.bf16.msra.mxu0 0
        %4576 = vmatpush.bf16.msra.mxu0 0
        %4577 = vmatpush.bf16.msra.mxu0 %v4459
        %4578 = vmatpush.bf16.msra.mxu0 %v4451
        %4579 = vmatmul.bf16.gmra.mxu0 %v4490
        %v4580 = vpop.f32.mrf.mxu0
        %v4581 = vadd.f32 %v4465, %v4580
        %v4582 = vpop.f32.mrf.mxu0
        %v4583 = vadd.f32 %v4469, %v4582
        %4584 = vmatmul.bf16.gmra.mxu0 %v4493
        %v4585 = vpop.f32.mrf.mxu0
        %v4586 = vadd.f32 %v4473, %v4585
        %v4587 = vpop.f32.mrf.mxu0
        %v4588 = vadd.f32 %v4477, %v4587
        %4589 = vdwg.mxu0
        %4590 = vmatpush.bf16.msra.mxu0 0
        %4591 = vmatpush.bf16.msra.mxu0 0
        %4592 = vmatpush.bf16.msra.mxu0 0
        %4593 = vmatpush.bf16.msra.mxu0 0
        %4594 = vmatpush.bf16.msra.mxu0 0
        %4595 = vmatpush.bf16.msra.mxu0 0
        %4596 = vmatpush.bf16.msra.mxu0 %v4460
        %4597 = vmatpush.bf16.msra.mxu0 %v4452
        %4598 = vmatmul.bf16.gmra.mxu0 %v4490
        %v4599 = vpop.f32.mrf.mxu0
        %v4600 = vadd.f32 %v4465, %v4599
        %v4601 = vpop.f32.mrf.mxu0
        %v4602 = vadd.f32 %v4469, %v4601
        %4603 = vmatmul.bf16.gmra.mxu0 %v4493
        %v4604 = vpop.f32.mrf.mxu0
        %v4605 = vadd.f32 %v4473, %v4604
        %v4606 = vpop.f32.mrf.mxu0
        %v4607 = vadd.f32 %v4477, %v4606
        %4608 = vdwg.mxu0
        %4609 = vmatpush.bf16.msra.mxu0 0
        %4610 = vmatpush.bf16.msra.mxu0 0
        %4611 = vmatpush.bf16.msra.mxu0 0
        %4612 = vmatpush.bf16.msra.mxu0 0
        %4613 = vmatpush.bf16.msra.mxu0 0
        %4614 = vmatpush.bf16.msra.mxu0 0
        %4615 = vmatpush.bf16.msra.mxu0 %v4461
        %4616 = vmatpush.bf16.msra.mxu0 %v4453
        %4617 = vmatmul.bf16.gmra.mxu0 %v4490
        %v4618 = vpop.f32.mrf.mxu0
        %v4619 = vadd.f32 %v4465, %v4618
        %v4620 = vpop.f32.mrf.mxu0
        %v4621 = vadd.f32 %v4469, %v4620
        %4622 = vmatmul.bf16.gmra.mxu0 %v4493
        %v4623 = vpop.f32.mrf.mxu0
        %v4624 = vadd.f32 %v4473, %v4623
        %v4625 = vpop.f32.mrf.mxu0
        %v4626 = vadd.f32 %v4477, %v4625
        %4627 = vdwg.mxu0
        %4628 = vmatpush.bf16.msra.mxu0 0
        %4629 = vmatpush.bf16.msra.mxu0 0
        %4630 = vmatpush.bf16.msra.mxu0 0
        %4631 = vmatpush.bf16.msra.mxu0 0
        %4632 = vmatpush.bf16.msra.mxu0 0
        %4633 = vmatpush.bf16.msra.mxu0 0
        %4634 = vmatpush.bf16.msra.mxu0 %v4462
        %4635 = vmatpush.bf16.msra.mxu0 %v4454
        %4636 = vmatmul.bf16.gmra.mxu0 %v4490
        %v4637 = vpop.f32.mrf.mxu0
        %v4638 = vadd.f32 %v4465, %v4637
        %v4639 = vpop.f32.mrf.mxu0
        %v4640 = vadd.f32 %v4469, %v4639
        %4641 = vmatmul.bf16.gmra.mxu0 %v4493
        %v4642 = vpop.f32.mrf.mxu0
        %v4643 = vadd.f32 %v4473, %v4642
        %v4644 = vpop.f32.mrf.mxu0
        %v4645 = vadd.f32 %v4477, %v4644
        %4646 = vdwg.mxu0
        %v4647 = vmax.f32 %v4505, 0.0
        %v4648 = vmax.f32 %v4524, 0.0
        %v4649 = vmax.f32 %v4543, 0.0
        %v4650 = vmax.f32 %v4562, 0.0
        %v4651 = vmax.f32 %v4581, 0.0
        %v4652 = vmax.f32 %v4600, 0.0
        %v4653 = vmax.f32 %v4619, 0.0
        %v4654 = vmax.f32 %v4638, 0.0
        %v4655 = vmax.f32 %v4507, 0.0
        %v4656 = vmax.f32 %v4526, 0.0
        %v4657 = vmax.f32 %v4545, 0.0
        %v4658 = vmax.f32 %v4564, 0.0
        %v4659 = vmax.f32 %v4583, 0.0
        %v4660 = vmax.f32 %v4602, 0.0
        %v4661 = vmax.f32 %v4621, 0.0
        %v4662 = vmax.f32 %v4640, 0.0
        %v4663 = vmax.f32 %v4510, 0.0
        %v4664 = vmax.f32 %v4529, 0.0
        %v4665 = vmax.f32 %v4548, 0.0
        %v4666 = vmax.f32 %v4567, 0.0
        %v4667 = vmax.f32 %v4586, 0.0
        %v4668 = vmax.f32 %v4605, 0.0
        %v4669 = vmax.f32 %v4624, 0.0
        %v4670 = vmax.f32 %v4643, 0.0
        %v4671 = vmax.f32 %v4512, 0.0
        %v4672 = vmax.f32 %v4531, 0.0
        %v4673 = vmax.f32 %v4550, 0.0
        %v4674 = vmax.f32 %v4569, 0.0
        %v4675 = vmax.f32 %v4588, 0.0
        %v4676 = vmax.f32 %v4607, 0.0
        %v4677 = vmax.f32 %v4626, 0.0
        %v4678 = vmax.f32 %v4645, 0.0
        %v4679 = vld [vmem:[%s4] sm:$0xf]
        %v4680 = vpack.c.bf16 %v4655, %v4647
        %v4681 = vpack.c.bf16 %v4656, %v4648
        %v4682 = vpack.c.bf16 %v4657, %v4649
        %v4683 = vpack.c.bf16 %v4658, %v4650
        %v4684 = vpack.c.bf16 %v4659, %v4651
        %v4685 = vpack.c.bf16 %v4660, %v4652
        %v4686 = vpack.c.bf16 %v4661, %v4653
        %v4687 = vpack.c.bf16 %v4662, %v4654
        %v4688 = vpack.c.bf16 %v4671, %v4663
        %v4689 = vpack.c.bf16 %v4672, %v4664
        %v4690 = vpack.c.bf16 %v4673, %v4665
        %v4691 = vpack.c.bf16 %v4674, %v4666
        %v4692 = vpack.c.bf16 %v4675, %v4667
        %v4693 = vpack.c.bf16 %v4676, %v4668
        %v4694 = vpack.c.bf16 %v4677, %v4669
        %v4695 = vpack.c.bf16 %v4678, %v4670
        %v4696 = vld [vmem:[%s5] sm:$0xff]
        %4698 = vset.pattern.permute.xlu0 0
        %4699 = vperm.xlu0 %4698, %v4696
        %v4700 = vpop.permute.xlu0 %4699
        %v4703 = vsel %vm2418, %v4679, 0
        %4705 = vmatpush.bf16.msra.mxu0 0
        %4706 = vmatpush.bf16.msra.mxu0 0
        %4707 = vmatpush.bf16.msra.mxu0 0
        %4708 = vmatpush.bf16.msra.mxu0 0
        %4709 = vmatpush.bf16.msra.mxu0 0
        %4710 = vmatpush.bf16.msra.mxu0 0
        %4711 = vmatpush.bf16.msra.mxu0 %v4688
        %4712 = vmatpush.bf16.msra.mxu0 %v4680
        %4713 = vmatmul.bf16.gmra.mxu0 %v4703
        %v4714 = vpop.f32.mrf.mxu0
        %v4715 = vadd.f32 %v4700, %v4714
        %v4716 = vpop.f32.mrf.mxu0
        %4717 = vdwg.mxu0
        %4718 = vmatpush.bf16.msra.mxu0 0
        %4719 = vmatpush.bf16.msra.mxu0 0
        %4720 = vmatpush.bf16.msra.mxu0 0
        %4721 = vmatpush.bf16.msra.mxu0 0
        %4722 = vmatpush.bf16.msra.mxu0 0
        %4723 = vmatpush.bf16.msra.mxu0 0
        %4724 = vmatpush.bf16.msra.mxu0 %v4689
        %4725 = vmatpush.bf16.msra.mxu0 %v4681
        %4726 = vmatmul.bf16.gmra.mxu0 %v4703
        %v4727 = vpop.f32.mrf.mxu0
        %v4728 = vadd.f32 %v4700, %v4727
        %v4729 = vpop.f32.mrf.mxu0
        %4730 = vdwg.mxu0
        %4731 = vmatpush.bf16.msra.mxu0 0
        %4732 = vmatpush.bf16.msra.mxu0 0
        %4733 = vmatpush.bf16.msra.mxu0 0
        %4734 = vmatpush.bf16.msra.mxu0 0
        %4735 = vmatpush.bf16.msra.mxu0 0
        %4736 = vmatpush.bf16.msra.mxu0 0
        %4737 = vmatpush.bf16.msra.mxu0 %v4690
        %4738 = vmatpush.bf16.msra.mxu0 %v4682
        %4739 = vmatmul.bf16.gmra.mxu0 %v4703
        %v4740 = vpop.f32.mrf.mxu0
        %v4741 = vadd.f32 %v4700, %v4740
        %v4742 = vpop.f32.mrf.mxu0
        %4743 = vdwg.mxu0
        %4744 = vmatpush.bf16.msra.mxu0 0
        %4745 = vmatpush.bf16.msra.mxu0 0
        %4746 = vmatpush.bf16.msra.mxu0 0
        %4747 = vmatpush.bf16.msra.mxu0 0
        %4748 = vmatpush.bf16.msra.mxu0 0
        %4749 = vmatpush.bf16.msra.mxu0 0
        %4750 = vmatpush.bf16.msra.mxu0 %v4691
        %4751 = vmatpush.bf16.msra.mxu0 %v4683
        %4752 = vmatmul.bf16.gmra.mxu0 %v4703
        %v4753 = vpop.f32.mrf.mxu0
        %v4754 = vadd.f32 %v4700, %v4753
        %v4755 = vpop.f32.mrf.mxu0
        %4756 = vdwg.mxu0
        %4757 = vmatpush.bf16.msra.mxu0 0
        %4758 = vmatpush.bf16.msra.mxu0 0
        %4759 = vmatpush.bf16.msra.mxu0 0
        %4760 = vmatpush.bf16.msra.mxu0 0
        %4761 = vmatpush.bf16.msra.mxu0 0
        %4762 = vmatpush.bf16.msra.mxu0 0
        %4763 = vmatpush.bf16.msra.mxu0 %v4692
        %4764 = vmatpush.bf16.msra.mxu0 %v4684
        %4765 = vmatmul.bf16.gmra.mxu0 %v4703
        %v4766 = vpop.f32.mrf.mxu0
        %v4767 = vadd.f32 %v4700, %v4766
        %v4768 = vpop.f32.mrf.mxu0
        %4769 = vdwg.mxu0
        %4770 = vmatpush.bf16.msra.mxu0 0
        %4771 = vmatpush.bf16.msra.mxu0 0
        %4772 = vmatpush.bf16.msra.mxu0 0
        %4773 = vmatpush.bf16.msra.mxu0 0
        %4774 = vmatpush.bf16.msra.mxu0 0
        %4775 = vmatpush.bf16.msra.mxu0 0
        %4776 = vmatpush.bf16.msra.mxu0 %v4693
        %4777 = vmatpush.bf16.msra.mxu0 %v4685
        %4778 = vmatmul.bf16.gmra.mxu0 %v4703
        %v4779 = vpop.f32.mrf.mxu0
        %v4780 = vadd.f32 %v4700, %v4779
        %v4781 = vpop.f32.mrf.mxu0
        %4782 = vdwg.mxu0
        %4783 = vmatpush.bf16.msra.mxu0 0
        %4784 = vmatpush.bf16.msra.mxu0 0
        %4785 = vmatpush.bf16.msra.mxu0 0
        %4786 = vmatpush.bf16.msra.mxu0 0
        %4787 = vmatpush.bf16.msra.mxu0 0
        %4788 = vmatpush.bf16.msra.mxu0 0
        %4789 = vmatpush.bf16.msra.mxu0 %v4694
        %4790 = vmatpush.bf16.msra.mxu0 %v4686
        %4791 = vmatmul.bf16.gmra.mxu0 %v4703
        %v4792 = vpop.f32.mrf.mxu0
        %v4793 = vadd.f32 %v4700, %v4792
        %v4794 = vpop.f32.mrf.mxu0
        %4795 = vdwg.mxu0
        %4796 = vmatpush.bf16.msra.mxu0 0
        %4797 = vmatpush.bf16.msra.mxu0 0
        %4798 = vmatpush.bf16.msra.mxu0 0
        %4799 = vmatpush.bf16.msra.mxu0 0
        %4800 = vmatpush.bf16.msra.mxu0 0
        %4801 = vmatpush.bf16.msra.mxu0 0
        %4802 = vmatpush.bf16.msra.mxu0 %v4695
        %4803 = vmatpush.bf16.msra.mxu0 %v4687
        %4804 = vmatmul.bf16.gmra.mxu0 %v4703
        %v4805 = vpop.f32.mrf.mxu0
        %v4806 = vadd.f32 %v4700, %v4805
        %v4807 = vpop.f32.mrf.mxu0
        %4808 = vdwg.mxu0
        %4809 = vst [vmem:[%s271] sm:$0xff] %v4715
        %4810 = vst [vmem:[%s271 + $0x8] sm:$0xff] %v4728
        %4811 = vst [vmem:[%s271 + $0x10] sm:$0xff] %v4741
        %4812 = vst [vmem:[%s271 + $0x18] sm:$0xff] %v4754
        %4813 = vst [vmem:[%s271 + $0x20] sm:$0xff] %v4767
        %4814 = vst [vmem:[%s271 + $0x28] sm:$0xff] %v4780
        %4815 = vst [vmem:[%s271 + $0x30] sm:$0xff] %v4793
        %4816 = vst [vmem:[%s271 + $0x38] sm:$0xff] %v4806
        %s4817 = sand.u32 %s162, 1
        %s4818 = scalar_lea.sflag [#allocation4], %s4817
        %s4819 = sand.u32 %s162, 1
        %s4820 = smul.addr %s4819, 64
        %s4821 = scalar_lea.vmem [#allocation5], %s4820
        // Predicated region
        $region49: #{tpu_custom_call.1} parent=43 // pred_check
          %p4822 = pneg %p172
        $region50: #{tpu_custom_call.1} parent=43 // pred_check_branch
          %4824 = sbr.rel (%p4822) target = $region52
        $region51: #{tpu_custom_call.1} parent=43 // pred_region
          %s4825 = smul.u32 8, %s23
          %4827 = vsyncadd %s4818, 0
          %s4828 = smul.addr %s4825, 8
          %s4829 = scalar_lea.hbm %s6, %s4828
          %s4831 = sshll.u32 %s4821, 4
          %s4832 = int_to_ptr.vmem [resolvable:$true] %s4831
          %s4833 = sshll.u32 %s4829, 4
          %s4834 = int_to_ptr.hbm [resolvable:$true] %s4833
          %4836 = dma.vmem_to_hbm [thread:$0]  %s4832, 1024, %s4834, %s4818
        $region52: #{tpu_custom_call.1} parent=43 // pred_fallthru
          _
      $region44: #{tpu_custom_call.1} parent=5 // pred_fallthru
        _
      %p4837 = scmp.le.s32.totalorder 2, %s18
      // Predicated region
      $region53: #{tpu_custom_call.1} parent=5 // pred_check
        %p4838 = pneg %p4837
      $region54: #{tpu_custom_call.1} parent=5 // pred_check_branch
        %4840 = sbr.rel (%p4838) target = $region56
      $region55: #{tpu_custom_call.1} parent=5 // pred_region
        %s4841 = ssub.s32 %s18, 2
        // Predicated region
        $region57: #{tpu_custom_call.1} parent=55 // pred_check
          %p4842 = pneg %p178
        $region58: #{tpu_custom_call.1} parent=55 // pred_check_branch
          %4844 = sbr.rel (%p4842) target = $region60
        $region59: #{tpu_custom_call.1} parent=55 // pred_region
          %s4845 = sand.u32 %s163, 1
          %s4846 = scalar_lea.sflag [#allocation4], %s4845
          %s4847 = sand.u32 %s163, 1
          %s4848 = smul.addr %s4847, 64
          %s4849 = scalar_lea.vmem [#allocation5], %s4848
          %4851 = dma.done %s4846, 1024
        $region60: #{tpu_custom_call.1} parent=55 // pred_fallthru
          _
      $region56: #{tpu_custom_call.1} parent=5 // pred_fallthru
        _
    $region6: #{tpu_custom_call.1} parent=1 // loop_footer
      %s22 = sadd.s32 1, %s18
    $region7: #{tpu_custom_call.1} parent=1 // loop_footer_branch
      %17 = sbr.rel target = $region3
    $region8: #{tpu_custom_call.1} parent=1 // loop_exit
      _
    %4852 = vsyncpa [#allocation3], 1
    %s4853 = scalar_lea.sflag [#allocation3], 1
    %4854 = vsyncpa %s4853, 1
    %4855 = vsyncpa [#allocation4], 1
    %s4856 = scalar_lea.sflag [#allocation4], 1
    %4857 = vsyncpa %s4856, 1

</llo_original>
